<compile_context>
chip_gen: v6e
topology: v6e:2x2x1
jax: 0.10.0
libtpu: 0.0.40
codegen_flags: <defaults>
</compile_context>

<pallas_src>
import jax
import jax.numpy as jnp
import numpy as np
from jax.experimental import pallas as pl
from jax.experimental.pallas import tpu as pltpu

EPS = 1e-5  # PyTorch BatchNorm2d default


# ----------------------------------------------------------------------------
# Fused Pallas kernel (whole forward pass, single invocation, no grid)
# ----------------------------------------------------------------------------
def _build_kernel(N, C, T, V, TP):
    L = T * V      # lanes for the st_gcn stage  (= 128 for the default sizes)
    S = C * V      # lanes for the txp-cnn stage (= 80)
    NC = N * C

    def kernel(x0_ref, abd_ref, wg_ref, bg_ref, wr_ref, br_ref,
               grg_ref, grb_ref, g1_ref, b1_ref, wt_ref, bt_ref,
               g2_ref, b2_ref, w0_ref, c0_ref, wo_ref, co_ref,
               alpha_ref, o_ref):
        f32 = jnp.float32

        def dot(a, b):
            return jnp.dot(a, b, preferred_element_type=f32,
                           precision=jax.lax.Precision.HIGHEST)

        # ---------------- st_gcn: 1x1 convs (gcn + residual) as VPU FMAs ------
        x0 = x0_ref[...]                       # (N*Cin, L), rows=(n,ci), lanes=(t,v)
        wg = wg_ref[...]                       # (NC, N*Cin) batch-block-diagonal
        wr = wr_ref[...]
        y = wg[:, 0:1] * x0[0:1, :]
        r = wr[:, 0:1] * x0[0:1, :]
        for j in range(1, x0.shape[0]):
            y = y + wg[:, j:j + 1] * x0[j:j + 1, :]
            r = r + wr[:, j:j + 1] * x0[j:j + 1, :]
        y = y + bg_ref[...]                    # (NC, L)
        r = r + br_ref[...]

        # ---------------- BatchNorm (train-mode batch stats, one pass) --------
        def batchnorm(x, g, b):
            s = jnp.sum(x[0:C, :], axis=1, keepdims=True)
            ss = jnp.sum(x[0:C, :] * x[0:C, :], axis=1, keepdims=True)
            for n in range(1, N):
                xn = x[n * C:(n + 1) * C, :]
                s = s + jnp.sum(xn, axis=1, keepdims=True)
                ss = ss + jnp.sum(xn * xn, axis=1, keepdims=True)
            inv_cnt = 1.0 / float(N * x.shape[1])
            mean = s * inv_cnt
            var = ss * inv_cnt - mean * mean
            scale = g * jax.lax.rsqrt(var + EPS)
            shift = b - mean * scale
            scale = jnp.concatenate([scale] * N, axis=0)   # (NC,1)
            shift = jnp.concatenate([shift] * N, axis=0)
            return x * scale + shift

        res = batchnorm(r, grg_ref[...], grb_ref[...])     # residual branch

        # ---------------- graph conv: block-diagonal adjacency matmul ---------
        z = dot(y, abd_ref[...])                           # (NC, L)

        # ---------------- tcn: BN -> PReLU -> (3,1) conv -> BN ; +res ; PReLU -
        a_tcn = alpha_ref[0]
        t1 = batchnorm(z, g1_ref[...], b1_ref[...])
        t1 = jnp.where(t1 >= 0, t1, a_tcn * t1)
        zpad = jnp.zeros((NC, V), f32)
        t_prev = jnp.concatenate([zpad, t1[:, :L - V]], axis=1)   # x[t-1] (zero pad)
        t_next = jnp.concatenate([t1[:, V:], zpad], axis=1)       # x[t+1]
        st = jnp.concatenate([t_prev, t1, t_next], axis=0)        # (3*NC, L)
        t3 = dot(wt_ref[...], st) + bt_ref[...]                   # (NC, L)
        a_out = alpha_ref[1]
        v1 = batchnorm(t3, g2_ref[...], b2_ref[...]) + res
        v1 = jnp.where(v1 >= 0, v1, a_out * v1)                   # (NC, L)

        # ---------------- .view(N, T, C, V): re-split each batch's flat buffer
        rows = []
        for n in range(N):
            flat = jnp.concatenate(
                [v1[n * C + c: n * C + c + 1, :] for c in range(C)],
                axis=1)                                           # (1, C*T*V)
            for tp in range(T):
                rows.append(flat[:, tp * S:(tp + 1) * S])         # (1, C*V)
        xk = jnp.concatenate(rows, axis=0)                        # (N*T, S) rows=(n,t')

        # ---------------- txp-cnn: two 3x3 convs via shifted stacks + fat dots
        col = jax.lax.broadcasted_iota(jnp.int32, (1, S), 1)
        if V & (V - 1) == 0:
            ww = jnp.bitwise_and(col, V - 1)
        else:
            ww = col % V

        def shifted_stack(x):
            nrow = x.shape[0]
            pieces = []
            for oh in (-1, 0, 1):
                if oh < 0:
                    okh = col >= (-oh) * V
                elif oh > 0:
                    okh = col < (C - oh) * V
                else:
                    okh = None
                for ow in (-1, 0, 1):
                    if ow < 0:
                        okw = ww >= -ow
                    elif ow > 0:
                        okw = ww < V - ow
                    else:
                        okw = None
                    d = oh * V + ow
                    if d > 0:
                        sh = jnp.concatenate(
                            [x[:, d:], jnp.zeros((nrow, d), f32)], axis=1)
                    elif d < 0:
                        sh = jnp.concatenate(
                            [jnp.zeros((nrow, -d), f32), x[:, :S + d]], axis=1)
                    else:
                        sh = x
                    if okh is not None and okw is not None:
                        ok = okh & okw
                    elif okh is not None:
                        ok = okh
                    else:
                        ok = okw
                    pieces.append(sh if ok is None else jnp.where(ok, sh, 0.0))
            return jnp.concatenate(pieces, axis=0)     # (9*nrow, S)

        a_tp = alpha_ref[2]
        u1 = dot(w0_ref[...], shifted_stack(xk)) + c0_ref[...]    # (N*TP, S)
        u1 = jnp.where(u1 >= 0, u1, a_tp * u1)
        u2 = dot(wo_ref[...], shifted_stack(u1)) + co_ref[...]    # (N*TP, S)
        o_ref[...] = u2

    return kernel


# ----------------------------------------------------------------------------
# Wrapper: layout-only glue on inputs/weights, single pallas_call
# ----------------------------------------------------------------------------
def model_forward(v, a, p):
    N, Cin, T, V = v.shape
    C = p['Wg'].shape[0]        # 5
    TP = p['Wtp0'].shape[0]     # 12
    L = T * V
    S = C * V
    f32 = jnp.float32

    # input as (N*Cin, T*V) -- contiguous reshape, lanes = (t, v)
    x0 = v.reshape(N * Cin, L).astype(f32)

    # block-diagonal adjacency: A_bd[t*V+v, s*V+w] = (t==s) * A[t, v, w]
    eyeT = jnp.eye(T, dtype=f32)
    A_bd = (eyeT[:, None, :, None] * a[:, :, None, :]).reshape(L, L)

    # batch-block-diagonal weight matrices (rows = (n, c_out), cols = (... n, c_in))
    eyeN = jnp.eye(N, dtype=f32)
    wg = jnp.kron(eyeN, p['Wg'][:, :, 0, 0])                      # (N*C, N*Cin)
    wr = jnp.kron(eyeN, p['Wres'][:, :, 0, 0])
    bg = jnp.tile(p['bg'], N).reshape(N * C, 1)
    br = jnp.tile(p['bres'], N).reshape(N * C, 1)
    wt = jnp.concatenate(
        [jnp.kron(eyeN, p['Wt'][:, :, k, 0]) for k in range(p['Wt'].shape[2])],
        axis=1)                                                   # (N*C, 3*N*C)
    bt = jnp.tile(p['bt'], N).reshape(N * C, 1)
    w0 = jnp.concatenate(
        [jnp.kron(eyeN, p['Wtp0'][:, :, kh, kw]) for kh in range(3) for kw in range(3)],
        axis=1)                                                   # (N*TP, 9*N*T)
    c0 = jnp.tile(p['btp0'], N).reshape(N * TP, 1)
    wo = jnp.concatenate(
        [jnp.kron(eyeN, p['Wtpo'][:, :, kh, kw]) for kh in range(3) for kw in range(3)],
        axis=1)                                                   # (N*TP, 9*N*TP)
    co = jnp.tile(p['btpo'], N).reshape(N * TP, 1)

    def ascol(x):
        return x.reshape(-1, 1).astype(f32)

    alphas = jnp.concatenate([p['a_tcn'], p['a_out'], p['a_tp0']]).astype(f32)  # (3,)

    vmem = pl.BlockSpec(memory_space=pltpu.MemorySpace.VMEM)
    smem = pl.BlockSpec(memory_space=pltpu.MemorySpace.SMEM)

    out = pl.pallas_call(
        _build_kernel(N, C, T, V, TP),
        out_shape=jax.ShapeDtypeStruct((N * TP, S), f32),
        in_specs=[vmem] * 18 + [smem],
        out_specs=vmem,
    )(x0, A_bd, wg, bg, wr, br,
      ascol(p['bnres_g']), ascol(p['bnres_b']),
      ascol(p['bn1_g']), ascol(p['bn1_b']),
      wt, bt,
      ascol(p['bn2_g']), ascol(p['bn2_b']),
      w0, c0, wo, co, alphas)

    # kernel output rows are (n, out_channel), lanes (h=c', w=v); the trailing
    # PyTorch .view(N, 5, 12, V) is a pure contiguous reshape of that buffer.
    w_out = out.reshape(N, C, TP, V)
    return w_out, a


# ----------------------------------------------------------------------------
# Independent pure-JAX reference (for correctness check)
# ----------------------------------------------------------------------------
def _ref_conv2d(x, w, b, padding):
    out = jax.lax.conv_general_dilated(
        x, w, window_strides=(1, 1),
        padding=((padding[0], padding[0]), (padding[1], padding[1])),
        dimension_numbers=('NCHW', 'OIHW', 'NCHW'),
        precision=jax.lax.Precision.HIGHEST)
    return out + b.reshape(1, -1, 1, 1)


def _ref_bn(x, g, b):
    mean = jnp.mean(x, axis=(0, 2, 3), keepdims=True)
    var = jnp.mean((x - mean) ** 2, axis=(0, 2, 3), keepdims=True)
    return (x - mean) / jnp.sqrt(var + EPS) * g.reshape(1, -1, 1, 1) + b.reshape(1, -1, 1, 1)


def _ref_prelu(x, a):
    return jnp.where(x >= 0, x, a * x)


def _ref_forward(v, a, p):
    res = _ref_bn(_ref_conv2d(v, p['Wres'], p['bres'], (0, 0)), p['bnres_g'], p['bnres_b'])
    y = _ref_conv2d(v, p['Wg'], p['bg'], (0, 0))
    z = jnp.einsum('nctv,tvw->nctw', y, a, precision=jax.lax.Precision.HIGHEST)
    t = _ref_prelu(_ref_bn(z, p['bn1_g'], p['bn1_b']), p['a_tcn'][0])
    t = _ref_conv2d(t, p['Wt'], p['bt'], (1, 0))
    x = _ref_prelu(_ref_bn(t, p['bn2_g'], p['bn2_b']) + res, p['a_out'][0])
    N, C, T, V = x.shape
    x = x.reshape(N, T, C, V)
    x = _ref_prelu(_ref_conv2d(x, p['Wtp0'], p['btp0'], (1, 1)), p['a_tp0'][0])
    x = _ref_conv2d(x, p['Wtpo'], p['btpo'], (1, 1))
    x = x.reshape(N, x.shape[2], x.shape[1], V)
    return x, a


# ----------------------------------------------------------------------------
# Deterministic parameter init (shapes from social_stgcnn.__init__ defaults)
# ----------------------------------------------------------------------------
def init_params(key):
    ks = jax.random.split(key, 16)

    def nrm(k, shape, s=0.2):
        return s * jax.random.normal(k, shape, jnp.float32)

    p = {}
    # st_gcn(2 -> 5, kernel=(3, 8))
    p['Wg'] = nrm(ks[0], (5, 2, 1, 1));   p['bg'] = nrm(ks[1], (5,))
    p['bn1_g'] = 1.0 + nrm(ks[2], (5,));  p['bn1_b'] = nrm(ks[3], (5,))
    p['a_tcn'] = jnp.array([0.25], jnp.float32)          # PReLU default
    p['Wt'] = nrm(ks[4], (5, 5, 3, 1));   p['bt'] = nrm(ks[5], (5,))
    p['bn2_g'] = 1.0 + nrm(ks[6], (5,));  p['bn2_b'] = nrm(ks[7], (5,))
    p['Wres'] = nrm(ks[8], (5, 2, 1, 1)); p['bres'] = nrm(ks[9], (5,))
    p['bnres_g'] = 1.0 + nrm(ks[10], (5,)); p['bnres_b'] = nrm(ks[11], (5,))
    p['a_out'] = jnp.array([0.25], jnp.float32)
    # tpcnns[0]: Conv2d(8, 12, 3, pad 1); tpcnn_ouput: Conv2d(12, 12, 3, pad 1)
    p['Wtp0'] = nrm(ks[12], (12, 8, 3, 3)); p['btp0'] = nrm(ks[13], (12,))
    p['a_tp0'] = jnp.array([0.25], jnp.float32)
    p['Wtpo'] = nrm(ks[14], (12, 12, 3, 3)); p['btpo'] = nrm(ks[15], (12,))
    return p


if __name__ == "__main__":
    key = jax.random.PRNGKey(0)
    kv, ka, kp = jax.random.split(key, 3)

    N, Cin, T, V = 2, 2, 8, 16        # (N, input_feat, seq_len, num_nodes)
    v = jax.random.normal(kv, (N, Cin, T, V), jnp.float32)
    a = jax.random.normal(ka, (T, V, V), jnp.float32)   # K == seq_len == 8
    params = init_params(kp)

    fwd = jax.jit(model_forward)
    out_v, out_a = fwd(v, a, params)
    out_v = jax.block_until_ready(out_v)

    assert out_v.shape == (N, 5, 12, V), out_v.shape
    assert out_a.shape == (T, V, V)

    ref_v, _ = _ref_forward(v, a, params)
    np.testing.assert_allclose(np.asarray(out_v), np.asarray(ref_v),
                               rtol=2e-2, atol=2e-2)
    print("KERNEL_OK")
</pallas_src>

<mosaic_0001>
module attributes {stable_mosaic.version = 11 : i64} {
  func.func @kernel(%arg0: memref<4x128xf32, #tpu.memory_space<vmem>>, %arg1: memref<128x128xf32, #tpu.memory_space<vmem>>, %arg2: memref<10x4xf32, #tpu.memory_space<vmem>>, %arg3: memref<10x1xf32, #tpu.memory_space<vmem>>, %arg4: memref<10x4xf32, #tpu.memory_space<vmem>>, %arg5: memref<10x1xf32, #tpu.memory_space<vmem>>, %arg6: memref<5x1xf32, #tpu.memory_space<vmem>>, %arg7: memref<5x1xf32, #tpu.memory_space<vmem>>, %arg8: memref<5x1xf32, #tpu.memory_space<vmem>>, %arg9: memref<5x1xf32, #tpu.memory_space<vmem>>, %arg10: memref<10x30xf32, #tpu.memory_space<vmem>>, %arg11: memref<10x1xf32, #tpu.memory_space<vmem>>, %arg12: memref<5x1xf32, #tpu.memory_space<vmem>>, %arg13: memref<5x1xf32, #tpu.memory_space<vmem>>, %arg14: memref<24x144xf32, #tpu.memory_space<vmem>>, %arg15: memref<24x1xf32, #tpu.memory_space<vmem>>, %arg16: memref<24x216xf32, #tpu.memory_space<vmem>>, %arg17: memref<24x1xf32, #tpu.memory_space<vmem>>, %arg18: memref<3xf32, #tpu.memory_space<smem>>, %arg19: memref<24x80xf32, #tpu.memory_space<vmem>>) attributes {dimension_semantics = [], scalar_prefetch = 0 : i64, scratch_operands = 0 : i64, tpu.core_type = #tpu.core_type<tc>} {
    %c0 = arith.constant 0 : index
    %c0_0 = arith.constant 0 : index
    %0 = vector.load %arg0[%c0, %c0_0] : memref<4x128xf32, #tpu.memory_space<vmem>>, vector<4x128xf32>
    %c0_1 = arith.constant 0 : index
    %c0_2 = arith.constant 0 : index
    %1 = vector.load %arg2[%c0_1, %c0_2] : memref<10x4xf32, #tpu.memory_space<vmem>>, vector<10x4xf32>
    %c0_3 = arith.constant 0 : index
    %c0_4 = arith.constant 0 : index
    %2 = vector.load %arg4[%c0_3, %c0_4] : memref<10x4xf32, #tpu.memory_space<vmem>>, vector<10x4xf32>
    %3 = vector.extract_strided_slice %1 {offsets = [0, 0], sizes = [10, 1], strides = [1, 1]} : vector<10x4xf32> to vector<10x1xf32>
    %4 = vector.extract_strided_slice %0 {offsets = [0, 0], sizes = [1, 128], strides = [1, 1]} : vector<4x128xf32> to vector<1x128xf32>
    %5 = vector.broadcast %3 : vector<10x1xf32> to vector<10x128xf32>
    %6 = vector.broadcast %4 : vector<1x128xf32> to vector<10x128xf32>
    %7 = arith.mulf %5, %6 : vector<10x128xf32>
    %8 = vector.extract_strided_slice %2 {offsets = [0, 0], sizes = [10, 1], strides = [1, 1]} : vector<10x4xf32> to vector<10x1xf32>
    %9 = vector.extract_strided_slice %0 {offsets = [0, 0], sizes = [1, 128], strides = [1, 1]} : vector<4x128xf32> to vector<1x128xf32>
    %10 = vector.broadcast %8 : vector<10x1xf32> to vector<10x128xf32>
    %11 = vector.broadcast %9 : vector<1x128xf32> to vector<10x128xf32>
    %12 = arith.mulf %10, %11 : vector<10x128xf32>
    %13 = vector.extract_strided_slice %1 {offsets = [0, 1], sizes = [10, 1], strides = [1, 1]} : vector<10x4xf32> to vector<10x1xf32>
    %14 = vector.extract_strided_slice %0 {offsets = [1, 0], sizes = [1, 128], strides = [1, 1]} : vector<4x128xf32> to vector<1x128xf32>
    %15 = vector.broadcast %13 : vector<10x1xf32> to vector<10x128xf32>
    %16 = vector.broadcast %14 : vector<1x128xf32> to vector<10x128xf32>
    %17 = arith.mulf %15, %16 : vector<10x128xf32>
    %18 = arith.addf %7, %17 : vector<10x128xf32>
    %19 = vector.extract_strided_slice %2 {offsets = [0, 1], sizes = [10, 1], strides = [1, 1]} : vector<10x4xf32> to vector<10x1xf32>
    %20 = vector.extract_strided_slice %0 {offsets = [1, 0], sizes = [1, 128], strides = [1, 1]} : vector<4x128xf32> to vector<1x128xf32>
    %21 = vector.broadcast %19 : vector<10x1xf32> to vector<10x128xf32>
    %22 = vector.broadcast %20 : vector<1x128xf32> to vector<10x128xf32>
    %23 = arith.mulf %21, %22 : vector<10x128xf32>
    %24 = arith.addf %12, %23 : vector<10x128xf32>
    %25 = vector.extract_strided_slice %1 {offsets = [0, 2], sizes = [10, 1], strides = [1, 1]} : vector<10x4xf32> to vector<10x1xf32>
    %26 = vector.extract_strided_slice %0 {offsets = [2, 0], sizes = [1, 128], strides = [1, 1]} : vector<4x128xf32> to vector<1x128xf32>
    %27 = vector.broadcast %25 : vector<10x1xf32> to vector<10x128xf32>
    %28 = vector.broadcast %26 : vector<1x128xf32> to vector<10x128xf32>
    %29 = arith.mulf %27, %28 : vector<10x128xf32>
    %30 = arith.addf %18, %29 : vector<10x128xf32>
    %31 = vector.extract_strided_slice %2 {offsets = [0, 2], sizes = [10, 1], strides = [1, 1]} : vector<10x4xf32> to vector<10x1xf32>
    %32 = vector.extract_strided_slice %0 {offsets = [2, 0], sizes = [1, 128], strides = [1, 1]} : vector<4x128xf32> to vector<1x128xf32>
    %33 = vector.broadcast %31 : vector<10x1xf32> to vector<10x128xf32>
    %34 = vector.broadcast %32 : vector<1x128xf32> to vector<10x128xf32>
    %35 = arith.mulf %33, %34 : vector<10x128xf32>
    %36 = arith.addf %24, %35 : vector<10x128xf32>
    %37 = vector.extract_strided_slice %1 {offsets = [0, 3], sizes = [10, 1], strides = [1, 1]} : vector<10x4xf32> to vector<10x1xf32>
    %38 = vector.extract_strided_slice %0 {offsets = [3, 0], sizes = [1, 128], strides = [1, 1]} : vector<4x128xf32> to vector<1x128xf32>
    %39 = vector.broadcast %37 : vector<10x1xf32> to vector<10x128xf32>
    %40 = vector.broadcast %38 : vector<1x128xf32> to vector<10x128xf32>
    %41 = arith.mulf %39, %40 : vector<10x128xf32>
    %42 = arith.addf %30, %41 : vector<10x128xf32>
    %43 = vector.extract_strided_slice %2 {offsets = [0, 3], sizes = [10, 1], strides = [1, 1]} : vector<10x4xf32> to vector<10x1xf32>
    %44 = vector.extract_strided_slice %0 {offsets = [3, 0], sizes = [1, 128], strides = [1, 1]} : vector<4x128xf32> to vector<1x128xf32>
    %45 = vector.broadcast %43 : vector<10x1xf32> to vector<10x128xf32>
    %46 = vector.broadcast %44 : vector<1x128xf32> to vector<10x128xf32>
    %47 = arith.mulf %45, %46 : vector<10x128xf32>
    %48 = arith.addf %36, %47 : vector<10x128xf32>
    %c0_5 = arith.constant 0 : index
    %c0_6 = arith.constant 0 : index
    %49 = vector.load %arg3[%c0_5, %c0_6] : memref<10x1xf32, #tpu.memory_space<vmem>>, vector<10x1xf32>
    %50 = vector.broadcast %49 : vector<10x1xf32> to vector<10x128xf32>
    %51 = arith.addf %42, %50 : vector<10x128xf32>
    %c0_7 = arith.constant 0 : index
    %c0_8 = arith.constant 0 : index
    %52 = vector.load %arg5[%c0_7, %c0_8] : memref<10x1xf32, #tpu.memory_space<vmem>>, vector<10x1xf32>
    %53 = vector.broadcast %52 : vector<10x1xf32> to vector<10x128xf32>
    %54 = arith.addf %48, %53 : vector<10x128xf32>
    %c0_9 = arith.constant 0 : index
    %c0_10 = arith.constant 0 : index
    %55 = vector.load %arg6[%c0_9, %c0_10] : memref<5x1xf32, #tpu.memory_space<vmem>>, vector<5x1xf32>
    %c0_11 = arith.constant 0 : index
    %c0_12 = arith.constant 0 : index
    %56 = vector.load %arg7[%c0_11, %c0_12] : memref<5x1xf32, #tpu.memory_space<vmem>>, vector<5x1xf32>
    %57 = vector.extract_strided_slice %54 {offsets = [0, 0], sizes = [5, 128], strides = [1, 1]} : vector<10x128xf32> to vector<5x128xf32>
    %cst = arith.constant dense<0.000000e+00> : vector<5xf32>
    %58 = vector.multi_reduction <add>, %57, %cst [1] : vector<5x128xf32> to vector<5xf32>
    %59 = vector.shape_cast %58 : vector<5xf32> to vector<5x1xf32>
    %60 = vector.extract_strided_slice %54 {offsets = [0, 0], sizes = [5, 128], strides = [1, 1]} : vector<10x128xf32> to vector<5x128xf32>
    %61 = vector.extract_strided_slice %54 {offsets = [0, 0], sizes = [5, 128], strides = [1, 1]} : vector<10x128xf32> to vector<5x128xf32>
    %62 = arith.mulf %60, %61 : vector<5x128xf32>
    %cst_13 = arith.constant dense<0.000000e+00> : vector<5xf32>
    %63 = vector.multi_reduction <add>, %62, %cst_13 [1] : vector<5x128xf32> to vector<5xf32>
    %64 = vector.shape_cast %63 : vector<5xf32> to vector<5x1xf32>
    %65 = vector.extract_strided_slice %54 {offsets = [5, 0], sizes = [5, 128], strides = [1, 1]} : vector<10x128xf32> to vector<5x128xf32>
    %cst_14 = arith.constant dense<0.000000e+00> : vector<5xf32>
    %66 = vector.multi_reduction <add>, %65, %cst_14 [1] : vector<5x128xf32> to vector<5xf32>
    %67 = vector.shape_cast %66 : vector<5xf32> to vector<5x1xf32>
    %68 = arith.addf %59, %67 : vector<5x1xf32>
    %69 = arith.mulf %65, %65 : vector<5x128xf32>
    %cst_15 = arith.constant dense<0.000000e+00> : vector<5xf32>
    %70 = vector.multi_reduction <add>, %69, %cst_15 [1] : vector<5x128xf32> to vector<5xf32>
    %71 = vector.shape_cast %70 : vector<5xf32> to vector<5x1xf32>
    %72 = arith.addf %64, %71 : vector<5x1xf32>
    %cst_16 = arith.constant 3.906250e-03 : f32
    %73 = vector.broadcast %cst_16 : f32 to vector<5x1xf32>
    %74 = arith.mulf %68, %73 : vector<5x1xf32>
    %cst_17 = arith.constant 3.906250e-03 : f32
    %75 = vector.broadcast %cst_17 : f32 to vector<5x1xf32>
    %76 = arith.mulf %72, %75 : vector<5x1xf32>
    %77 = arith.mulf %74, %74 : vector<5x1xf32>
    %78 = arith.subf %76, %77 : vector<5x1xf32>
    %cst_18 = arith.constant 9.99999974E-6 : f32
    %79 = vector.broadcast %cst_18 : f32 to vector<5x1xf32>
    %80 = arith.addf %78, %79 : vector<5x1xf32>
    %81 = math.rsqrt %80 : vector<5x1xf32>
    %82 = arith.mulf %55, %81 : vector<5x1xf32>
    %83 = arith.mulf %74, %82 : vector<5x1xf32>
    %84 = arith.subf %56, %83 : vector<5x1xf32>
    %85 = tpu.concatenate %82, %82 in 0 : vector<5x1xf32>, vector<5x1xf32> -> vector<10x1xf32>
    %86 = tpu.concatenate %84, %84 in 0 : vector<5x1xf32>, vector<5x1xf32> -> vector<10x1xf32>
    %87 = vector.broadcast %85 : vector<10x1xf32> to vector<10x128xf32>
    %88 = arith.mulf %54, %87 : vector<10x128xf32>
    %89 = vector.broadcast %86 : vector<10x1xf32> to vector<10x128xf32>
    %90 = arith.addf %88, %89 : vector<10x128xf32>
    %c0_19 = arith.constant 0 : index
    %c0_20 = arith.constant 0 : index
    %91 = vector.load %arg1[%c0_19, %c0_20] : memref<128x128xf32, #tpu.memory_space<vmem>>, vector<128x128xf32>
    %cst_21 = arith.constant dense<0.000000e+00> : vector<10x128xf32>
    %92 = tpu.matmul %51, %91, %cst_21 {dimension_numbers = #tpu.dot_dimension_numbers<[1], [0], [0], [1], [0, 0, 1, 1], [], []>, precision = #tpu.contract_precision<fp32>} : vector<10x128xf32>, vector<128x128xf32>, vector<10x128xf32> -> vector<10x128xf32>
    %c0_22 = arith.constant 0 : index
    %93 = memref.load %arg18[%c0_22] : memref<3xf32, #tpu.memory_space<smem>>
    %c0_23 = arith.constant 0 : index
    %c0_24 = arith.constant 0 : index
    %94 = vector.load %arg8[%c0_23, %c0_24] : memref<5x1xf32, #tpu.memory_space<vmem>>, vector<5x1xf32>
    %c0_25 = arith.constant 0 : index
    %c0_26 = arith.constant 0 : index
    %95 = vector.load %arg9[%c0_25, %c0_26] : memref<5x1xf32, #tpu.memory_space<vmem>>, vector<5x1xf32>
    %96 = vector.extract_strided_slice %92 {offsets = [0, 0], sizes = [5, 128], strides = [1, 1]} : vector<10x128xf32> to vector<5x128xf32>
    %cst_27 = arith.constant dense<0.000000e+00> : vector<5xf32>
    %97 = vector.multi_reduction <add>, %96, %cst_27 [1] : vector<5x128xf32> to vector<5xf32>
    %98 = vector.shape_cast %97 : vector<5xf32> to vector<5x1xf32>
    %99 = vector.extract_strided_slice %92 {offsets = [0, 0], sizes = [5, 128], strides = [1, 1]} : vector<10x128xf32> to vector<5x128xf32>
    %100 = vector.extract_strided_slice %92 {offsets = [0, 0], sizes = [5, 128], strides = [1, 1]} : vector<10x128xf32> to vector<5x128xf32>
    %101 = arith.mulf %99, %100 : vector<5x128xf32>
    %cst_28 = arith.constant dense<0.000000e+00> : vector<5xf32>
    %102 = vector.multi_reduction <add>, %101, %cst_28 [1] : vector<5x128xf32> to vector<5xf32>
    %103 = vector.shape_cast %102 : vector<5xf32> to vector<5x1xf32>
    %104 = vector.extract_strided_slice %92 {offsets = [5, 0], sizes = [5, 128], strides = [1, 1]} : vector<10x128xf32> to vector<5x128xf32>
    %cst_29 = arith.constant dense<0.000000e+00> : vector<5xf32>
    %105 = vector.multi_reduction <add>, %104, %cst_29 [1] : vector<5x128xf32> to vector<5xf32>
    %106 = vector.shape_cast %105 : vector<5xf32> to vector<5x1xf32>
    %107 = arith.addf %98, %106 : vector<5x1xf32>
    %108 = arith.mulf %104, %104 : vector<5x128xf32>
    %cst_30 = arith.constant dense<0.000000e+00> : vector<5xf32>
    %109 = vector.multi_reduction <add>, %108, %cst_30 [1] : vector<5x128xf32> to vector<5xf32>
    %110 = vector.shape_cast %109 : vector<5xf32> to vector<5x1xf32>
    %111 = arith.addf %103, %110 : vector<5x1xf32>
    %cst_31 = arith.constant 3.906250e-03 : f32
    %112 = vector.broadcast %cst_31 : f32 to vector<5x1xf32>
    %113 = arith.mulf %107, %112 : vector<5x1xf32>
    %cst_32 = arith.constant 3.906250e-03 : f32
    %114 = vector.broadcast %cst_32 : f32 to vector<5x1xf32>
    %115 = arith.mulf %111, %114 : vector<5x1xf32>
    %116 = arith.mulf %113, %113 : vector<5x1xf32>
    %117 = arith.subf %115, %116 : vector<5x1xf32>
    %cst_33 = arith.constant 9.99999974E-6 : f32
    %118 = vector.broadcast %cst_33 : f32 to vector<5x1xf32>
    %119 = arith.addf %117, %118 : vector<5x1xf32>
    %120 = math.rsqrt %119 : vector<5x1xf32>
    %121 = arith.mulf %94, %120 : vector<5x1xf32>
    %122 = arith.mulf %113, %121 : vector<5x1xf32>
    %123 = arith.subf %95, %122 : vector<5x1xf32>
    %124 = tpu.concatenate %121, %121 in 0 : vector<5x1xf32>, vector<5x1xf32> -> vector<10x1xf32>
    %125 = tpu.concatenate %123, %123 in 0 : vector<5x1xf32>, vector<5x1xf32> -> vector<10x1xf32>
    %126 = vector.broadcast %124 : vector<10x1xf32> to vector<10x128xf32>
    %127 = arith.mulf %92, %126 : vector<10x128xf32>
    %128 = vector.broadcast %125 : vector<10x1xf32> to vector<10x128xf32>
    %129 = arith.addf %127, %128 : vector<10x128xf32>
    %cst_34 = arith.constant 0.000000e+00 : f32
    %130 = vector.broadcast %cst_34 : f32 to vector<10x128xf32>
    %131 = arith.cmpf oge, %129, %130 : vector<10x128xf32>
    %132 = vector.broadcast %93 : f32 to vector<10x128xf32>
    %133 = arith.mulf %132, %129 : vector<10x128xf32>
    %134 = arith.select %131, %129, %133 : vector<10x128xi1>, vector<10x128xf32>
    %cst_35 = arith.constant 0.000000e+00 : f32
    %135 = vector.broadcast %cst_35 : f32 to vector<10x16xf32>
    %136 = vector.extract_strided_slice %134 {offsets = [0, 0], sizes = [10, 112], strides = [1, 1]} : vector<10x128xf32> to vector<10x112xf32>
    %137 = tpu.concatenate %135, %136 in 1 : vector<10x16xf32>, vector<10x112xf32> -> vector<10x128xf32>
    %138 = vector.extract_strided_slice %134 {offsets = [0, 16], sizes = [10, 112], strides = [1, 1]} : vector<10x128xf32> to vector<10x112xf32>
    %139 = tpu.concatenate %138, %135 in 1 : vector<10x112xf32>, vector<10x16xf32> -> vector<10x128xf32>
    %140 = tpu.concatenate %137, %134, %139 in 0 : vector<10x128xf32>, vector<10x128xf32>, vector<10x128xf32> -> vector<30x128xf32>
    %c0_36 = arith.constant 0 : index
    %c0_37 = arith.constant 0 : index
    %141 = vector.load %arg10[%c0_36, %c0_37] : memref<10x30xf32, #tpu.memory_space<vmem>>, vector<10x30xf32>
    %cst_38 = arith.constant dense<0.000000e+00> : vector<10x128xf32>
    %142 = tpu.matmul %141, %140, %cst_38 {dimension_numbers = #tpu.dot_dimension_numbers<[1], [0], [0], [1], [0, 0, 1, 1], [], []>, precision = #tpu.contract_precision<fp32>} : vector<10x30xf32>, vector<30x128xf32>, vector<10x128xf32> -> vector<10x128xf32>
    %c0_39 = arith.constant 0 : index
    %c0_40 = arith.constant 0 : index
    %143 = vector.load %arg11[%c0_39, %c0_40] : memref<10x1xf32, #tpu.memory_space<vmem>>, vector<10x1xf32>
    %144 = vector.broadcast %143 : vector<10x1xf32> to vector<10x128xf32>
    %145 = arith.addf %142, %144 : vector<10x128xf32>
    %c1 = arith.constant 1 : index
    %146 = memref.load %arg18[%c1] : memref<3xf32, #tpu.memory_space<smem>>
    %c0_41 = arith.constant 0 : index
    %c0_42 = arith.constant 0 : index
    %147 = vector.load %arg12[%c0_41, %c0_42] : memref<5x1xf32, #tpu.memory_space<vmem>>, vector<5x1xf32>
    %c0_43 = arith.constant 0 : index
    %c0_44 = arith.constant 0 : index
    %148 = vector.load %arg13[%c0_43, %c0_44] : memref<5x1xf32, #tpu.memory_space<vmem>>, vector<5x1xf32>
    %149 = vector.extract_strided_slice %145 {offsets = [0, 0], sizes = [5, 128], strides = [1, 1]} : vector<10x128xf32> to vector<5x128xf32>
    %cst_45 = arith.constant dense<0.000000e+00> : vector<5xf32>
    %150 = vector.multi_reduction <add>, %149, %cst_45 [1] : vector<5x128xf32> to vector<5xf32>
    %151 = vector.shape_cast %150 : vector<5xf32> to vector<5x1xf32>
    %152 = vector.extract_strided_slice %145 {offsets = [0, 0], sizes = [5, 128], strides = [1, 1]} : vector<10x128xf32> to vector<5x128xf32>
    %153 = vector.extract_strided_slice %145 {offsets = [0, 0], sizes = [5, 128], strides = [1, 1]} : vector<10x128xf32> to vector<5x128xf32>
    %154 = arith.mulf %152, %153 : vector<5x128xf32>
    %cst_46 = arith.constant dense<0.000000e+00> : vector<5xf32>
    %155 = vector.multi_reduction <add>, %154, %cst_46 [1] : vector<5x128xf32> to vector<5xf32>
    %156 = vector.shape_cast %155 : vector<5xf32> to vector<5x1xf32>
    %157 = vector.extract_strided_slice %145 {offsets = [5, 0], sizes = [5, 128], strides = [1, 1]} : vector<10x128xf32> to vector<5x128xf32>
    %cst_47 = arith.constant dense<0.000000e+00> : vector<5xf32>
    %158 = vector.multi_reduction <add>, %157, %cst_47 [1] : vector<5x128xf32> to vector<5xf32>
    %159 = vector.shape_cast %158 : vector<5xf32> to vector<5x1xf32>
    %160 = arith.addf %151, %159 : vector<5x1xf32>
    %161 = arith.mulf %157, %157 : vector<5x128xf32>
    %cst_48 = arith.constant dense<0.000000e+00> : vector<5xf32>
    %162 = vector.multi_reduction <add>, %161, %cst_48 [1] : vector<5x128xf32> to vector<5xf32>
    %163 = vector.shape_cast %162 : vector<5xf32> to vector<5x1xf32>
    %164 = arith.addf %156, %163 : vector<5x1xf32>
    %cst_49 = arith.constant 3.906250e-03 : f32
    %165 = vector.broadcast %cst_49 : f32 to vector<5x1xf32>
    %166 = arith.mulf %160, %165 : vector<5x1xf32>
    %cst_50 = arith.constant 3.906250e-03 : f32
    %167 = vector.broadcast %cst_50 : f32 to vector<5x1xf32>
    %168 = arith.mulf %164, %167 : vector<5x1xf32>
    %169 = arith.mulf %166, %166 : vector<5x1xf32>
    %170 = arith.subf %168, %169 : vector<5x1xf32>
    %cst_51 = arith.constant 9.99999974E-6 : f32
    %171 = vector.broadcast %cst_51 : f32 to vector<5x1xf32>
    %172 = arith.addf %170, %171 : vector<5x1xf32>
    %173 = math.rsqrt %172 : vector<5x1xf32>
    %174 = arith.mulf %147, %173 : vector<5x1xf32>
    %175 = arith.mulf %166, %174 : vector<5x1xf32>
    %176 = arith.subf %148, %175 : vector<5x1xf32>
    %177 = tpu.concatenate %174, %174 in 0 : vector<5x1xf32>, vector<5x1xf32> -> vector<10x1xf32>
    %178 = tpu.concatenate %176, %176 in 0 : vector<5x1xf32>, vector<5x1xf32> -> vector<10x1xf32>
    %179 = vector.broadcast %177 : vector<10x1xf32> to vector<10x128xf32>
    %180 = arith.mulf %145, %179 : vector<10x128xf32>
    %181 = vector.broadcast %178 : vector<10x1xf32> to vector<10x128xf32>
    %182 = arith.addf %180, %181 : vector<10x128xf32>
    %183 = arith.addf %182, %90 : vector<10x128xf32>
    %cst_52 = arith.constant 0.000000e+00 : f32
    %184 = vector.broadcast %cst_52 : f32 to vector<10x128xf32>
    %185 = arith.cmpf oge, %183, %184 : vector<10x128xf32>
    %186 = vector.broadcast %146 : f32 to vector<10x128xf32>
    %187 = arith.mulf %186, %183 : vector<10x128xf32>
    %188 = arith.select %185, %183, %187 : vector<10x128xi1>, vector<10x128xf32>
    %189 = vector.extract_strided_slice %188 {offsets = [0, 0], sizes = [1, 128], strides = [1, 1]} : vector<10x128xf32> to vector<1x128xf32>
    %190 = vector.extract_strided_slice %188 {offsets = [1, 0], sizes = [1, 128], strides = [1, 1]} : vector<10x128xf32> to vector<1x128xf32>
    %191 = vector.extract_strided_slice %188 {offsets = [2, 0], sizes = [1, 128], strides = [1, 1]} : vector<10x128xf32> to vector<1x128xf32>
    %192 = vector.extract_strided_slice %188 {offsets = [3, 0], sizes = [1, 128], strides = [1, 1]} : vector<10x128xf32> to vector<1x128xf32>
    %193 = vector.extract_strided_slice %188 {offsets = [4, 0], sizes = [1, 128], strides = [1, 1]} : vector<10x128xf32> to vector<1x128xf32>
    %194 = tpu.concatenate %189, %190, %191, %192, %193 in 1 : vector<1x128xf32>, vector<1x128xf32>, vector<1x128xf32>, vector<1x128xf32>, vector<1x128xf32> -> vector<1x640xf32>
    %195 = vector.extract_strided_slice %194 {offsets = [0, 0], sizes = [1, 80], strides = [1, 1]} : vector<1x640xf32> to vector<1x80xf32>
    %196 = vector.extract_strided_slice %194 {offsets = [0, 80], sizes = [1, 80], strides = [1, 1]} : vector<1x640xf32> to vector<1x80xf32>
    %197 = vector.extract_strided_slice %194 {offsets = [0, 160], sizes = [1, 80], strides = [1, 1]} : vector<1x640xf32> to vector<1x80xf32>
    %198 = vector.extract_strided_slice %194 {offsets = [0, 240], sizes = [1, 80], strides = [1, 1]} : vector<1x640xf32> to vector<1x80xf32>
    %199 = vector.extract_strided_slice %194 {offsets = [0, 320], sizes = [1, 80], strides = [1, 1]} : vector<1x640xf32> to vector<1x80xf32>
    %200 = vector.extract_strided_slice %194 {offsets = [0, 400], sizes = [1, 80], strides = [1, 1]} : vector<1x640xf32> to vector<1x80xf32>
    %201 = vector.extract_strided_slice %194 {offsets = [0, 480], sizes = [1, 80], strides = [1, 1]} : vector<1x640xf32> to vector<1x80xf32>
    %202 = vector.extract_strided_slice %194 {offsets = [0, 560], sizes = [1, 80], strides = [1, 1]} : vector<1x640xf32> to vector<1x80xf32>
    %203 = vector.extract_strided_slice %188 {offsets = [5, 0], sizes = [1, 128], strides = [1, 1]} : vector<10x128xf32> to vector<1x128xf32>
    %204 = vector.extract_strided_slice %188 {offsets = [6, 0], sizes = [1, 128], strides = [1, 1]} : vector<10x128xf32> to vector<1x128xf32>
    %205 = vector.extract_strided_slice %188 {offsets = [7, 0], sizes = [1, 128], strides = [1, 1]} : vector<10x128xf32> to vector<1x128xf32>
    %206 = vector.extract_strided_slice %188 {offsets = [8, 0], sizes = [1, 128], strides = [1, 1]} : vector<10x128xf32> to vector<1x128xf32>
    %207 = vector.extract_strided_slice %188 {offsets = [9, 0], sizes = [1, 128], strides = [1, 1]} : vector<10x128xf32> to vector<1x128xf32>
    %208 = tpu.concatenate %203, %204, %205, %206, %207 in 1 : vector<1x128xf32>, vector<1x128xf32>, vector<1x128xf32>, vector<1x128xf32>, vector<1x128xf32> -> vector<1x640xf32>
    %209 = vector.extract_strided_slice %208 {offsets = [0, 0], sizes = [1, 80], strides = [1, 1]} : vector<1x640xf32> to vector<1x80xf32>
    %210 = vector.extract_strided_slice %208 {offsets = [0, 80], sizes = [1, 80], strides = [1, 1]} : vector<1x640xf32> to vector<1x80xf32>
    %211 = vector.extract_strided_slice %208 {offsets = [0, 160], sizes = [1, 80], strides = [1, 1]} : vector<1x640xf32> to vector<1x80xf32>
    %212 = vector.extract_strided_slice %208 {offsets = [0, 240], sizes = [1, 80], strides = [1, 1]} : vector<1x640xf32> to vector<1x80xf32>
    %213 = vector.extract_strided_slice %208 {offsets = [0, 320], sizes = [1, 80], strides = [1, 1]} : vector<1x640xf32> to vector<1x80xf32>
    %214 = vector.extract_strided_slice %208 {offsets = [0, 400], sizes = [1, 80], strides = [1, 1]} : vector<1x640xf32> to vector<1x80xf32>
    %215 = vector.extract_strided_slice %208 {offsets = [0, 480], sizes = [1, 80], strides = [1, 1]} : vector<1x640xf32> to vector<1x80xf32>
    %216 = vector.extract_strided_slice %208 {offsets = [0, 560], sizes = [1, 80], strides = [1, 1]} : vector<1x640xf32> to vector<1x80xf32>
    %217 = tpu.concatenate %195, %196, %197, %198, %199, %200, %201, %202, %209, %210, %211, %212, %213, %214, %215, %216 in 0 : vector<1x80xf32>, vector<1x80xf32>, vector<1x80xf32>, vector<1x80xf32>, vector<1x80xf32>, vector<1x80xf32>, vector<1x80xf32>, vector<1x80xf32>, vector<1x80xf32>, vector<1x80xf32>, vector<1x80xf32>, vector<1x80xf32>, vector<1x80xf32>, vector<1x80xf32>, vector<1x80xf32>, vector<1x80xf32> -> vector<16x80xf32>
    %218 = tpu.iota {dimensions = array<i32: 1>} : vector<1x80xi32>
    %c15_i32 = arith.constant 15 : i32
    %219 = vector.broadcast %c15_i32 : i32 to vector<1x80xi32>
    %220 = arith.andi %218, %219 : vector<1x80xi32>
    %c2 = arith.constant 2 : index
    %221 = memref.load %arg18[%c2] : memref<3xf32, #tpu.memory_space<smem>>
    %c0_53 = arith.constant 0 : index
    %c0_54 = arith.constant 0 : index
    %222 = vector.load %arg14[%c0_53, %c0_54] : memref<24x144xf32, #tpu.memory_space<vmem>>, vector<24x144xf32>
    %c16_i32 = arith.constant 16 : i32
    %223 = vector.broadcast %c16_i32 : i32 to vector<1x80xi32>
    %224 = arith.cmpi sge, %218, %223 : vector<1x80xi32>
    %c1_i32 = arith.constant 1 : i32
    %225 = vector.broadcast %c1_i32 : i32 to vector<1x80xi32>
    %226 = arith.cmpi sge, %220, %225 : vector<1x80xi32>
    %cst_55 = arith.constant 0.000000e+00 : f32
    %227 = vector.broadcast %cst_55 : f32 to vector<16x17xf32>
    %228 = vector.extract_strided_slice %217 {offsets = [0, 0], sizes = [16, 63], strides = [1, 1]} : vector<16x80xf32> to vector<16x63xf32>
    %229 = tpu.concatenate %227, %228 in 1 : vector<16x17xf32>, vector<16x63xf32> -> vector<16x80xf32>
    %230 = arith.andi %224, %226 : vector<1x80xi1>
    %cst_56 = arith.constant 0.000000e+00 : f32
    %231 = vector.shape_cast %230 : vector<1x80xi1> to vector<1x80xi1>
    %232 = vector.broadcast %231 : vector<1x80xi1> to vector<16x80xi1>
    %233 = vector.broadcast %cst_56 : f32 to vector<16x80xf32>
    %234 = arith.select %232, %229, %233 : vector<16x80xi1>, vector<16x80xf32>
    %cst_57 = arith.constant 0.000000e+00 : f32
    %235 = vector.broadcast %cst_57 : f32 to vector<16x16xf32>
    %236 = vector.extract_strided_slice %217 {offsets = [0, 0], sizes = [16, 64], strides = [1, 1]} : vector<16x80xf32> to vector<16x64xf32>
    %237 = tpu.concatenate %235, %236 in 1 : vector<16x16xf32>, vector<16x64xf32> -> vector<16x80xf32>
    %cst_58 = arith.constant 0.000000e+00 : f32
    %238 = vector.shape_cast %224 : vector<1x80xi1> to vector<1x80xi1>
    %239 = vector.broadcast %238 : vector<1x80xi1> to vector<16x80xi1>
    %240 = vector.broadcast %cst_58 : f32 to vector<16x80xf32>
    %241 = arith.select %239, %237, %240 : vector<16x80xi1>, vector<16x80xf32>
    %c15_i32_59 = arith.constant 15 : i32
    %242 = vector.broadcast %c15_i32_59 : i32 to vector<1x80xi32>
    %243 = arith.cmpi slt, %220, %242 : vector<1x80xi32>
    %cst_60 = arith.constant 0.000000e+00 : f32
    %244 = vector.broadcast %cst_60 : f32 to vector<16x15xf32>
    %245 = vector.extract_strided_slice %217 {offsets = [0, 0], sizes = [16, 65], strides = [1, 1]} : vector<16x80xf32> to vector<16x65xf32>
    %246 = tpu.concatenate %244, %245 in 1 : vector<16x15xf32>, vector<16x65xf32> -> vector<16x80xf32>
    %247 = arith.andi %224, %243 : vector<1x80xi1>
    %cst_61 = arith.constant 0.000000e+00 : f32
    %248 = vector.shape_cast %247 : vector<1x80xi1> to vector<1x80xi1>
    %249 = vector.broadcast %248 : vector<1x80xi1> to vector<16x80xi1>
    %250 = vector.broadcast %cst_61 : f32 to vector<16x80xf32>
    %251 = arith.select %249, %246, %250 : vector<16x80xi1>, vector<16x80xf32>
    %c1_i32_62 = arith.constant 1 : i32
    %252 = vector.broadcast %c1_i32_62 : i32 to vector<1x80xi32>
    %253 = arith.cmpi sge, %220, %252 : vector<1x80xi32>
    %cst_63 = arith.constant 0.000000e+00 : f32
    %254 = vector.broadcast %cst_63 : f32 to vector<16x1xf32>
    %255 = vector.extract_strided_slice %217 {offsets = [0, 0], sizes = [16, 79], strides = [1, 1]} : vector<16x80xf32> to vector<16x79xf32>
    %256 = tpu.concatenate %254, %255 in 1 : vector<16x1xf32>, vector<16x79xf32> -> vector<16x80xf32>
    %cst_64 = arith.constant 0.000000e+00 : f32
    %257 = vector.shape_cast %253 : vector<1x80xi1> to vector<1x80xi1>
    %258 = vector.broadcast %257 : vector<1x80xi1> to vector<16x80xi1>
    %259 = vector.broadcast %cst_64 : f32 to vector<16x80xf32>
    %260 = arith.select %258, %256, %259 : vector<16x80xi1>, vector<16x80xf32>
    %c15_i32_65 = arith.constant 15 : i32
    %261 = vector.broadcast %c15_i32_65 : i32 to vector<1x80xi32>
    %262 = arith.cmpi slt, %220, %261 : vector<1x80xi32>
    %263 = vector.extract_strided_slice %217 {offsets = [0, 1], sizes = [16, 79], strides = [1, 1]} : vector<16x80xf32> to vector<16x79xf32>
    %cst_66 = arith.constant 0.000000e+00 : f32
    %264 = vector.broadcast %cst_66 : f32 to vector<16x1xf32>
    %265 = tpu.concatenate %263, %264 in 1 : vector<16x79xf32>, vector<16x1xf32> -> vector<16x80xf32>
    %cst_67 = arith.constant 0.000000e+00 : f32
    %266 = vector.shape_cast %262 : vector<1x80xi1> to vector<1x80xi1>
    %267 = vector.broadcast %266 : vector<1x80xi1> to vector<16x80xi1>
    %268 = vector.broadcast %cst_67 : f32 to vector<16x80xf32>
    %269 = arith.select %267, %265, %268 : vector<16x80xi1>, vector<16x80xf32>
    %c64_i32 = arith.constant 64 : i32
    %270 = vector.broadcast %c64_i32 : i32 to vector<1x80xi32>
    %271 = arith.cmpi slt, %218, %270 : vector<1x80xi32>
    %c1_i32_68 = arith.constant 1 : i32
    %272 = vector.broadcast %c1_i32_68 : i32 to vector<1x80xi32>
    %273 = arith.cmpi sge, %220, %272 : vector<1x80xi32>
    %274 = vector.extract_strided_slice %217 {offsets = [0, 15], sizes = [16, 65], strides = [1, 1]} : vector<16x80xf32> to vector<16x65xf32>
    %cst_69 = arith.constant 0.000000e+00 : f32
    %275 = vector.broadcast %cst_69 : f32 to vector<16x15xf32>
    %276 = tpu.concatenate %274, %275 in 1 : vector<16x65xf32>, vector<16x15xf32> -> vector<16x80xf32>
    %277 = arith.andi %271, %273 : vector<1x80xi1>
    %cst_70 = arith.constant 0.000000e+00 : f32
    %278 = vector.shape_cast %277 : vector<1x80xi1> to vector<1x80xi1>
    %279 = vector.broadcast %278 : vector<1x80xi1> to vector<16x80xi1>
    %280 = vector.broadcast %cst_70 : f32 to vector<16x80xf32>
    %281 = arith.select %279, %276, %280 : vector<16x80xi1>, vector<16x80xf32>
    %282 = vector.extract_strided_slice %217 {offsets = [0, 16], sizes = [16, 64], strides = [1, 1]} : vector<16x80xf32> to vector<16x64xf32>
    %cst_71 = arith.constant 0.000000e+00 : f32
    %283 = vector.broadcast %cst_71 : f32 to vector<16x16xf32>
    %284 = tpu.concatenate %282, %283 in 1 : vector<16x64xf32>, vector<16x16xf32> -> vector<16x80xf32>
    %cst_72 = arith.constant 0.000000e+00 : f32
    %285 = vector.shape_cast %271 : vector<1x80xi1> to vector<1x80xi1>
    %286 = vector.broadcast %285 : vector<1x80xi1> to vector<16x80xi1>
    %287 = vector.broadcast %cst_72 : f32 to vector<16x80xf32>
    %288 = arith.select %286, %284, %287 : vector<16x80xi1>, vector<16x80xf32>
    %c15_i32_73 = arith.constant 15 : i32
    %289 = vector.broadcast %c15_i32_73 : i32 to vector<1x80xi32>
    %290 = arith.cmpi slt, %220, %289 : vector<1x80xi32>
    %291 = vector.extract_strided_slice %217 {offsets = [0, 17], sizes = [16, 63], strides = [1, 1]} : vector<16x80xf32> to vector<16x63xf32>
    %cst_74 = arith.constant 0.000000e+00 : f32
    %292 = vector.broadcast %cst_74 : f32 to vector<16x17xf32>
    %293 = tpu.concatenate %291, %292 in 1 : vector<16x63xf32>, vector<16x17xf32> -> vector<16x80xf32>
    %294 = arith.andi %271, %290 : vector<1x80xi1>
    %cst_75 = arith.constant 0.000000e+00 : f32
    %295 = vector.shape_cast %294 : vector<1x80xi1> to vector<1x80xi1>
    %296 = vector.broadcast %295 : vector<1x80xi1> to vector<16x80xi1>
    %297 = vector.broadcast %cst_75 : f32 to vector<16x80xf32>
    %298 = arith.select %296, %293, %297 : vector<16x80xi1>, vector<16x80xf32>
    %299 = tpu.concatenate %234, %241, %251, %260, %217, %269, %281, %288, %298 in 0 : vector<16x80xf32>, vector<16x80xf32>, vector<16x80xf32>, vector<16x80xf32>, vector<16x80xf32>, vector<16x80xf32>, vector<16x80xf32>, vector<16x80xf32>, vector<16x80xf32> -> vector<144x80xf32>
    %cst_76 = arith.constant dense<0.000000e+00> : vector<24x80xf32>
    %300 = tpu.matmul %222, %299, %cst_76 {dimension_numbers = #tpu.dot_dimension_numbers<[1], [0], [0], [1], [0, 0, 1, 1], [], []>, precision = #tpu.contract_precision<fp32>} : vector<24x144xf32>, vector<144x80xf32>, vector<24x80xf32> -> vector<24x80xf32>
    %c0_77 = arith.constant 0 : index
    %c0_78 = arith.constant 0 : index
    %301 = vector.load %arg15[%c0_77, %c0_78] : memref<24x1xf32, #tpu.memory_space<vmem>>, vector<24x1xf32>
    %302 = vector.broadcast %301 : vector<24x1xf32> to vector<24x80xf32>
    %303 = arith.addf %300, %302 : vector<24x80xf32>
    %cst_79 = arith.constant 0.000000e+00 : f32
    %304 = vector.broadcast %cst_79 : f32 to vector<24x80xf32>
    %305 = arith.cmpf oge, %303, %304 : vector<24x80xf32>
    %306 = vector.broadcast %221 : f32 to vector<24x80xf32>
    %307 = arith.mulf %306, %303 : vector<24x80xf32>
    %308 = arith.select %305, %303, %307 : vector<24x80xi1>, vector<24x80xf32>
    %c0_80 = arith.constant 0 : index
    %c0_81 = arith.constant 0 : index
    %309 = vector.load %arg16[%c0_80, %c0_81] : memref<24x216xf32, #tpu.memory_space<vmem>>, vector<24x216xf32>
    %c16_i32_82 = arith.constant 16 : i32
    %310 = vector.broadcast %c16_i32_82 : i32 to vector<1x80xi32>
    %311 = arith.cmpi sge, %218, %310 : vector<1x80xi32>
    %c1_i32_83 = arith.constant 1 : i32
    %312 = vector.broadcast %c1_i32_83 : i32 to vector<1x80xi32>
    %313 = arith.cmpi sge, %220, %312 : vector<1x80xi32>
    %cst_84 = arith.constant 0.000000e+00 : f32
    %314 = vector.broadcast %cst_84 : f32 to vector<24x17xf32>
    %315 = vector.extract_strided_slice %308 {offsets = [0, 0], sizes = [24, 63], strides = [1, 1]} : vector<24x80xf32> to vector<24x63xf32>
    %316 = tpu.concatenate %314, %315 in 1 : vector<24x17xf32>, vector<24x63xf32> -> vector<24x80xf32>
    %317 = arith.andi %311, %313 : vector<1x80xi1>
    %cst_85 = arith.constant 0.000000e+00 : f32
    %318 = vector.shape_cast %317 : vector<1x80xi1> to vector<1x80xi1>
    %319 = vector.broadcast %318 : vector<1x80xi1> to vector<24x80xi1>
    %320 = vector.broadcast %cst_85 : f32 to vector<24x80xf32>
    %321 = arith.select %319, %316, %320 : vector<24x80xi1>, vector<24x80xf32>
    %cst_86 = arith.constant 0.000000e+00 : f32
    %322 = vector.broadcast %cst_86 : f32 to vector<24x16xf32>
    %323 = vector.extract_strided_slice %308 {offsets = [0, 0], sizes = [24, 64], strides = [1, 1]} : vector<24x80xf32> to vector<24x64xf32>
    %324 = tpu.concatenate %322, %323 in 1 : vector<24x16xf32>, vector<24x64xf32> -> vector<24x80xf32>
    %cst_87 = arith.constant 0.000000e+00 : f32
    %325 = vector.shape_cast %311 : vector<1x80xi1> to vector<1x80xi1>
    %326 = vector.broadcast %325 : vector<1x80xi1> to vector<24x80xi1>
    %327 = vector.broadcast %cst_87 : f32 to vector<24x80xf32>
    %328 = arith.select %326, %324, %327 : vector<24x80xi1>, vector<24x80xf32>
    %c15_i32_88 = arith.constant 15 : i32
    %329 = vector.broadcast %c15_i32_88 : i32 to vector<1x80xi32>
    %330 = arith.cmpi slt, %220, %329 : vector<1x80xi32>
    %cst_89 = arith.constant 0.000000e+00 : f32
    %331 = vector.broadcast %cst_89 : f32 to vector<24x15xf32>
    %332 = vector.extract_strided_slice %308 {offsets = [0, 0], sizes = [24, 65], strides = [1, 1]} : vector<24x80xf32> to vector<24x65xf32>
    %333 = tpu.concatenate %331, %332 in 1 : vector<24x15xf32>, vector<24x65xf32> -> vector<24x80xf32>
    %334 = arith.andi %311, %330 : vector<1x80xi1>
    %cst_90 = arith.constant 0.000000e+00 : f32
    %335 = vector.shape_cast %334 : vector<1x80xi1> to vector<1x80xi1>
    %336 = vector.broadcast %335 : vector<1x80xi1> to vector<24x80xi1>
    %337 = vector.broadcast %cst_90 : f32 to vector<24x80xf32>
    %338 = arith.select %336, %333, %337 : vector<24x80xi1>, vector<24x80xf32>
    %c1_i32_91 = arith.constant 1 : i32
    %339 = vector.broadcast %c1_i32_91 : i32 to vector<1x80xi32>
    %340 = arith.cmpi sge, %220, %339 : vector<1x80xi32>
    %cst_92 = arith.constant 0.000000e+00 : f32
    %341 = vector.broadcast %cst_92 : f32 to vector<24x1xf32>
    %342 = vector.extract_strided_slice %308 {offsets = [0, 0], sizes = [24, 79], strides = [1, 1]} : vector<24x80xf32> to vector<24x79xf32>
    %343 = tpu.concatenate %341, %342 in 1 : vector<24x1xf32>, vector<24x79xf32> -> vector<24x80xf32>
    %cst_93 = arith.constant 0.000000e+00 : f32
    %344 = vector.shape_cast %340 : vector<1x80xi1> to vector<1x80xi1>
    %345 = vector.broadcast %344 : vector<1x80xi1> to vector<24x80xi1>
    %346 = vector.broadcast %cst_93 : f32 to vector<24x80xf32>
    %347 = arith.select %345, %343, %346 : vector<24x80xi1>, vector<24x80xf32>
    %c15_i32_94 = arith.constant 15 : i32
    %348 = vector.broadcast %c15_i32_94 : i32 to vector<1x80xi32>
    %349 = arith.cmpi slt, %220, %348 : vector<1x80xi32>
    %350 = vector.extract_strided_slice %308 {offsets = [0, 1], sizes = [24, 79], strides = [1, 1]} : vector<24x80xf32> to vector<24x79xf32>
    %cst_95 = arith.constant 0.000000e+00 : f32
    %351 = vector.broadcast %cst_95 : f32 to vector<24x1xf32>
    %352 = tpu.concatenate %350, %351 in 1 : vector<24x79xf32>, vector<24x1xf32> -> vector<24x80xf32>
    %cst_96 = arith.constant 0.000000e+00 : f32
    %353 = vector.shape_cast %349 : vector<1x80xi1> to vector<1x80xi1>
    %354 = vector.broadcast %353 : vector<1x80xi1> to vector<24x80xi1>
    %355 = vector.broadcast %cst_96 : f32 to vector<24x80xf32>
    %356 = arith.select %354, %352, %355 : vector<24x80xi1>, vector<24x80xf32>
    %c64_i32_97 = arith.constant 64 : i32
    %357 = vector.broadcast %c64_i32_97 : i32 to vector<1x80xi32>
    %358 = arith.cmpi slt, %218, %357 : vector<1x80xi32>
    %c1_i32_98 = arith.constant 1 : i32
    %359 = vector.broadcast %c1_i32_98 : i32 to vector<1x80xi32>
    %360 = arith.cmpi sge, %220, %359 : vector<1x80xi32>
    %361 = vector.extract_strided_slice %308 {offsets = [0, 15], sizes = [24, 65], strides = [1, 1]} : vector<24x80xf32> to vector<24x65xf32>
    %cst_99 = arith.constant 0.000000e+00 : f32
    %362 = vector.broadcast %cst_99 : f32 to vector<24x15xf32>
    %363 = tpu.concatenate %361, %362 in 1 : vector<24x65xf32>, vector<24x15xf32> -> vector<24x80xf32>
    %364 = arith.andi %358, %360 : vector<1x80xi1>
    %cst_100 = arith.constant 0.000000e+00 : f32
    %365 = vector.shape_cast %364 : vector<1x80xi1> to vector<1x80xi1>
    %366 = vector.broadcast %365 : vector<1x80xi1> to vector<24x80xi1>
    %367 = vector.broadcast %cst_100 : f32 to vector<24x80xf32>
    %368 = arith.select %366, %363, %367 : vector<24x80xi1>, vector<24x80xf32>
    %369 = vector.extract_strided_slice %308 {offsets = [0, 16], sizes = [24, 64], strides = [1, 1]} : vector<24x80xf32> to vector<24x64xf32>
    %cst_101 = arith.constant 0.000000e+00 : f32
    %370 = vector.broadcast %cst_101 : f32 to vector<24x16xf32>
    %371 = tpu.concatenate %369, %370 in 1 : vector<24x64xf32>, vector<24x16xf32> -> vector<24x80xf32>
    %cst_102 = arith.constant 0.000000e+00 : f32
    %372 = vector.shape_cast %358 : vector<1x80xi1> to vector<1x80xi1>
    %373 = vector.broadcast %372 : vector<1x80xi1> to vector<24x80xi1>
    %374 = vector.broadcast %cst_102 : f32 to vector<24x80xf32>
    %375 = arith.select %373, %371, %374 : vector<24x80xi1>, vector<24x80xf32>
    %c15_i32_103 = arith.constant 15 : i32
    %376 = vector.broadcast %c15_i32_103 : i32 to vector<1x80xi32>
    %377 = arith.cmpi slt, %220, %376 : vector<1x80xi32>
    %378 = vector.extract_strided_slice %308 {offsets = [0, 17], sizes = [24, 63], strides = [1, 1]} : vector<24x80xf32> to vector<24x63xf32>
    %cst_104 = arith.constant 0.000000e+00 : f32
    %379 = vector.broadcast %cst_104 : f32 to vector<24x17xf32>
    %380 = tpu.concatenate %378, %379 in 1 : vector<24x63xf32>, vector<24x17xf32> -> vector<24x80xf32>
    %381 = arith.andi %358, %377 : vector<1x80xi1>
    %cst_105 = arith.constant 0.000000e+00 : f32
    %382 = vector.shape_cast %381 : vector<1x80xi1> to vector<1x80xi1>
    %383 = vector.broadcast %382 : vector<1x80xi1> to vector<24x80xi1>
    %384 = vector.broadcast %cst_105 : f32 to vector<24x80xf32>
    %385 = arith.select %383, %380, %384 : vector<24x80xi1>, vector<24x80xf32>
    %386 = tpu.concatenate %321, %328, %338, %347, %308, %356, %368, %375, %385 in 0 : vector<24x80xf32>, vector<24x80xf32>, vector<24x80xf32>, vector<24x80xf32>, vector<24x80xf32>, vector<24x80xf32>, vector<24x80xf32>, vector<24x80xf32>, vector<24x80xf32> -> vector<216x80xf32>
    %cst_106 = arith.constant dense<0.000000e+00> : vector<24x80xf32>
    %387 = tpu.matmul %309, %386, %cst_106 {dimension_numbers = #tpu.dot_dimension_numbers<[1], [0], [0], [1], [0, 0, 1, 1], [], []>, precision = #tpu.contract_precision<fp32>} : vector<24x216xf32>, vector<216x80xf32>, vector<24x80xf32> -> vector<24x80xf32>
    %c0_107 = arith.constant 0 : index
    %c0_108 = arith.constant 0 : index
    %388 = vector.load %arg17[%c0_107, %c0_108] : memref<24x1xf32, #tpu.memory_space<vmem>>, vector<24x1xf32>
    %389 = vector.broadcast %388 : vector<24x1xf32> to vector<24x80xf32>
    %390 = arith.addf %387, %389 : vector<24x80xf32>
    %c0_109 = arith.constant 0 : index
    %c0_110 = arith.constant 0 : index
    %391 = vector.load %arg19[%c0_109, %c0_110] : memref<24x80xf32, #tpu.memory_space<vmem>>, vector<24x80xf32>
    tpu.vector_store %arg19[%c0_109, %c0_110], %390 {strides = array<i32>} : memref<24x80xf32, #tpu.memory_space<vmem>>, vector<24x80xf32>,
    return
  }
}

</mosaic_0001>

<llo_original>
// kernel: tile.0
$region0: #{tile.0}
  %s0 = inlined_call_operand.vmem [shape: f32[2,5], index: 0, kind: input, shape index: {}]
  %s1 = inlined_call_operand.vmem [shape: f32[10,1], index: 1, kind: output, shape index: {}]
  $region1: #{tile.0} parent=0
    #allocation0 [shape = 'u8[4096]{0}', space=vmem, size = 0x1000, scoped, tag = 'scoped mem for input reshape']
    %s3 = sshll.u32 1, 2
    %s4 = ssub.s32 %s3, 1
    %v5 = vld [vmem:[%s0] sm:%s4]
    %6 = vst [vmem:[#allocation0] sm:%s4] %v5
    %v7 = vld [vmem:[#allocation0] sm:$0x3]
    %vm8 = vcmask 7168
    %9 = vst.msk [vmem:[%s1] ss:$5 sm:$0x3] %vm8, %v7
    %v10 = vld [vmem:[#allocation0] sm:$0x3]
    %11 = vrot.lane.b32.xlu0 %v10, 127
    %v12 = vpop.permute.xlu0 %11
    %vm13 = vcmask 7168
    %s14 = scalar_lea.vmem %s1, 1
    %15 = vst.msk [vmem:[%s14] ss:$5 sm:$0x3] %vm13, %v12
    %v16 = vld [vmem:[#allocation0] sm:$0x3]
    %17 = vrot.lane.b32.xlu0 %v16, 126
    %v18 = vpop.permute.xlu0 %17
    %vm19 = vcmask 7168
    %s20 = scalar_lea.vmem %s1, 2
    %21 = vst.msk [vmem:[%s20] ss:$5 sm:$0x3] %vm19, %v18
    %v22 = vld [vmem:[#allocation0] sm:$0x3]
    %23 = vrot.lane.b32.xlu0 %v22, 125
    %v24 = vpop.permute.xlu0 %23
    %vm25 = vcmask 7168
    %s26 = scalar_lea.vmem %s1, 3
    %27 = vst.msk [vmem:[%s26] ss:$5 sm:$0x3] %vm25, %v24
    %v28 = vld [vmem:[#allocation0] sm:$0x3]
    %29 = vrot.lane.b32.xlu0 %v28, 124
    %v30 = vpop.permute.xlu0 %29
    %vm31 = vcmask 7168
    %s32 = scalar_lea.vmem %s1, 4
    %33 = vst.msk [vmem:[%s32] ss:$5 sm:$0x3] %vm31, %v30

// kernel: tile.28
$region0: #{tile.28}
  #allocation0 [shape = 's32[1]{0}', space=sflag, size = 0x4, scoped, tag = 'scoped memory for tile.28']
  %s0 = inlined_call_operand.vmem [shape: f32[5], index: 0, kind: input, shape index: {}]
  %s1 = inlined_call_operand.vmem [shape: f32[2,5], index: 1, kind: output, shape index: {}]
  // Predicated region
  $region2: #{tile.28} parent=0 // pred_check
    _
  $region3: #{tile.28} parent=0 // pred_check_branch
    %3 = sbr.rel (0) target = $region5
  $region4: #{tile.28} parent=0 // pred_region
    _
  $region5: #{tile.28} parent=0 // pred_fallthru
    _
  %v4 = vld [vmem:[%s0] ss:$0 sm:$0xff]
  %5 = vst [vmem:[%s1] sm:$0x3] %v4

// kernel: tile.43
$region0: #{tile.43}
  #allocation0 [shape = 's32[1]{0}', space=sflag, size = 0x4, scoped, tag = 'scoped memory for tile.43']
  %s0 = inlined_call_operand.vmem [shape: f32[12], index: 0, kind: input, shape index: {}]
  %s1 = inlined_call_operand.vmem [shape: f32[2,12], index: 1, kind: output, shape index: {}]
  // Predicated region
  $region2: #{tile.43} parent=0 // pred_check
    _
  $region3: #{tile.43} parent=0 // pred_check_branch
    %3 = sbr.rel (0) target = $region5
  $region4: #{tile.43} parent=0 // pred_region
    _
  $region5: #{tile.43} parent=0 // pred_fallthru
    _
  %v4 = vld [vmem:[%s0] ss:$0 sm:$0xff]
  %5 = vst [vmem:[%s1] sm:$0x3] %v4

// kernel: tile.3
$region0: #{tile.3}
  %s0 = inlined_call_operand.vmem [shape: f32[2,12], index: 0, kind: input, shape index: {}]
  %s1 = inlined_call_operand.vmem [shape: f32[24,1], index: 1, kind: output, shape index: {}]
  $region1: #{tile.3} parent=0
    #allocation0 [shape = 'u8[4096]{0}', space=vmem, size = 0x1000, scoped, tag = 'scoped mem for input reshape']
    %s3 = sshll.u32 1, 2
    %s4 = ssub.s32 %s3, 1
    %v5 = vld [vmem:[%s0] sm:%s4]
    %6 = vst [vmem:[#allocation0] sm:%s4] %v5
    %v7 = vld [vmem:[#allocation0] sm:$0x3]
    %vm8 = vcmask 7168
    %9 = vst.msk [vmem:[%s1] ss:$12 sm:$0x3] %vm8, %v7
    %v10 = vld [vmem:[#allocation0] sm:$0x3]
    %11 = vrot.lane.b32.xlu0 %v10, 127
    %v12 = vpop.permute.xlu0 %11
    %vm13 = vcmask 7168
    %s14 = scalar_lea.vmem %s1, 1
    %15 = vst.msk [vmem:[%s14] ss:$12 sm:$0x3] %vm13, %v12
    %v16 = vld [vmem:[#allocation0] sm:$0x3]
    %17 = vrot.lane.b32.xlu0 %v16, 126
    %v18 = vpop.permute.xlu0 %17
    %vm19 = vcmask 7168
    %s20 = scalar_lea.vmem %s1, 2
    %21 = vst.msk [vmem:[%s20] ss:$12 sm:$0x3] %vm19, %v18
    %v22 = vld [vmem:[#allocation0] sm:$0x3]
    %23 = vrot.lane.b32.xlu0 %v22, 125
    %v24 = vpop.permute.xlu0 %23
    %vm25 = vcmask 7168
    %s26 = scalar_lea.vmem %s1, 3
    %27 = vst.msk [vmem:[%s26] ss:$12 sm:$0x3] %vm25, %v24
    %v28 = vld [vmem:[#allocation0] sm:$0x3]
    %29 = vrot.lane.b32.xlu0 %v28, 124
    %v30 = vpop.permute.xlu0 %29
    %vm31 = vcmask 7168
    %s32 = scalar_lea.vmem %s1, 4
    %33 = vst.msk [vmem:[%s32] ss:$12 sm:$0x3] %vm31, %v30
    %v34 = vld [vmem:[#allocation0] sm:$0x3]
    %35 = vrot.lane.b32.xlu0 %v34, 123
    %v36 = vpop.permute.xlu0 %35
    %vm37 = vcmask 7168
    %s38 = scalar_lea.vmem %s1, 5
    %39 = vst.msk [vmem:[%s38] ss:$12 sm:$0x3] %vm37, %v36
    %v40 = vld [vmem:[#allocation0] sm:$0x3]
    %41 = vrot.lane.b32.xlu0 %v40, 122
    %v42 = vpop.permute.xlu0 %41
    %vm43 = vcmask 7168
    %s44 = scalar_lea.vmem %s1, 6
    %45 = vst.msk [vmem:[%s44] ss:$12 sm:$0x3] %vm43, %v42
    %v46 = vld [vmem:[#allocation0] sm:$0x3]
    %47 = vrot.lane.b32.xlu0 %v46, 121
    %v48 = vpop.permute.xlu0 %47
    %vm49 = vcmask 7168
    %s50 = scalar_lea.vmem %s1, 7
    %51 = vst.msk [vmem:[%s50] ss:$12 sm:$0x3] %vm49, %v48
    %v52 = vld [vmem:[#allocation0] sm:$0x3]
    %53 = vrot.lane.b32.xlu0 %v52, 120
    %v54 = vpop.permute.xlu0 %53
    %vm55 = vcmask 7168
    %s56 = scalar_lea.vmem %s1, 8
    %57 = vst.msk [vmem:[%s56] ss:$12 sm:$0x3] %vm55, %v54
    %v58 = vld [vmem:[#allocation0] sm:$0x3]
    %59 = vrot.lane.b32.xlu0 %v58, 119
    %v60 = vpop.permute.xlu0 %59
    %vm61 = vcmask 7168
    %s62 = scalar_lea.vmem %s1, 9
    %63 = vst.msk [vmem:[%s62] ss:$12 sm:$0x3] %vm61, %v60
    %v64 = vld [vmem:[#allocation0] sm:$0x3]
    %65 = vrot.lane.b32.xlu0 %v64, 118
    %v66 = vpop.permute.xlu0 %65
    %vm67 = vcmask 7168
    %s68 = scalar_lea.vmem %s1, 10
    %69 = vst.msk [vmem:[%s68] ss:$12 sm:$0x3] %vm67, %v66
    %v70 = vld [vmem:[#allocation0] sm:$0x3]
    %71 = vrot.lane.b32.xlu0 %v70, 117
    %v72 = vpop.permute.xlu0 %71
    %vm73 = vcmask 7168
    %s74 = scalar_lea.vmem %s1, 11
    %75 = vst.msk [vmem:[%s74] ss:$12 sm:$0x3] %vm73, %v72

// kernel: model_forward.1
$region0: #{model_forward.1}
  #allocation0 [shape = 'u32[]', space=smem, size = 0x4, offset = 0x4, fixed_abs, tag = 'smem constant byte address 0x4 - core index']
  #allocation1 [shape = 'u32[144,128]{1,0:T(1,128)}', space=vmem, size = 0x12000, scoped, tag = 'internal scratch']
  %s0 = inlined_call_operand.vmem [shape: f32[4,128], index: 0, kind: input, shape index: {}]
  %s1 = inlined_call_operand.vmem [shape: f32[128,128], index: 1, kind: input, shape index: {}]
  %s2 = inlined_call_operand.vmem [shape: f32[10,4], index: 2, kind: input, shape index: {}]
  %s3 = inlined_call_operand.vmem [shape: f32[10,1], index: 3, kind: input, shape index: {}]
  %s4 = inlined_call_operand.vmem [shape: f32[10,4], index: 4, kind: input, shape index: {}]
  %s5 = inlined_call_operand.vmem [shape: f32[10,1], index: 5, kind: input, shape index: {}]
  %s6 = inlined_call_operand.vmem [shape: f32[5,1], index: 6, kind: input, shape index: {}]
  %s7 = inlined_call_operand.vmem [shape: f32[5,1], index: 7, kind: input, shape index: {}]
  %s8 = inlined_call_operand.vmem [shape: f32[5,1], index: 8, kind: input, shape index: {}]
  %s9 = inlined_call_operand.vmem [shape: f32[5,1], index: 9, kind: input, shape index: {}]
  %s10 = inlined_call_operand.vmem [shape: f32[10,30], index: 10, kind: input, shape index: {}]
  %s11 = inlined_call_operand.vmem [shape: f32[10,1], index: 11, kind: input, shape index: {}]
  %s12 = inlined_call_operand.vmem [shape: f32[5,1], index: 12, kind: input, shape index: {}]
  %s13 = inlined_call_operand.vmem [shape: f32[5,1], index: 13, kind: input, shape index: {}]
  %s14 = inlined_call_operand.vmem [shape: f32[24,144], index: 14, kind: input, shape index: {}]
  %s15 = inlined_call_operand.vmem [shape: f32[24,1], index: 15, kind: input, shape index: {}]
  %s16 = inlined_call_operand.vmem [shape: f32[24,216], index: 16, kind: input, shape index: {}]
  %s17 = inlined_call_operand.vmem [shape: f32[24,1], index: 17, kind: input, shape index: {}]
  %s18 = inlined_call_operand.vmem [shape: f32[3], index: 18, kind: input, shape index: {}]
  %s19 = inlined_call_operand.vmem [shape: f32[24,80], index: 19, kind: output, shape index: {}]
  %s20 = sld [smem:[#allocation0]]
  $region90: #{model_forward.1} parent=0
    _
  %s22 = ssub.s32 1, %s20
  %s23 = scalar_select 0, %s22, %s20
  $region1: #{model_forward.1} parent=0
    #allocation2 [shape = 'u8[512]{0}', space=smem, size = 0x200, scoped, tag = 'input window, operand 18, single buffered']
    #allocation3 [shape = 's32[1]{0}', space=sflag, size = 0x4, scoped, tag = 'scoped memory for model_forward.1']
    %24 = vsyncpa [#allocation3], 0
    // Predicated region
    $region2: #{model_forward.1} parent=1 // pred_check
      _
    $region3: #{model_forward.1} parent=1 // pred_check_branch
      %26 = sbr.rel (0) target = $region5
    $region4: #{model_forward.1} parent=1 // pred_region
      _
    $region5: #{model_forward.1} parent=1 // pred_fallthru
      _
    // Predicated region
    $region6: #{model_forward.1} parent=1 // pred_check
      _
    $region7: #{model_forward.1} parent=1 // pred_check_branch
      %28 = sbr.rel (0) target = $region9
    $region8: #{model_forward.1} parent=1 // pred_region
      _
    $region9: #{model_forward.1} parent=1 // pred_fallthru
      _
    // Predicated region
    $region10: #{model_forward.1} parent=1 // pred_check
      _
    $region11: #{model_forward.1} parent=1 // pred_check_branch
      %30 = sbr.rel (0) target = $region13
    $region12: #{model_forward.1} parent=1 // pred_region
      _
    $region13: #{model_forward.1} parent=1 // pred_fallthru
      _
    // Predicated region
    $region14: #{model_forward.1} parent=1 // pred_check
      _
    $region15: #{model_forward.1} parent=1 // pred_check_branch
      %32 = sbr.rel (0) target = $region17
    $region16: #{model_forward.1} parent=1 // pred_region
      _
    $region17: #{model_forward.1} parent=1 // pred_fallthru
      _
    // Predicated region
    $region18: #{model_forward.1} parent=1 // pred_check
      _
    $region19: #{model_forward.1} parent=1 // pred_check_branch
      %34 = sbr.rel (0) target = $region21
    $region20: #{model_forward.1} parent=1 // pred_region
      _
    $region21: #{model_forward.1} parent=1 // pred_fallthru
      _
    // Predicated region
    $region22: #{model_forward.1} parent=1 // pred_check
      _
    $region23: #{model_forward.1} parent=1 // pred_check_branch
      %36 = sbr.rel (0) target = $region25
    $region24: #{model_forward.1} parent=1 // pred_region
      _
    $region25: #{model_forward.1} parent=1 // pred_fallthru
      _
    // Predicated region
    $region26: #{model_forward.1} parent=1 // pred_check
      _
    $region27: #{model_forward.1} parent=1 // pred_check_branch
      %38 = sbr.rel (0) target = $region29
    $region28: #{model_forward.1} parent=1 // pred_region
      _
    $region29: #{model_forward.1} parent=1 // pred_fallthru
      _
    // Predicated region
    $region30: #{model_forward.1} parent=1 // pred_check
      _
    $region31: #{model_forward.1} parent=1 // pred_check_branch
      %40 = sbr.rel (0) target = $region33
    $region32: #{model_forward.1} parent=1 // pred_region
      _
    $region33: #{model_forward.1} parent=1 // pred_fallthru
      _
    // Predicated region
    $region34: #{model_forward.1} parent=1 // pred_check
      _
    $region35: #{model_forward.1} parent=1 // pred_check_branch
      %42 = sbr.rel (0) target = $region37
    $region36: #{model_forward.1} parent=1 // pred_region
      _
    $region37: #{model_forward.1} parent=1 // pred_fallthru
      _
    // Predicated region
    $region38: #{model_forward.1} parent=1 // pred_check
      _
    $region39: #{model_forward.1} parent=1 // pred_check_branch
      %44 = sbr.rel (0) target = $region41
    $region40: #{model_forward.1} parent=1 // pred_region
      _
    $region41: #{model_forward.1} parent=1 // pred_fallthru
      _
    // Predicated region
    $region42: #{model_forward.1} parent=1 // pred_check
      _
    $region43: #{model_forward.1} parent=1 // pred_check_branch
      %46 = sbr.rel (0) target = $region45
    $region44: #{model_forward.1} parent=1 // pred_region
      _
    $region45: #{model_forward.1} parent=1 // pred_fallthru
      _
    // Predicated region
    $region46: #{model_forward.1} parent=1 // pred_check
      _
    $region47: #{model_forward.1} parent=1 // pred_check_branch
      %48 = sbr.rel (0) target = $region49
    $region48: #{model_forward.1} parent=1 // pred_region
      _
    $region49: #{model_forward.1} parent=1 // pred_fallthru
      _
    // Predicated region
    $region50: #{model_forward.1} parent=1 // pred_check
      _
    $region51: #{model_forward.1} parent=1 // pred_check_branch
      %50 = sbr.rel (0) target = $region53
    $region52: #{model_forward.1} parent=1 // pred_region
      _
    $region53: #{model_forward.1} parent=1 // pred_fallthru
      _
    // Predicated region
    $region54: #{model_forward.1} parent=1 // pred_check
      _
    $region55: #{model_forward.1} parent=1 // pred_check_branch
      %52 = sbr.rel (0) target = $region57
    $region56: #{model_forward.1} parent=1 // pred_region
      _
    $region57: #{model_forward.1} parent=1 // pred_fallthru
      _
    // Predicated region
    $region58: #{model_forward.1} parent=1 // pred_check
      _
    $region59: #{model_forward.1} parent=1 // pred_check_branch
      %54 = sbr.rel (0) target = $region61
    $region60: #{model_forward.1} parent=1 // pred_region
      _
    $region61: #{model_forward.1} parent=1 // pred_fallthru
      _
    // Predicated region
    $region62: #{model_forward.1} parent=1 // pred_check
      _
    $region63: #{model_forward.1} parent=1 // pred_check_branch
      %56 = sbr.rel (0) target = $region65
    $region64: #{model_forward.1} parent=1 // pred_region
      _
    $region65: #{model_forward.1} parent=1 // pred_fallthru
      _
    // Predicated region
    $region66: #{model_forward.1} parent=1 // pred_check
      _
    $region67: #{model_forward.1} parent=1 // pred_check_branch
      %58 = sbr.rel (0) target = $region69
    $region68: #{model_forward.1} parent=1 // pred_region
      _
    $region69: #{model_forward.1} parent=1 // pred_fallthru
      _
    // Predicated region
    $region70: #{model_forward.1} parent=1 // pred_check
      _
    $region71: #{model_forward.1} parent=1 // pred_check_branch
      %60 = sbr.rel (0) target = $region73
    $region72: #{model_forward.1} parent=1 // pred_region
      _
    $region73: #{model_forward.1} parent=1 // pred_fallthru
      _
    // Predicated region
    $region74: #{model_forward.1} parent=1 // pred_check
      _
    $region75: #{model_forward.1} parent=1 // pred_check_branch
      %62 = sbr.rel (0) target = $region77
    $region76: #{model_forward.1} parent=1 // pred_region
      %s64 = ssub.s32 16, 16
      %65 = vsyncadd [#allocation3], %s64
      %s67 = sshll.u32 %s18, 4
      %s68 = int_to_ptr.vmem [resolvable:$true] %s67
      %70 = dma.vmem_to_smem %s68, 16, [#allocation2], [#allocation3]
    $region77: #{model_forward.1} parent=1 // pred_fallthru
      _
    // Predicated region
    $region78: #{model_forward.1} parent=1 // pred_check
      _
    $region79: #{model_forward.1} parent=1 // pred_check_branch
      %72 = sbr.rel (0) target = $region81
    $region80: #{model_forward.1} parent=1 // pred_region
      %73 = dma.done [#allocation3], 16
    $region81: #{model_forward.1} parent=1 // pred_fallthru
      _
    %74 = sfence
    %v75 = vld [vmem:[%s0] sm:$0xf]
    %v76 = vld [vmem:[%s2] sm:$0xff]
    %v77 = vld [vmem:[%s2 + $0x8] sm:$0x3]
    %v78 = vld [vmem:[%s4] sm:$0xff]
    %v79 = vld [vmem:[%s4 + $0x8] sm:$0x3]
    %81 = vset.pattern.permute.xlu0 0
    %82 = vperm.xlu0 %81, %v76
    %v83 = vpop.permute.xlu0 %82
    %86 = vset.pattern.permute.xlu0 0
    %87 = vperm.xlu0 %86, %v77
    %v88 = vpop.permute.xlu0 %87
    %v90 = vlaneseq
    %v91 = vshrl.u32 %v90, 7
    %v92 = vsub.s32 0, %v91
    %v93 = vrot.slane %v75, %v92
    %v94 = vmul.f32 %v83, %v93
    %v95 = vmul.f32 %v88, %v93
    %97 = vset.pattern.permute.xlu0 0
    %98 = vperm.xlu0 %97, %v78
    %v99 = vpop.permute.xlu0 %98
    %102 = vset.pattern.permute.xlu0 0
    %103 = vperm.xlu0 %102, %v79
    %v104 = vpop.permute.xlu0 %103
    %v106 = vmul.f32 %v99, %v93
    %v107 = vmul.f32 %v104, %v93
    %108 = vset.pattern.permute.xlu0 1
    %109 = vperm.xlu0 %108, %v76
    %v110 = vpop.permute.xlu0 %109
    %112 = vset.pattern.permute.xlu0 1
    %113 = vperm.xlu0 %112, %v77
    %v114 = vpop.permute.xlu0 %113
    %v116 = vlaneseq
    %v117 = vshrl.u32 %v116, 7
    %v118 = vsub.s32 1, %v117
    %v119 = vrot.slane %v75, %v118
    %v120 = vmul.f32 %v110, %v119
    %v121 = vmul.f32 %v114, %v119
    %v122 = vadd.f32 %v94, %v120
    %v123 = vadd.f32 %v95, %v121
    %124 = vset.pattern.permute.xlu0 1
    %125 = vperm.xlu0 %124, %v78
    %v126 = vpop.permute.xlu0 %125
    %128 = vset.pattern.permute.xlu0 1
    %129 = vperm.xlu0 %128, %v79
    %v130 = vpop.permute.xlu0 %129
    %v132 = vmul.f32 %v126, %v119
    %v133 = vmul.f32 %v130, %v119
    %v134 = vadd.f32 %v106, %v132
    %v135 = vadd.f32 %v107, %v133
    %136 = vset.pattern.permute.xlu0 2
    %137 = vperm.xlu0 %136, %v76
    %v138 = vpop.permute.xlu0 %137
    %140 = vset.pattern.permute.xlu0 2
    %141 = vperm.xlu0 %140, %v77
    %v142 = vpop.permute.xlu0 %141
    %v144 = vlaneseq
    %v145 = vshrl.u32 %v144, 7
    %v146 = vsub.s32 2, %v145
    %v147 = vrot.slane %v75, %v146
    %v148 = vmul.f32 %v138, %v147
    %v149 = vmul.f32 %v142, %v147
    %v150 = vadd.f32 %v122, %v148
    %v151 = vadd.f32 %v123, %v149
    %152 = vset.pattern.permute.xlu0 2
    %153 = vperm.xlu0 %152, %v78
    %v154 = vpop.permute.xlu0 %153
    %156 = vset.pattern.permute.xlu0 2
    %157 = vperm.xlu0 %156, %v79
    %v158 = vpop.permute.xlu0 %157
    %v160 = vmul.f32 %v154, %v147
    %v161 = vmul.f32 %v158, %v147
    %v162 = vadd.f32 %v134, %v160
    %v163 = vadd.f32 %v135, %v161
    %164 = vset.pattern.permute.xlu0 3
    %165 = vperm.xlu0 %164, %v76
    %v166 = vpop.permute.xlu0 %165
    %168 = vset.pattern.permute.xlu0 3
    %169 = vperm.xlu0 %168, %v77
    %v170 = vpop.permute.xlu0 %169
    %v172 = vlaneseq
    %v173 = vshrl.u32 %v172, 7
    %v174 = vsub.s32 3, %v173
    %v175 = vrot.slane %v75, %v174
    %v176 = vmul.f32 %v166, %v175
    %v177 = vmul.f32 %v170, %v175
    %v178 = vadd.f32 %v150, %v176
    %v179 = vadd.f32 %v151, %v177
    %180 = vset.pattern.permute.xlu0 3
    %181 = vperm.xlu0 %180, %v78
    %v182 = vpop.permute.xlu0 %181
    %184 = vset.pattern.permute.xlu0 3
    %185 = vperm.xlu0 %184, %v79
    %v186 = vpop.permute.xlu0 %185
    %v188 = vmul.f32 %v182, %v175
    %v189 = vmul.f32 %v186, %v175
    %v190 = vadd.f32 %v162, %v188
    %v191 = vadd.f32 %v163, %v189
    %v192 = vld [vmem:[%s3] sm:$0xff]
    %v193 = vld [vmem:[%s3 + $0x8] sm:$0x3]
    %195 = vset.pattern.permute.xlu0 0
    %196 = vperm.xlu0 %195, %v192
    %v197 = vpop.permute.xlu0 %196
    %200 = vset.pattern.permute.xlu0 0
    %201 = vperm.xlu0 %200, %v193
    %v202 = vpop.permute.xlu0 %201
    %v204 = vadd.f32 %v178, %v197
    %v205 = vadd.f32 %v179, %v202
    %v206 = vld [vmem:[%s5] sm:$0xff]
    %v207 = vld [vmem:[%s5 + $0x8] sm:$0x3]
    %209 = vset.pattern.permute.xlu0 0
    %210 = vperm.xlu0 %209, %v206
    %v211 = vpop.permute.xlu0 %210
    %214 = vset.pattern.permute.xlu0 0
    %215 = vperm.xlu0 %214, %v207
    %v216 = vpop.permute.xlu0 %215
    %v218 = vadd.f32 %v190, %v211
    %v219 = vadd.f32 %v191, %v216
    %v220 = vld [vmem:[%s6] sm:$0x1f]
    %v221 = vld [vmem:[%s7] sm:$0x1f]
    %vm222 = vcmask 1044480
    %v223 = vsel %vm222, %v218, 0.0
    %224 = vadd.xlane.f32.xlu0 %v223
    %v225 = vpop.xlane.xlu0 %224
    %v226 = vmul.f32 %v218, %v218
    %v227 = vsel %vm222, %v226, 0.0
    %228 = vadd.xlane.f32.xlu0 %v227
    %v229 = vpop.xlane.xlu0 %228
    %vm230 = vcmask 1047557
    %v231 = vsel %vm230, %v218, 0.0
    %232 = vadd.xlane.f32.xlu0 %v231
    %v233 = vpop.xlane.xlu0 %232
    %vm234 = vcmask 1041408
    %v235 = vsel %vm234, %v219, 0.0
    %236 = vadd.xlane.f32.xlu0 %v235
    %v237 = vpop.xlane.xlu0 %236
    %vm240 = vcmask 1042432
    %v241 = vrot.slane %v233, 5
    %v242 = vrot.slane %v237, 5
    %v243 = vsel %vm240, %v241, %v242
    %v245 = vadd.f32 %v225, %v243
    %v246 = vmul.f32 %v219, %v219
    %v247 = vsel %vm230, %v226, 0.0
    %248 = vadd.xlane.f32.xlu0 %v247
    %v249 = vpop.xlane.xlu0 %248
    %v250 = vsel %vm234, %v246, 0.0
    %251 = vadd.xlane.f32.xlu0 %v250
    %v252 = vpop.xlane.xlu0 %251
    %v255 = vrot.slane %v249, 5
    %v256 = vrot.slane %v252, 5
    %v257 = vsel %vm240, %v255, %v256
    %v259 = vadd.f32 %v229, %v257
    %v260 = vmul.f32 %v245, 0.00390625
    %v261 = vmul.f32 %v259, 0.00390625
    %v262 = vmul.f32 %v260, %v260
    %v263 = vsub.f32 %v261, %v262
    %v264 = vadd.f32 %v263, 1e-05
    %v265 = vrsqrt.pop %v264
    %v266 = vmul.f32 %v220, %v265
    %v267 = vmul.f32 %v260, %v266
    %v268 = vsub.f32 %v221, %v267
    %v270 = vrot.slane %v266, 3
    %v272 = vsel %vm222, %v266, %v270
    %v274 = vrot.slane %v268, 3
    %v276 = vsel %vm222, %v268, %v274
    %278 = vset.pattern.permute.xlu0 0
    %279 = vperm.xlu0 %278, %v272
    %v280 = vpop.permute.xlu0 %279
    %282 = vset.pattern.permute.xlu0 0
    %283 = vperm.xlu0 %282, %v270
    %v284 = vpop.permute.xlu0 %283
    %v286 = vmul.f32 %v218, %v280
    %v287 = vmul.f32 %v219, %v284
    %289 = vset.pattern.permute.xlu0 0
    %290 = vperm.xlu0 %289, %v276
    %v291 = vpop.permute.xlu0 %290
    %293 = vset.pattern.permute.xlu0 0
    %294 = vperm.xlu0 %293, %v274
    %v295 = vpop.permute.xlu0 %294
    %v297 = vadd.f32 %v286, %v291
    %v298 = vadd.f32 %v287, %v295
    %v299 = vld [vmem:[%s1] sm:$0xff]
    %v300 = vld [vmem:[%s1 + $0x8] sm:$0xff]
    %v301 = vld [vmem:[%s1 + $0x10] sm:$0xff]
    %v302 = vld [vmem:[%s1 + $0x18] sm:$0xff]
    %v303 = vld [vmem:[%s1 + $0x20] sm:$0xff]
    %v304 = vld [vmem:[%s1 + $0x28] sm:$0xff]
    %v305 = vld [vmem:[%s1 + $0x30] sm:$0xff]
    %v306 = vld [vmem:[%s1 + $0x38] sm:$0xff]
    %v307 = vld [vmem:[%s1 + $0x40] sm:$0xff]
    %v308 = vld [vmem:[%s1 + $0x48] sm:$0xff]
    %v309 = vld [vmem:[%s1 + $0x50] sm:$0xff]
    %v310 = vld [vmem:[%s1 + $0x58] sm:$0xff]
    %v311 = vld [vmem:[%s1 + $0x60] sm:$0xff]
    %v312 = vld [vmem:[%s1 + $0x68] sm:$0xff]
    %v313 = vld [vmem:[%s1 + $0x70] sm:$0xff]
    %v314 = vld [vmem:[%s1 + $0x78] sm:$0xff]
    %315 = vmatprep.subr.mxu0 0.0
    %v316 = vand.u32 %v314, 4294901760
    %317 = vmatpush1.msra.mxu0 %v316
    %318 = vmatprep.subr.mxu0 0.0
    %v319 = vand.u32 %v313, 4294901760
    %320 = vmatpush1.msra.mxu0 %v319
    %321 = vmatprep.subr.mxu0 0.0
    %v322 = vand.u32 %v312, 4294901760
    %323 = vmatpush1.msra.mxu0 %v322
    %324 = vmatprep.subr.mxu0 0.0
    %v325 = vand.u32 %v311, 4294901760
    %326 = vmatpush1.msra.mxu0 %v325
    %327 = vmatprep.subr.mxu0 0.0
    %v328 = vand.u32 %v310, 4294901760
    %329 = vmatpush1.msra.mxu0 %v328
    %330 = vmatprep.subr.mxu0 0.0
    %v331 = vand.u32 %v309, 4294901760
    %332 = vmatpush1.msra.mxu0 %v331
    %333 = vmatprep.subr.mxu0 0.0
    %v334 = vand.u32 %v308, 4294901760
    %335 = vmatpush1.msra.mxu0 %v334
    %336 = vmatprep.subr.mxu0 0.0
    %v337 = vand.u32 %v307, 4294901760
    %338 = vmatpush1.msra.mxu0 %v337
    %339 = vmatprep.subr.mxu0 0.0
    %v340 = vand.u32 %v306, 4294901760
    %341 = vmatpush1.msra.mxu0 %v340
    %342 = vmatprep.subr.mxu0 0.0
    %v343 = vand.u32 %v305, 4294901760
    %344 = vmatpush1.msra.mxu0 %v343
    %345 = vmatprep.subr.mxu0 0.0
    %v346 = vand.u32 %v304, 4294901760
    %347 = vmatpush1.msra.mxu0 %v346
    %348 = vmatprep.subr.mxu0 0.0
    %v349 = vand.u32 %v303, 4294901760
    %350 = vmatpush1.msra.mxu0 %v349
    %351 = vmatprep.subr.mxu0 0.0
    %v352 = vand.u32 %v302, 4294901760
    %353 = vmatpush1.msra.mxu0 %v352
    %354 = vmatprep.subr.mxu0 0.0
    %v355 = vand.u32 %v301, 4294901760
    %356 = vmatpush1.msra.mxu0 %v355
    %357 = vmatprep.subr.mxu0 0.0
    %v358 = vand.u32 %v300, 4294901760
    %359 = vmatpush1.msra.mxu0 %v358
    %360 = vmatprep.subr.mxu0 0.0
    %v361 = vand.u32 %v299, 4294901760
    %362 = vmatpush1.msra.mxu0 %v361
    %363 = vmatprep.subr.mxu0 0.0
    %364 = vmatpush2.msra.mxu0 0.0
    %365 = vmatprep.subr.mxu0 0.0
    %366 = vmatpush2.msra.mxu0 0.0
    %367 = vmatprep.subr.mxu0 0.0
    %368 = vmatpush2.msra.mxu0 0.0
    %369 = vmatprep.subr.mxu0 0.0
    %370 = vmatpush2.msra.mxu0 0.0
    %371 = vmatprep.subr.mxu0 0.0
    %372 = vmatpush2.msra.mxu0 0.0
    %373 = vmatprep.subr.mxu0 0.0
    %374 = vmatpush2.msra.mxu0 0.0
    %375 = vmatprep.subr.mxu0 0.0
    %376 = vmatpush2.msra.mxu0 0.0
    %377 = vmatprep.subr.mxu0 0.0
    %378 = vmatpush2.msra.mxu0 0.0
    %379 = vmatprep.subr.mxu0 0.0
    %380 = vmatpush2.msra.mxu0 0.0
    %381 = vmatprep.subr.mxu0 0.0
    %382 = vmatpush2.msra.mxu0 0.0
    %383 = vmatprep.subr.mxu0 0.0
    %384 = vmatpush2.msra.mxu0 0.0
    %385 = vmatprep.subr.mxu0 0.0
    %386 = vmatpush2.msra.mxu0 0.0
    %387 = vmatprep.subr.mxu0 0.0
    %388 = vmatpush2.msra.mxu0 0.0
    %389 = vmatprep.subr.mxu0 0.0
    %390 = vmatpush2.msra.mxu0 0.0
    %391 = vmatprep.subr.mxu0 0.0
    %392 = vmatpush2.msra.mxu0 0.0
    %393 = vmatprep.subr.mxu0 0.0
    %394 = vmatpush2.msra.mxu0 0.0
    %395 = vmatprep.mubr.f32.mxu0 0.0
    %v396 = vand.u32 %v204, 4294901760
    %v397 = vsub.f32 %v204, %v396
    %v398 = vand.u32 %v397, 4294901760
    %v399 = vsub.f32 %v397, %v398
    %v400 = vand.u32 %v399, 4294901760
    %401 = vmatmul.mubr.f32.gmra.mxu0 %v400
    %v402 = vpop.f32.mrf.mxu0
    %v403 = vadd.f32 0.0, %v402
    %v404 = vpop.f32.mrf.mxu0
    %405 = vmatprep.mubr.f32.mxu0 0.0
    %v406 = vand.u32 %v205, 4294901760
    %v407 = vsub.f32 %v205, %v406
    %v408 = vand.u32 %v407, 4294901760
    %v409 = vsub.f32 %v407, %v408
    %v410 = vand.u32 %v409, 4294901760
    %411 = vmatmul.mubr.f32.gmra.mxu0 %v410
    %v412 = vpop.f32.mrf.mxu0
    %v413 = vadd.f32 0.0, %v412
    %v414 = vpop.f32.mrf.mxu0
    %415 = vdwg.mxu0
    %416 = vmatprep.subr.mxu0 0.0
    %v417 = vand.u32 %v314, 4294901760
    %v418 = vsub.f32 %v314, %v417
    %v419 = vand.u32 %v418, 4294901760
    %v420 = vsub.f32 %v418, %v419
    %v421 = vand.u32 %v420, 4294901760
    %422 = vmatpush1.msra.mxu0 %v421
    %423 = vmatprep.subr.mxu0 0.0
    %v424 = vand.u32 %v313, 4294901760
    %v425 = vsub.f32 %v313, %v424
    %v426 = vand.u32 %v425, 4294901760
    %v427 = vsub.f32 %v425, %v426
    %v428 = vand.u32 %v427, 4294901760
    %429 = vmatpush1.msra.mxu0 %v428
    %430 = vmatprep.subr.mxu0 0.0
    %v431 = vand.u32 %v312, 4294901760
    %v432 = vsub.f32 %v312, %v431
    %v433 = vand.u32 %v432, 4294901760
    %v434 = vsub.f32 %v432, %v433
    %v435 = vand.u32 %v434, 4294901760
    %436 = vmatpush1.msra.mxu0 %v435
    %437 = vmatprep.subr.mxu0 0.0
    %v438 = vand.u32 %v311, 4294901760
    %v439 = vsub.f32 %v311, %v438
    %v440 = vand.u32 %v439, 4294901760
    %v441 = vsub.f32 %v439, %v440
    %v442 = vand.u32 %v441, 4294901760
    %443 = vmatpush1.msra.mxu0 %v442
    %444 = vmatprep.subr.mxu0 0.0
    %v445 = vand.u32 %v310, 4294901760
    %v446 = vsub.f32 %v310, %v445
    %v447 = vand.u32 %v446, 4294901760
    %v448 = vsub.f32 %v446, %v447
    %v449 = vand.u32 %v448, 4294901760
    %450 = vmatpush1.msra.mxu0 %v449
    %451 = vmatprep.subr.mxu0 0.0
    %v452 = vand.u32 %v309, 4294901760
    %v453 = vsub.f32 %v309, %v452
    %v454 = vand.u32 %v453, 4294901760
    %v455 = vsub.f32 %v453, %v454
    %v456 = vand.u32 %v455, 4294901760
    %457 = vmatpush1.msra.mxu0 %v456
    %458 = vmatprep.subr.mxu0 0.0
    %v459 = vand.u32 %v308, 4294901760
    %v460 = vsub.f32 %v308, %v459
    %v461 = vand.u32 %v460, 4294901760
    %v462 = vsub.f32 %v460, %v461
    %v463 = vand.u32 %v462, 4294901760
    %464 = vmatpush1.msra.mxu0 %v463
    %465 = vmatprep.subr.mxu0 0.0
    %v466 = vand.u32 %v307, 4294901760
    %v467 = vsub.f32 %v307, %v466
    %v468 = vand.u32 %v467, 4294901760
    %v469 = vsub.f32 %v467, %v468
    %v470 = vand.u32 %v469, 4294901760
    %471 = vmatpush1.msra.mxu0 %v470
    %472 = vmatprep.subr.mxu0 0.0
    %v473 = vand.u32 %v306, 4294901760
    %v474 = vsub.f32 %v306, %v473
    %v475 = vand.u32 %v474, 4294901760
    %v476 = vsub.f32 %v474, %v475
    %v477 = vand.u32 %v476, 4294901760
    %478 = vmatpush1.msra.mxu0 %v477
    %479 = vmatprep.subr.mxu0 0.0
    %v480 = vand.u32 %v305, 4294901760
    %v481 = vsub.f32 %v305, %v480
    %v482 = vand.u32 %v481, 4294901760
    %v483 = vsub.f32 %v481, %v482
    %v484 = vand.u32 %v483, 4294901760
    %485 = vmatpush1.msra.mxu0 %v484
    %486 = vmatprep.subr.mxu0 0.0
    %v487 = vand.u32 %v304, 4294901760
    %v488 = vsub.f32 %v304, %v487
    %v489 = vand.u32 %v488, 4294901760
    %v490 = vsub.f32 %v488, %v489
    %v491 = vand.u32 %v490, 4294901760
    %492 = vmatpush1.msra.mxu0 %v491
    %493 = vmatprep.subr.mxu0 0.0
    %v494 = vand.u32 %v303, 4294901760
    %v495 = vsub.f32 %v303, %v494
    %v496 = vand.u32 %v495, 4294901760
    %v497 = vsub.f32 %v495, %v496
    %v498 = vand.u32 %v497, 4294901760
    %499 = vmatpush1.msra.mxu0 %v498
    %500 = vmatprep.subr.mxu0 0.0
    %v501 = vand.u32 %v302, 4294901760
    %v502 = vsub.f32 %v302, %v501
    %v503 = vand.u32 %v502, 4294901760
    %v504 = vsub.f32 %v502, %v503
    %v505 = vand.u32 %v504, 4294901760
    %506 = vmatpush1.msra.mxu0 %v505
    %507 = vmatprep.subr.mxu0 0.0
    %v508 = vand.u32 %v301, 4294901760
    %v509 = vsub.f32 %v301, %v508
    %v510 = vand.u32 %v509, 4294901760
    %v511 = vsub.f32 %v509, %v510
    %v512 = vand.u32 %v511, 4294901760
    %513 = vmatpush1.msra.mxu0 %v512
    %514 = vmatprep.subr.mxu0 0.0
    %v515 = vand.u32 %v300, 4294901760
    %v516 = vsub.f32 %v300, %v515
    %v517 = vand.u32 %v516, 4294901760
    %v518 = vsub.f32 %v516, %v517
    %v519 = vand.u32 %v518, 4294901760
    %520 = vmatpush1.msra.mxu0 %v519
    %521 = vmatprep.subr.mxu0 0.0
    %v522 = vand.u32 %v299, 4294901760
    %v523 = vsub.f32 %v299, %v522
    %v524 = vand.u32 %v523, 4294901760
    %v525 = vsub.f32 %v523, %v524
    %v526 = vand.u32 %v525, 4294901760
    %527 = vmatpush1.msra.mxu0 %v526
    %528 = vmatprep.subr.mxu0 0.0
    %529 = vmatpush2.msra.mxu0 0.0
    %530 = vmatprep.subr.mxu0 0.0
    %531 = vmatpush2.msra.mxu0 0.0
    %532 = vmatprep.subr.mxu0 0.0
    %533 = vmatpush2.msra.mxu0 0.0
    %534 = vmatprep.subr.mxu0 0.0
    %535 = vmatpush2.msra.mxu0 0.0
    %536 = vmatprep.subr.mxu0 0.0
    %537 = vmatpush2.msra.mxu0 0.0
    %538 = vmatprep.subr.mxu0 0.0
    %539 = vmatpush2.msra.mxu0 0.0
    %540 = vmatprep.subr.mxu0 0.0
    %541 = vmatpush2.msra.mxu0 0.0
    %542 = vmatprep.subr.mxu0 0.0
    %543 = vmatpush2.msra.mxu0 0.0
    %544 = vmatprep.subr.mxu0 0.0
    %545 = vmatpush2.msra.mxu0 0.0
    %546 = vmatprep.subr.mxu0 0.0
    %547 = vmatpush2.msra.mxu0 0.0
    %548 = vmatprep.subr.mxu0 0.0
    %549 = vmatpush2.msra.mxu0 0.0
    %550 = vmatprep.subr.mxu0 0.0
    %551 = vmatpush2.msra.mxu0 0.0
    %552 = vmatprep.subr.mxu0 0.0
    %553 = vmatpush2.msra.mxu0 0.0
    %554 = vmatprep.subr.mxu0 0.0
    %555 = vmatpush2.msra.mxu0 0.0
    %556 = vmatprep.subr.mxu0 0.0
    %557 = vmatpush2.msra.mxu0 0.0
    %558 = vmatprep.subr.mxu0 0.0
    %559 = vmatpush2.msra.mxu0 0.0
    %560 = vmatprep.mubr.f32.mxu0 0.0
    %v561 = vand.u32 %v204, 4294901760
    %562 = vmatmul.mubr.f32.gmra.mxu0 %v561
    %v563 = vpop.f32.mrf.mxu0
    %v564 = vadd.f32 %v403, %v563
    %v565 = vpop.f32.mrf.mxu0
    %566 = vmatprep.mubr.f32.mxu0 0.0
    %v567 = vand.u32 %v205, 4294901760
    %568 = vmatmul.mubr.f32.gmra.mxu0 %v567
    %v569 = vpop.f32.mrf.mxu0
    %v570 = vadd.f32 %v413, %v569
    %v571 = vpop.f32.mrf.mxu0
    %572 = vdwg.mxu0
    %573 = vmatprep.subr.mxu0 0.0
    %v574 = vand.u32 %v314, 4294901760
    %v575 = vsub.f32 %v314, %v574
    %576 = vmatpush1.msra.mxu0 %v575
    %577 = vmatprep.subr.mxu0 0.0
    %v578 = vand.u32 %v313, 4294901760
    %v579 = vsub.f32 %v313, %v578
    %580 = vmatpush1.msra.mxu0 %v579
    %581 = vmatprep.subr.mxu0 0.0
    %v582 = vand.u32 %v312, 4294901760
    %v583 = vsub.f32 %v312, %v582
    %584 = vmatpush1.msra.mxu0 %v583
    %585 = vmatprep.subr.mxu0 0.0
    %v586 = vand.u32 %v311, 4294901760
    %v587 = vsub.f32 %v311, %v586
    %588 = vmatpush1.msra.mxu0 %v587
    %589 = vmatprep.subr.mxu0 0.0
    %v590 = vand.u32 %v310, 4294901760
    %v591 = vsub.f32 %v310, %v590
    %592 = vmatpush1.msra.mxu0 %v591
    %593 = vmatprep.subr.mxu0 0.0
    %v594 = vand.u32 %v309, 4294901760
    %v595 = vsub.f32 %v309, %v594
    %596 = vmatpush1.msra.mxu0 %v595
    %597 = vmatprep.subr.mxu0 0.0
    %v598 = vand.u32 %v308, 4294901760
    %v599 = vsub.f32 %v308, %v598
    %600 = vmatpush1.msra.mxu0 %v599
    %601 = vmatprep.subr.mxu0 0.0
    %v602 = vand.u32 %v307, 4294901760
    %v603 = vsub.f32 %v307, %v602
    %604 = vmatpush1.msra.mxu0 %v603
    %605 = vmatprep.subr.mxu0 0.0
    %v606 = vand.u32 %v306, 4294901760
    %v607 = vsub.f32 %v306, %v606
    %608 = vmatpush1.msra.mxu0 %v607
    %609 = vmatprep.subr.mxu0 0.0
    %v610 = vand.u32 %v305, 4294901760
    %v611 = vsub.f32 %v305, %v610
    %612 = vmatpush1.msra.mxu0 %v611
    %613 = vmatprep.subr.mxu0 0.0
    %v614 = vand.u32 %v304, 4294901760
    %v615 = vsub.f32 %v304, %v614
    %616 = vmatpush1.msra.mxu0 %v615
    %617 = vmatprep.subr.mxu0 0.0
    %v618 = vand.u32 %v303, 4294901760
    %v619 = vsub.f32 %v303, %v618
    %620 = vmatpush1.msra.mxu0 %v619
    %621 = vmatprep.subr.mxu0 0.0
    %v622 = vand.u32 %v302, 4294901760
    %v623 = vsub.f32 %v302, %v622
    %624 = vmatpush1.msra.mxu0 %v623
    %625 = vmatprep.subr.mxu0 0.0
    %v626 = vand.u32 %v301, 4294901760
    %v627 = vsub.f32 %v301, %v626
    %628 = vmatpush1.msra.mxu0 %v627
    %629 = vmatprep.subr.mxu0 0.0
    %v630 = vand.u32 %v300, 4294901760
    %v631 = vsub.f32 %v300, %v630
    %632 = vmatpush1.msra.mxu0 %v631
    %633 = vmatprep.subr.mxu0 0.0
    %v634 = vand.u32 %v299, 4294901760
    %v635 = vsub.f32 %v299, %v634
    %636 = vmatpush1.msra.mxu0 %v635
    %637 = vmatprep.subr.mxu0 0.0
    %638 = vmatpush2.msra.mxu0 0.0
    %639 = vmatprep.subr.mxu0 0.0
    %640 = vmatpush2.msra.mxu0 0.0
    %641 = vmatprep.subr.mxu0 0.0
    %642 = vmatpush2.msra.mxu0 0.0
    %643 = vmatprep.subr.mxu0 0.0
    %644 = vmatpush2.msra.mxu0 0.0
    %645 = vmatprep.subr.mxu0 0.0
    %646 = vmatpush2.msra.mxu0 0.0
    %647 = vmatprep.subr.mxu0 0.0
    %648 = vmatpush2.msra.mxu0 0.0
    %649 = vmatprep.subr.mxu0 0.0
    %650 = vmatpush2.msra.mxu0 0.0
    %651 = vmatprep.subr.mxu0 0.0
    %652 = vmatpush2.msra.mxu0 0.0
    %653 = vmatprep.subr.mxu0 0.0
    %654 = vmatpush2.msra.mxu0 0.0
    %655 = vmatprep.subr.mxu0 0.0
    %656 = vmatpush2.msra.mxu0 0.0
    %657 = vmatprep.subr.mxu0 0.0
    %658 = vmatpush2.msra.mxu0 0.0
    %659 = vmatprep.subr.mxu0 0.0
    %660 = vmatpush2.msra.mxu0 0.0
    %661 = vmatprep.subr.mxu0 0.0
    %662 = vmatpush2.msra.mxu0 0.0
    %663 = vmatprep.subr.mxu0 0.0
    %664 = vmatpush2.msra.mxu0 0.0
    %665 = vmatprep.subr.mxu0 0.0
    %666 = vmatpush2.msra.mxu0 0.0
    %667 = vmatprep.subr.mxu0 0.0
    %668 = vmatpush2.msra.mxu0 0.0
    %669 = vmatprep.mubr.f32.mxu0 0.0
    %v670 = vand.u32 %v204, 4294901760
    %v671 = vsub.f32 %v204, %v670
    %672 = vmatmul.mubr.f32.gmra.mxu0 %v671
    %v673 = vpop.f32.mrf.mxu0
    %v674 = vadd.f32 %v564, %v673
    %v675 = vpop.f32.mrf.mxu0
    %676 = vmatprep.mubr.f32.mxu0 0.0
    %v677 = vand.u32 %v205, 4294901760
    %v678 = vsub.f32 %v205, %v677
    %679 = vmatmul.mubr.f32.gmra.mxu0 %v678
    %v680 = vpop.f32.mrf.mxu0
    %v681 = vadd.f32 %v570, %v680
    %v682 = vpop.f32.mrf.mxu0
    %683 = vdwg.mxu0
    %684 = vmatprep.subr.mxu0 0.0
    %v685 = vand.u32 %v314, 4294901760
    %686 = vmatpush1.msra.mxu0 %v685
    %687 = vmatprep.subr.mxu0 0.0
    %v688 = vand.u32 %v313, 4294901760
    %689 = vmatpush1.msra.mxu0 %v688
    %690 = vmatprep.subr.mxu0 0.0
    %v691 = vand.u32 %v312, 4294901760
    %692 = vmatpush1.msra.mxu0 %v691
    %693 = vmatprep.subr.mxu0 0.0
    %v694 = vand.u32 %v311, 4294901760
    %695 = vmatpush1.msra.mxu0 %v694
    %696 = vmatprep.subr.mxu0 0.0
    %v697 = vand.u32 %v310, 4294901760
    %698 = vmatpush1.msra.mxu0 %v697
    %699 = vmatprep.subr.mxu0 0.0
    %v700 = vand.u32 %v309, 4294901760
    %701 = vmatpush1.msra.mxu0 %v700
    %702 = vmatprep.subr.mxu0 0.0
    %v703 = vand.u32 %v308, 4294901760
    %704 = vmatpush1.msra.mxu0 %v703
    %705 = vmatprep.subr.mxu0 0.0
    %v706 = vand.u32 %v307, 4294901760
    %707 = vmatpush1.msra.mxu0 %v706
    %708 = vmatprep.subr.mxu0 0.0
    %v709 = vand.u32 %v306, 4294901760
    %710 = vmatpush1.msra.mxu0 %v709
    %711 = vmatprep.subr.mxu0 0.0
    %v712 = vand.u32 %v305, 4294901760
    %713 = vmatpush1.msra.mxu0 %v712
    %714 = vmatprep.subr.mxu0 0.0
    %v715 = vand.u32 %v304, 4294901760
    %716 = vmatpush1.msra.mxu0 %v715
    %717 = vmatprep.subr.mxu0 0.0
    %v718 = vand.u32 %v303, 4294901760
    %719 = vmatpush1.msra.mxu0 %v718
    %720 = vmatprep.subr.mxu0 0.0
    %v721 = vand.u32 %v302, 4294901760
    %722 = vmatpush1.msra.mxu0 %v721
    %723 = vmatprep.subr.mxu0 0.0
    %v724 = vand.u32 %v301, 4294901760
    %725 = vmatpush1.msra.mxu0 %v724
    %726 = vmatprep.subr.mxu0 0.0
    %v727 = vand.u32 %v300, 4294901760
    %728 = vmatpush1.msra.mxu0 %v727
    %729 = vmatprep.subr.mxu0 0.0
    %v730 = vand.u32 %v299, 4294901760
    %731 = vmatpush1.msra.mxu0 %v730
    %732 = vmatprep.subr.mxu0 0.0
    %733 = vmatpush2.msra.mxu0 0.0
    %734 = vmatprep.subr.mxu0 0.0
    %735 = vmatpush2.msra.mxu0 0.0
    %736 = vmatprep.subr.mxu0 0.0
    %737 = vmatpush2.msra.mxu0 0.0
    %738 = vmatprep.subr.mxu0 0.0
    %739 = vmatpush2.msra.mxu0 0.0
    %740 = vmatprep.subr.mxu0 0.0
    %741 = vmatpush2.msra.mxu0 0.0
    %742 = vmatprep.subr.mxu0 0.0
    %743 = vmatpush2.msra.mxu0 0.0
    %744 = vmatprep.subr.mxu0 0.0
    %745 = vmatpush2.msra.mxu0 0.0
    %746 = vmatprep.subr.mxu0 0.0
    %747 = vmatpush2.msra.mxu0 0.0
    %748 = vmatprep.subr.mxu0 0.0
    %749 = vmatpush2.msra.mxu0 0.0
    %750 = vmatprep.subr.mxu0 0.0
    %751 = vmatpush2.msra.mxu0 0.0
    %752 = vmatprep.subr.mxu0 0.0
    %753 = vmatpush2.msra.mxu0 0.0
    %754 = vmatprep.subr.mxu0 0.0
    %755 = vmatpush2.msra.mxu0 0.0
    %756 = vmatprep.subr.mxu0 0.0
    %757 = vmatpush2.msra.mxu0 0.0
    %758 = vmatprep.subr.mxu0 0.0
    %759 = vmatpush2.msra.mxu0 0.0
    %760 = vmatprep.subr.mxu0 0.0
    %761 = vmatpush2.msra.mxu0 0.0
    %762 = vmatprep.subr.mxu0 0.0
    %763 = vmatpush2.msra.mxu0 0.0
    %764 = vmatprep.mubr.f32.mxu0 0.0
    %v765 = vand.u32 %v204, 4294901760
    %v766 = vsub.f32 %v204, %v765
    %v767 = vand.u32 %v766, 4294901760
    %768 = vmatmul.mubr.f32.gmra.mxu0 %v767
    %v769 = vpop.f32.mrf.mxu0
    %v770 = vadd.f32 %v674, %v769
    %v771 = vpop.f32.mrf.mxu0
    %772 = vmatprep.mubr.f32.mxu0 0.0
    %v773 = vand.u32 %v205, 4294901760
    %v774 = vsub.f32 %v205, %v773
    %v775 = vand.u32 %v774, 4294901760
    %776 = vmatmul.mubr.f32.gmra.mxu0 %v775
    %v777 = vpop.f32.mrf.mxu0
    %v778 = vadd.f32 %v681, %v777
    %v779 = vpop.f32.mrf.mxu0
    %780 = vdwg.mxu0
    %781 = vmatprep.subr.mxu0 0.0
    %v782 = vand.u32 %v314, 4294901760
    %v783 = vsub.f32 %v314, %v782
    %v784 = vand.u32 %v783, 4294901760
    %785 = vmatpush1.msra.mxu0 %v784
    %786 = vmatprep.subr.mxu0 0.0
    %v787 = vand.u32 %v313, 4294901760
    %v788 = vsub.f32 %v313, %v787
    %v789 = vand.u32 %v788, 4294901760
    %790 = vmatpush1.msra.mxu0 %v789
    %791 = vmatprep.subr.mxu0 0.0
    %v792 = vand.u32 %v312, 4294901760
    %v793 = vsub.f32 %v312, %v792
    %v794 = vand.u32 %v793, 4294901760
    %795 = vmatpush1.msra.mxu0 %v794
    %796 = vmatprep.subr.mxu0 0.0
    %v797 = vand.u32 %v311, 4294901760
    %v798 = vsub.f32 %v311, %v797
    %v799 = vand.u32 %v798, 4294901760
    %800 = vmatpush1.msra.mxu0 %v799
    %801 = vmatprep.subr.mxu0 0.0
    %v802 = vand.u32 %v310, 4294901760
    %v803 = vsub.f32 %v310, %v802
    %v804 = vand.u32 %v803, 4294901760
    %805 = vmatpush1.msra.mxu0 %v804
    %806 = vmatprep.subr.mxu0 0.0
    %v807 = vand.u32 %v309, 4294901760
    %v808 = vsub.f32 %v309, %v807
    %v809 = vand.u32 %v808, 4294901760
    %810 = vmatpush1.msra.mxu0 %v809
    %811 = vmatprep.subr.mxu0 0.0
    %v812 = vand.u32 %v308, 4294901760
    %v813 = vsub.f32 %v308, %v812
    %v814 = vand.u32 %v813, 4294901760
    %815 = vmatpush1.msra.mxu0 %v814
    %816 = vmatprep.subr.mxu0 0.0
    %v817 = vand.u32 %v307, 4294901760
    %v818 = vsub.f32 %v307, %v817
    %v819 = vand.u32 %v818, 4294901760
    %820 = vmatpush1.msra.mxu0 %v819
    %821 = vmatprep.subr.mxu0 0.0
    %v822 = vand.u32 %v306, 4294901760
    %v823 = vsub.f32 %v306, %v822
    %v824 = vand.u32 %v823, 4294901760
    %825 = vmatpush1.msra.mxu0 %v824
    %826 = vmatprep.subr.mxu0 0.0
    %v827 = vand.u32 %v305, 4294901760
    %v828 = vsub.f32 %v305, %v827
    %v829 = vand.u32 %v828, 4294901760
    %830 = vmatpush1.msra.mxu0 %v829
    %831 = vmatprep.subr.mxu0 0.0
    %v832 = vand.u32 %v304, 4294901760
    %v833 = vsub.f32 %v304, %v832
    %v834 = vand.u32 %v833, 4294901760
    %835 = vmatpush1.msra.mxu0 %v834
    %836 = vmatprep.subr.mxu0 0.0
    %v837 = vand.u32 %v303, 4294901760
    %v838 = vsub.f32 %v303, %v837
    %v839 = vand.u32 %v838, 4294901760
    %840 = vmatpush1.msra.mxu0 %v839
    %841 = vmatprep.subr.mxu0 0.0
    %v842 = vand.u32 %v302, 4294901760
    %v843 = vsub.f32 %v302, %v842
    %v844 = vand.u32 %v843, 4294901760
    %845 = vmatpush1.msra.mxu0 %v844
    %846 = vmatprep.subr.mxu0 0.0
    %v847 = vand.u32 %v301, 4294901760
    %v848 = vsub.f32 %v301, %v847
    %v849 = vand.u32 %v848, 4294901760
    %850 = vmatpush1.msra.mxu0 %v849
    %851 = vmatprep.subr.mxu0 0.0
    %v852 = vand.u32 %v300, 4294901760
    %v853 = vsub.f32 %v300, %v852
    %v854 = vand.u32 %v853, 4294901760
    %855 = vmatpush1.msra.mxu0 %v854
    %856 = vmatprep.subr.mxu0 0.0
    %v857 = vand.u32 %v299, 4294901760
    %v858 = vsub.f32 %v299, %v857
    %v859 = vand.u32 %v858, 4294901760
    %860 = vmatpush1.msra.mxu0 %v859
    %861 = vmatprep.subr.mxu0 0.0
    %862 = vmatpush2.msra.mxu0 0.0
    %863 = vmatprep.subr.mxu0 0.0
    %864 = vmatpush2.msra.mxu0 0.0
    %865 = vmatprep.subr.mxu0 0.0
    %866 = vmatpush2.msra.mxu0 0.0
    %867 = vmatprep.subr.mxu0 0.0
    %868 = vmatpush2.msra.mxu0 0.0
    %869 = vmatprep.subr.mxu0 0.0
    %870 = vmatpush2.msra.mxu0 0.0
    %871 = vmatprep.subr.mxu0 0.0
    %872 = vmatpush2.msra.mxu0 0.0
    %873 = vmatprep.subr.mxu0 0.0
    %874 = vmatpush2.msra.mxu0 0.0
    %875 = vmatprep.subr.mxu0 0.0
    %876 = vmatpush2.msra.mxu0 0.0
    %877 = vmatprep.subr.mxu0 0.0
    %878 = vmatpush2.msra.mxu0 0.0
    %879 = vmatprep.subr.mxu0 0.0
    %880 = vmatpush2.msra.mxu0 0.0
    %881 = vmatprep.subr.mxu0 0.0
    %882 = vmatpush2.msra.mxu0 0.0
    %883 = vmatprep.subr.mxu0 0.0
    %884 = vmatpush2.msra.mxu0 0.0
    %885 = vmatprep.subr.mxu0 0.0
    %886 = vmatpush2.msra.mxu0 0.0
    %887 = vmatprep.subr.mxu0 0.0
    %888 = vmatpush2.msra.mxu0 0.0
    %889 = vmatprep.subr.mxu0 0.0
    %890 = vmatpush2.msra.mxu0 0.0
    %891 = vmatprep.subr.mxu0 0.0
    %892 = vmatpush2.msra.mxu0 0.0
    %893 = vmatprep.mubr.f32.mxu0 0.0
    %v894 = vand.u32 %v204, 4294901760
    %895 = vmatmul.mubr.f32.gmra.mxu0 %v894
    %v896 = vpop.f32.mrf.mxu0
    %v897 = vadd.f32 %v770, %v896
    %v898 = vpop.f32.mrf.mxu0
    %899 = vmatprep.mubr.f32.mxu0 0.0
    %v900 = vand.u32 %v205, 4294901760
    %901 = vmatmul.mubr.f32.gmra.mxu0 %v900
    %v902 = vpop.f32.mrf.mxu0
    %v903 = vadd.f32 %v778, %v902
    %v904 = vpop.f32.mrf.mxu0
    %905 = vdwg.mxu0
    %906 = vmatprep.subr.mxu0 0.0
    %v907 = vand.u32 %v314, 4294901760
    %908 = vmatpush1.msra.mxu0 %v907
    %909 = vmatprep.subr.mxu0 0.0
    %v910 = vand.u32 %v313, 4294901760
    %911 = vmatpush1.msra.mxu0 %v910
    %912 = vmatprep.subr.mxu0 0.0
    %v913 = vand.u32 %v312, 4294901760
    %914 = vmatpush1.msra.mxu0 %v913
    %915 = vmatprep.subr.mxu0 0.0
    %v916 = vand.u32 %v311, 4294901760
    %917 = vmatpush1.msra.mxu0 %v916
    %918 = vmatprep.subr.mxu0 0.0
    %v919 = vand.u32 %v310, 4294901760
    %920 = vmatpush1.msra.mxu0 %v919
    %921 = vmatprep.subr.mxu0 0.0
    %v922 = vand.u32 %v309, 4294901760
    %923 = vmatpush1.msra.mxu0 %v922
    %924 = vmatprep.subr.mxu0 0.0
    %v925 = vand.u32 %v308, 4294901760
    %926 = vmatpush1.msra.mxu0 %v925
    %927 = vmatprep.subr.mxu0 0.0
    %v928 = vand.u32 %v307, 4294901760
    %929 = vmatpush1.msra.mxu0 %v928
    %930 = vmatprep.subr.mxu0 0.0
    %v931 = vand.u32 %v306, 4294901760
    %932 = vmatpush1.msra.mxu0 %v931
    %933 = vmatprep.subr.mxu0 0.0
    %v934 = vand.u32 %v305, 4294901760
    %935 = vmatpush1.msra.mxu0 %v934
    %936 = vmatprep.subr.mxu0 0.0
    %v937 = vand.u32 %v304, 4294901760
    %938 = vmatpush1.msra.mxu0 %v937
    %939 = vmatprep.subr.mxu0 0.0
    %v940 = vand.u32 %v303, 4294901760
    %941 = vmatpush1.msra.mxu0 %v940
    %942 = vmatprep.subr.mxu0 0.0
    %v943 = vand.u32 %v302, 4294901760
    %944 = vmatpush1.msra.mxu0 %v943
    %945 = vmatprep.subr.mxu0 0.0
    %v946 = vand.u32 %v301, 4294901760
    %947 = vmatpush1.msra.mxu0 %v946
    %948 = vmatprep.subr.mxu0 0.0
    %v949 = vand.u32 %v300, 4294901760
    %950 = vmatpush1.msra.mxu0 %v949
    %951 = vmatprep.subr.mxu0 0.0
    %v952 = vand.u32 %v299, 4294901760
    %953 = vmatpush1.msra.mxu0 %v952
    %954 = vmatprep.subr.mxu0 0.0
    %955 = vmatpush2.msra.mxu0 0.0
    %956 = vmatprep.subr.mxu0 0.0
    %957 = vmatpush2.msra.mxu0 0.0
    %958 = vmatprep.subr.mxu0 0.0
    %959 = vmatpush2.msra.mxu0 0.0
    %960 = vmatprep.subr.mxu0 0.0
    %961 = vmatpush2.msra.mxu0 0.0
    %962 = vmatprep.subr.mxu0 0.0
    %963 = vmatpush2.msra.mxu0 0.0
    %964 = vmatprep.subr.mxu0 0.0
    %965 = vmatpush2.msra.mxu0 0.0
    %966 = vmatprep.subr.mxu0 0.0
    %967 = vmatpush2.msra.mxu0 0.0
    %968 = vmatprep.subr.mxu0 0.0
    %969 = vmatpush2.msra.mxu0 0.0
    %970 = vmatprep.subr.mxu0 0.0
    %971 = vmatpush2.msra.mxu0 0.0
    %972 = vmatprep.subr.mxu0 0.0
    %973 = vmatpush2.msra.mxu0 0.0
    %974 = vmatprep.subr.mxu0 0.0
    %975 = vmatpush2.msra.mxu0 0.0
    %976 = vmatprep.subr.mxu0 0.0
    %977 = vmatpush2.msra.mxu0 0.0
    %978 = vmatprep.subr.mxu0 0.0
    %979 = vmatpush2.msra.mxu0 0.0
    %980 = vmatprep.subr.mxu0 0.0
    %981 = vmatpush2.msra.mxu0 0.0
    %982 = vmatprep.subr.mxu0 0.0
    %983 = vmatpush2.msra.mxu0 0.0
    %984 = vmatprep.subr.mxu0 0.0
    %985 = vmatpush2.msra.mxu0 0.0
    %986 = vmatprep.mubr.f32.mxu0 0.0
    %v987 = vand.u32 %v204, 4294901760
    %988 = vmatmul.mubr.f32.gmra.mxu0 %v987
    %v989 = vpop.f32.mrf.mxu0
    %v990 = vadd.f32 %v897, %v989
    %v991 = vpop.f32.mrf.mxu0
    %992 = vmatprep.mubr.f32.mxu0 0.0
    %v993 = vand.u32 %v205, 4294901760
    %994 = vmatmul.mubr.f32.gmra.mxu0 %v993
    %v995 = vpop.f32.mrf.mxu0
    %v996 = vadd.f32 %v903, %v995
    %v997 = vpop.f32.mrf.mxu0
    %998 = vdwg.mxu0
    %s999 = sld [smem:[#allocation2]]
    %v1000 = vld [vmem:[%s8] sm:$0x1f]
    %v1001 = vld [vmem:[%s9] sm:$0x1f]
    %v1002 = vsel %vm222, %v990, 0.0
    %1003 = vadd.xlane.f32.xlu0 %v1002
    %v1004 = vpop.xlane.xlu0 %1003
    %v1005 = vmul.f32 %v990, %v990
    %v1006 = vsel %vm222, %v1005, 0.0
    %1007 = vadd.xlane.f32.xlu0 %v1006
    %v1008 = vpop.xlane.xlu0 %1007
    %v1009 = vsel %vm230, %v990, 0.0
    %1010 = vadd.xlane.f32.xlu0 %v1009
    %v1011 = vpop.xlane.xlu0 %1010
    %v1012 = vsel %vm234, %v996, 0.0
    %1013 = vadd.xlane.f32.xlu0 %v1012
    %v1014 = vpop.xlane.xlu0 %1013
    %v1017 = vrot.slane %v1011, 5
    %v1018 = vrot.slane %v1014, 5
    %v1019 = vsel %vm240, %v1017, %v1018
    %v1021 = vadd.f32 %v1004, %v1019
    %v1022 = vmul.f32 %v996, %v996
    %v1023 = vsel %vm230, %v1005, 0.0
    %1024 = vadd.xlane.f32.xlu0 %v1023
    %v1025 = vpop.xlane.xlu0 %1024
    %v1026 = vsel %vm234, %v1022, 0.0
    %1027 = vadd.xlane.f32.xlu0 %v1026
    %v1028 = vpop.xlane.xlu0 %1027
    %v1031 = vrot.slane %v1025, 5
    %v1032 = vrot.slane %v1028, 5
    %v1033 = vsel %vm240, %v1031, %v1032
    %v1035 = vadd.f32 %v1008, %v1033
    %v1036 = vmul.f32 %v1021, 0.00390625
    %v1037 = vmul.f32 %v1035, 0.00390625
    %v1038 = vmul.f32 %v1036, %v1036
    %v1039 = vsub.f32 %v1037, %v1038
    %v1040 = vadd.f32 %v1039, 1e-05
    %v1041 = vrsqrt.pop %v1040
    %v1042 = vmul.f32 %v1000, %v1041
    %v1043 = vmul.f32 %v1036, %v1042
    %v1044 = vsub.f32 %v1001, %v1043
    %v1046 = vrot.slane %v1042, 3
    %v1048 = vsel %vm222, %v1042, %v1046
    %v1050 = vrot.slane %v1044, 3
    %v1052 = vsel %vm222, %v1044, %v1050
    %1054 = vset.pattern.permute.xlu0 0
    %1055 = vperm.xlu0 %1054, %v1048
    %v1056 = vpop.permute.xlu0 %1055
    %1058 = vset.pattern.permute.xlu0 0
    %1059 = vperm.xlu0 %1058, %v1046
    %v1060 = vpop.permute.xlu0 %1059
    %v1062 = vmul.f32 %v990, %v1056
    %v1063 = vmul.f32 %v996, %v1060
    %1065 = vset.pattern.permute.xlu0 0
    %1066 = vperm.xlu0 %1065, %v1052
    %v1067 = vpop.permute.xlu0 %1066
    %1069 = vset.pattern.permute.xlu0 0
    %1070 = vperm.xlu0 %1069, %v1050
    %v1071 = vpop.permute.xlu0 %1070
    %v1073 = vadd.f32 %v1062, %v1067
    %v1074 = vadd.f32 %v1063, %v1071
    %vm1075 = vcmp.ge.f32.partialorder %v1073, 0.0
    %vm1076 = vcmp.ge.f32.partialorder %v1074, 0.0
    %v1077 = vstv %s999
    %v1078 = vmul.f32 %v1077, %v1073
    %v1079 = vmul.f32 %v1077, %v1074
    %v1080 = vsel %vm1075, %v1073, %v1078
    %v1081 = vsel %vm1076, %v1074, %v1079
    %1084 = vrot.lane.b32.xlu0 %v1080, 16
    %v1085 = vpop.permute.xlu0 %1084
    %1086 = vrot.lane.b32.xlu0 %v1081, 16
    %v1087 = vpop.permute.xlu0 %1086
    %vm1090 = vcmask 130048
    %v1091 = vsel %vm1090, 0.0, %v1085
    %v1092 = vsel %vm1090, 0.0, %v1087
    %1093 = vrot.lane.b32.xlu0 %v1080, 112
    %v1094 = vpop.permute.xlu0 %1093
    %1095 = vrot.lane.b32.xlu0 %v1081, 112
    %v1096 = vpop.permute.xlu0 %1095
    %vm1099 = vcmask 916480
    %v1100 = vsel %vm1099, %v1094, 0.0
    %v1101 = vsel %vm1099, %v1096, 0.0
    %v1102 = vrot.slane %v1080, 6
    %v1103 = vrot.slane %v1081, 6
    %v1104 = vsel %vm234, %v1102, %v1103
    %vm1109 = vcmask 1043456
    %v1110 = vrot.slane %v1100, 4
    %v1111 = vrot.slane %v1101, 4
    %v1112 = vsel %vm1109, %v1110, %v1111
    %v1114 = vsel %vm234, %v1092, %v1102
    %v1115 = vsel %vm1109, %v1104, %v1110
    %v1116 = vld [vmem:[%s10] sm:$0xff]
    %v1117 = vld [vmem:[%s10 + $0x8] sm:$0x3]
    %v1118 = vld [vmem:[%s11] sm:$0xff]
    %v1119 = vld [vmem:[%s11 + $0x8] sm:$0x3]
    %1121 = vset.pattern.permute.xlu0 0
    %1122 = vperm.xlu0 %1121, %v1118
    %v1123 = vpop.permute.xlu0 %1122
    %1126 = vset.pattern.permute.xlu0 0
    %1127 = vperm.xlu0 %1126, %v1119
    %v1128 = vpop.permute.xlu0 %1127
    %vm1130 = vcmask 244736
    %v1132 = vsel %vm1130, %v1116, 0
    %v1135 = vsel %vm1130, %v1117, 0
    %vm1137 = vcmask 1045504
    %v1138 = vsel %vm1137, %v1112, 0
    %1140 = vmatprep.subr.mxu0 0.0
    %1141 = vmatpush1.msra.mxu0 0.0
    %1142 = vmatprep.subr.mxu0 0.0
    %1143 = vmatpush1.msra.mxu0 0.0
    %1144 = vmatprep.subr.mxu0 0.0
    %1145 = vmatpush1.msra.mxu0 0.0
    %1146 = vmatprep.subr.mxu0 0.0
    %1147 = vmatpush1.msra.mxu0 0.0
    %1148 = vmatprep.subr.mxu0 0.0
    %1149 = vmatpush1.msra.mxu0 0.0
    %1150 = vmatprep.subr.mxu0 0.0
    %1151 = vmatpush1.msra.mxu0 0.0
    %1152 = vmatprep.subr.mxu0 0.0
    %1153 = vmatpush1.msra.mxu0 0.0
    %1154 = vmatprep.subr.mxu0 0.0
    %1155 = vmatpush1.msra.mxu0 0.0
    %1156 = vmatprep.subr.mxu0 0.0
    %1157 = vmatpush1.msra.mxu0 0.0
    %1158 = vmatprep.subr.mxu0 0.0
    %1159 = vmatpush1.msra.mxu0 0.0
    %1160 = vmatprep.subr.mxu0 0.0
    %1161 = vmatpush1.msra.mxu0 0.0
    %1162 = vmatprep.subr.mxu0 0.0
    %1163 = vmatpush1.msra.mxu0 0.0
    %1164 = vmatprep.subr.mxu0 0.0
    %v1165 = vand.u32 %v1138, 4294901760
    %1166 = vmatpush1.msra.mxu0 %v1165
    %1167 = vmatprep.subr.mxu0 0.0
    %v1168 = vand.u32 %v1115, 4294901760
    %1169 = vmatpush1.msra.mxu0 %v1168
    %1170 = vmatprep.subr.mxu0 0.0
    %v1171 = vand.u32 %v1114, 4294901760
    %1172 = vmatpush1.msra.mxu0 %v1171
    %1173 = vmatprep.subr.mxu0 0.0
    %v1174 = vand.u32 %v1091, 4294901760
    %1175 = vmatpush1.msra.mxu0 %v1174
    %1176 = vmatprep.subr.mxu0 0.0
    %1177 = vmatpush2.msra.mxu0 0.0
    %1178 = vmatprep.subr.mxu0 0.0
    %1179 = vmatpush2.msra.mxu0 0.0
    %1180 = vmatprep.subr.mxu0 0.0
    %1181 = vmatpush2.msra.mxu0 0.0
    %1182 = vmatprep.subr.mxu0 0.0
    %1183 = vmatpush2.msra.mxu0 0.0
    %1184 = vmatprep.subr.mxu0 0.0
    %1185 = vmatpush2.msra.mxu0 0.0
    %1186 = vmatprep.subr.mxu0 0.0
    %1187 = vmatpush2.msra.mxu0 0.0
    %1188 = vmatprep.subr.mxu0 0.0
    %1189 = vmatpush2.msra.mxu0 0.0
    %1190 = vmatprep.subr.mxu0 0.0
    %1191 = vmatpush2.msra.mxu0 0.0
    %1192 = vmatprep.subr.mxu0 0.0
    %1193 = vmatpush2.msra.mxu0 0.0
    %1194 = vmatprep.subr.mxu0 0.0
    %1195 = vmatpush2.msra.mxu0 0.0
    %1196 = vmatprep.subr.mxu0 0.0
    %1197 = vmatpush2.msra.mxu0 0.0
    %1198 = vmatprep.subr.mxu0 0.0
    %1199 = vmatpush2.msra.mxu0 0.0
    %1200 = vmatprep.subr.mxu0 0.0
    %1201 = vmatpush2.msra.mxu0 0.0
    %1202 = vmatprep.subr.mxu0 0.0
    %1203 = vmatpush2.msra.mxu0 0.0
    %1204 = vmatprep.subr.mxu0 0.0
    %1205 = vmatpush2.msra.mxu0 0.0
    %1206 = vmatprep.subr.mxu0 0.0
    %1207 = vmatpush2.msra.mxu0 0.0
    %1208 = vmatprep.mubr.f32.mxu0 0.0
    %v1209 = vand.u32 %v1132, 4294901760
    %v1210 = vsub.f32 %v1132, %v1209
    %v1211 = vand.u32 %v1210, 4294901760
    %v1212 = vsub.f32 %v1210, %v1211
    %v1213 = vand.u32 %v1212, 4294901760
    %1214 = vmatmul.mubr.f32.gmra.mxu0 %v1213
    %v1215 = vpop.f32.mrf.mxu0
    %v1216 = vadd.f32 %v1123, %v1215
    %v1217 = vpop.f32.mrf.mxu0
    %1218 = vmatprep.mubr.f32.mxu0 0.0
    %v1219 = vand.u32 %v1135, 4294901760
    %v1220 = vsub.f32 %v1135, %v1219
    %v1221 = vand.u32 %v1220, 4294901760
    %v1222 = vsub.f32 %v1220, %v1221
    %v1223 = vand.u32 %v1222, 4294901760
    %1224 = vmatmul.mubr.f32.gmra.mxu0 %v1223
    %v1225 = vpop.f32.mrf.mxu0
    %v1226 = vadd.f32 %v1128, %v1225
    %v1227 = vpop.f32.mrf.mxu0
    %1228 = vdwg.mxu0
    %1229 = vmatprep.subr.mxu0 0.0
    %1230 = vmatpush1.msra.mxu0 0.0
    %1231 = vmatprep.subr.mxu0 0.0
    %1232 = vmatpush1.msra.mxu0 0.0
    %1233 = vmatprep.subr.mxu0 0.0
    %1234 = vmatpush1.msra.mxu0 0.0
    %1235 = vmatprep.subr.mxu0 0.0
    %1236 = vmatpush1.msra.mxu0 0.0
    %1237 = vmatprep.subr.mxu0 0.0
    %1238 = vmatpush1.msra.mxu0 0.0
    %1239 = vmatprep.subr.mxu0 0.0
    %1240 = vmatpush1.msra.mxu0 0.0
    %1241 = vmatprep.subr.mxu0 0.0
    %1242 = vmatpush1.msra.mxu0 0.0
    %1243 = vmatprep.subr.mxu0 0.0
    %1244 = vmatpush1.msra.mxu0 0.0
    %1245 = vmatprep.subr.mxu0 0.0
    %1246 = vmatpush1.msra.mxu0 0.0
    %1247 = vmatprep.subr.mxu0 0.0
    %1248 = vmatpush1.msra.mxu0 0.0
    %1249 = vmatprep.subr.mxu0 0.0
    %1250 = vmatpush1.msra.mxu0 0.0
    %1251 = vmatprep.subr.mxu0 0.0
    %1252 = vmatpush1.msra.mxu0 0.0
    %1253 = vmatprep.subr.mxu0 0.0
    %v1254 = vand.u32 %v1138, 4294901760
    %v1255 = vsub.f32 %v1138, %v1254
    %v1256 = vand.u32 %v1255, 4294901760
    %v1257 = vsub.f32 %v1255, %v1256
    %v1258 = vand.u32 %v1257, 4294901760
    %1259 = vmatpush1.msra.mxu0 %v1258
    %1260 = vmatprep.subr.mxu0 0.0
    %v1261 = vand.u32 %v1115, 4294901760
    %v1262 = vsub.f32 %v1115, %v1261
    %v1263 = vand.u32 %v1262, 4294901760
    %v1264 = vsub.f32 %v1262, %v1263
    %v1265 = vand.u32 %v1264, 4294901760
    %1266 = vmatpush1.msra.mxu0 %v1265
    %1267 = vmatprep.subr.mxu0 0.0
    %v1268 = vand.u32 %v1114, 4294901760
    %v1269 = vsub.f32 %v1114, %v1268
    %v1270 = vand.u32 %v1269, 4294901760
    %v1271 = vsub.f32 %v1269, %v1270
    %v1272 = vand.u32 %v1271, 4294901760
    %1273 = vmatpush1.msra.mxu0 %v1272
    %1274 = vmatprep.subr.mxu0 0.0
    %v1275 = vand.u32 %v1091, 4294901760
    %v1276 = vsub.f32 %v1091, %v1275
    %v1277 = vand.u32 %v1276, 4294901760
    %v1278 = vsub.f32 %v1276, %v1277
    %v1279 = vand.u32 %v1278, 4294901760
    %1280 = vmatpush1.msra.mxu0 %v1279
    %1281 = vmatprep.subr.mxu0 0.0
    %1282 = vmatpush2.msra.mxu0 0.0
    %1283 = vmatprep.subr.mxu0 0.0
    %1284 = vmatpush2.msra.mxu0 0.0
    %1285 = vmatprep.subr.mxu0 0.0
    %1286 = vmatpush2.msra.mxu0 0.0
    %1287 = vmatprep.subr.mxu0 0.0
    %1288 = vmatpush2.msra.mxu0 0.0
    %1289 = vmatprep.subr.mxu0 0.0
    %1290 = vmatpush2.msra.mxu0 0.0
    %1291 = vmatprep.subr.mxu0 0.0
    %1292 = vmatpush2.msra.mxu0 0.0
    %1293 = vmatprep.subr.mxu0 0.0
    %1294 = vmatpush2.msra.mxu0 0.0
    %1295 = vmatprep.subr.mxu0 0.0
    %1296 = vmatpush2.msra.mxu0 0.0
    %1297 = vmatprep.subr.mxu0 0.0
    %1298 = vmatpush2.msra.mxu0 0.0
    %1299 = vmatprep.subr.mxu0 0.0
    %1300 = vmatpush2.msra.mxu0 0.0
    %1301 = vmatprep.subr.mxu0 0.0
    %1302 = vmatpush2.msra.mxu0 0.0
    %1303 = vmatprep.subr.mxu0 0.0
    %1304 = vmatpush2.msra.mxu0 0.0
    %1305 = vmatprep.subr.mxu0 0.0
    %1306 = vmatpush2.msra.mxu0 0.0
    %1307 = vmatprep.subr.mxu0 0.0
    %1308 = vmatpush2.msra.mxu0 0.0
    %1309 = vmatprep.subr.mxu0 0.0
    %1310 = vmatpush2.msra.mxu0 0.0
    %1311 = vmatprep.subr.mxu0 0.0
    %1312 = vmatpush2.msra.mxu0 0.0
    %1313 = vmatprep.mubr.f32.mxu0 0.0
    %v1314 = vand.u32 %v1132, 4294901760
    %1315 = vmatmul.mubr.f32.gmra.mxu0 %v1314
    %v1316 = vpop.f32.mrf.mxu0
    %v1317 = vadd.f32 %v1216, %v1316
    %v1318 = vpop.f32.mrf.mxu0
    %1319 = vmatprep.mubr.f32.mxu0 0.0
    %v1320 = vand.u32 %v1135, 4294901760
    %1321 = vmatmul.mubr.f32.gmra.mxu0 %v1320
    %v1322 = vpop.f32.mrf.mxu0
    %v1323 = vadd.f32 %v1226, %v1322
    %v1324 = vpop.f32.mrf.mxu0
    %1325 = vdwg.mxu0
    %1326 = vmatprep.subr.mxu0 0.0
    %1327 = vmatpush1.msra.mxu0 0.0
    %1328 = vmatprep.subr.mxu0 0.0
    %1329 = vmatpush1.msra.mxu0 0.0
    %1330 = vmatprep.subr.mxu0 0.0
    %1331 = vmatpush1.msra.mxu0 0.0
    %1332 = vmatprep.subr.mxu0 0.0
    %1333 = vmatpush1.msra.mxu0 0.0
    %1334 = vmatprep.subr.mxu0 0.0
    %1335 = vmatpush1.msra.mxu0 0.0
    %1336 = vmatprep.subr.mxu0 0.0
    %1337 = vmatpush1.msra.mxu0 0.0
    %1338 = vmatprep.subr.mxu0 0.0
    %1339 = vmatpush1.msra.mxu0 0.0
    %1340 = vmatprep.subr.mxu0 0.0
    %1341 = vmatpush1.msra.mxu0 0.0
    %1342 = vmatprep.subr.mxu0 0.0
    %1343 = vmatpush1.msra.mxu0 0.0
    %1344 = vmatprep.subr.mxu0 0.0
    %1345 = vmatpush1.msra.mxu0 0.0
    %1346 = vmatprep.subr.mxu0 0.0
    %1347 = vmatpush1.msra.mxu0 0.0
    %1348 = vmatprep.subr.mxu0 0.0
    %1349 = vmatpush1.msra.mxu0 0.0
    %1350 = vmatprep.subr.mxu0 0.0
    %v1351 = vand.u32 %v1138, 4294901760
    %v1352 = vsub.f32 %v1138, %v1351
    %1353 = vmatpush1.msra.mxu0 %v1352
    %1354 = vmatprep.subr.mxu0 0.0
    %v1355 = vand.u32 %v1115, 4294901760
    %v1356 = vsub.f32 %v1115, %v1355
    %1357 = vmatpush1.msra.mxu0 %v1356
    %1358 = vmatprep.subr.mxu0 0.0
    %v1359 = vand.u32 %v1114, 4294901760
    %v1360 = vsub.f32 %v1114, %v1359
    %1361 = vmatpush1.msra.mxu0 %v1360
    %1362 = vmatprep.subr.mxu0 0.0
    %v1363 = vand.u32 %v1091, 4294901760
    %v1364 = vsub.f32 %v1091, %v1363
    %1365 = vmatpush1.msra.mxu0 %v1364
    %1366 = vmatprep.subr.mxu0 0.0
    %1367 = vmatpush2.msra.mxu0 0.0
    %1368 = vmatprep.subr.mxu0 0.0
    %1369 = vmatpush2.msra.mxu0 0.0
    %1370 = vmatprep.subr.mxu0 0.0
    %1371 = vmatpush2.msra.mxu0 0.0
    %1372 = vmatprep.subr.mxu0 0.0
    %1373 = vmatpush2.msra.mxu0 0.0
    %1374 = vmatprep.subr.mxu0 0.0
    %1375 = vmatpush2.msra.mxu0 0.0
    %1376 = vmatprep.subr.mxu0 0.0
    %1377 = vmatpush2.msra.mxu0 0.0
    %1378 = vmatprep.subr.mxu0 0.0
    %1379 = vmatpush2.msra.mxu0 0.0
    %1380 = vmatprep.subr.mxu0 0.0
    %1381 = vmatpush2.msra.mxu0 0.0
    %1382 = vmatprep.subr.mxu0 0.0
    %1383 = vmatpush2.msra.mxu0 0.0
    %1384 = vmatprep.subr.mxu0 0.0
    %1385 = vmatpush2.msra.mxu0 0.0
    %1386 = vmatprep.subr.mxu0 0.0
    %1387 = vmatpush2.msra.mxu0 0.0
    %1388 = vmatprep.subr.mxu0 0.0
    %1389 = vmatpush2.msra.mxu0 0.0
    %1390 = vmatprep.subr.mxu0 0.0
    %1391 = vmatpush2.msra.mxu0 0.0
    %1392 = vmatprep.subr.mxu0 0.0
    %1393 = vmatpush2.msra.mxu0 0.0
    %1394 = vmatprep.subr.mxu0 0.0
    %1395 = vmatpush2.msra.mxu0 0.0
    %1396 = vmatprep.subr.mxu0 0.0
    %1397 = vmatpush2.msra.mxu0 0.0
    %1398 = vmatprep.mubr.f32.mxu0 0.0
    %v1399 = vand.u32 %v1132, 4294901760
    %v1400 = vsub.f32 %v1132, %v1399
    %1401 = vmatmul.mubr.f32.gmra.mxu0 %v1400
    %v1402 = vpop.f32.mrf.mxu0
    %v1403 = vadd.f32 %v1317, %v1402
    %v1404 = vpop.f32.mrf.mxu0
    %1405 = vmatprep.mubr.f32.mxu0 0.0
    %v1406 = vand.u32 %v1135, 4294901760
    %v1407 = vsub.f32 %v1135, %v1406
    %1408 = vmatmul.mubr.f32.gmra.mxu0 %v1407
    %v1409 = vpop.f32.mrf.mxu0
    %v1410 = vadd.f32 %v1323, %v1409
    %v1411 = vpop.f32.mrf.mxu0
    %1412 = vdwg.mxu0
    %1413 = vmatprep.subr.mxu0 0.0
    %1414 = vmatpush1.msra.mxu0 0.0
    %1415 = vmatprep.subr.mxu0 0.0
    %1416 = vmatpush1.msra.mxu0 0.0
    %1417 = vmatprep.subr.mxu0 0.0
    %1418 = vmatpush1.msra.mxu0 0.0
    %1419 = vmatprep.subr.mxu0 0.0
    %1420 = vmatpush1.msra.mxu0 0.0
    %1421 = vmatprep.subr.mxu0 0.0
    %1422 = vmatpush1.msra.mxu0 0.0
    %1423 = vmatprep.subr.mxu0 0.0
    %1424 = vmatpush1.msra.mxu0 0.0
    %1425 = vmatprep.subr.mxu0 0.0
    %1426 = vmatpush1.msra.mxu0 0.0
    %1427 = vmatprep.subr.mxu0 0.0
    %1428 = vmatpush1.msra.mxu0 0.0
    %1429 = vmatprep.subr.mxu0 0.0
    %1430 = vmatpush1.msra.mxu0 0.0
    %1431 = vmatprep.subr.mxu0 0.0
    %1432 = vmatpush1.msra.mxu0 0.0
    %1433 = vmatprep.subr.mxu0 0.0
    %1434 = vmatpush1.msra.mxu0 0.0
    %1435 = vmatprep.subr.mxu0 0.0
    %1436 = vmatpush1.msra.mxu0 0.0
    %1437 = vmatprep.subr.mxu0 0.0
    %v1438 = vand.u32 %v1138, 4294901760
    %1439 = vmatpush1.msra.mxu0 %v1438
    %1440 = vmatprep.subr.mxu0 0.0
    %v1441 = vand.u32 %v1115, 4294901760
    %1442 = vmatpush1.msra.mxu0 %v1441
    %1443 = vmatprep.subr.mxu0 0.0
    %v1444 = vand.u32 %v1114, 4294901760
    %1445 = vmatpush1.msra.mxu0 %v1444
    %1446 = vmatprep.subr.mxu0 0.0
    %v1447 = vand.u32 %v1091, 4294901760
    %1448 = vmatpush1.msra.mxu0 %v1447
    %1449 = vmatprep.subr.mxu0 0.0
    %1450 = vmatpush2.msra.mxu0 0.0
    %1451 = vmatprep.subr.mxu0 0.0
    %1452 = vmatpush2.msra.mxu0 0.0
    %1453 = vmatprep.subr.mxu0 0.0
    %1454 = vmatpush2.msra.mxu0 0.0
    %1455 = vmatprep.subr.mxu0 0.0
    %1456 = vmatpush2.msra.mxu0 0.0
    %1457 = vmatprep.subr.mxu0 0.0
    %1458 = vmatpush2.msra.mxu0 0.0
    %1459 = vmatprep.subr.mxu0 0.0
    %1460 = vmatpush2.msra.mxu0 0.0
    %1461 = vmatprep.subr.mxu0 0.0
    %1462 = vmatpush2.msra.mxu0 0.0
    %1463 = vmatprep.subr.mxu0 0.0
    %1464 = vmatpush2.msra.mxu0 0.0
    %1465 = vmatprep.subr.mxu0 0.0
    %1466 = vmatpush2.msra.mxu0 0.0
    %1467 = vmatprep.subr.mxu0 0.0
    %1468 = vmatpush2.msra.mxu0 0.0
    %1469 = vmatprep.subr.mxu0 0.0
    %1470 = vmatpush2.msra.mxu0 0.0
    %1471 = vmatprep.subr.mxu0 0.0
    %1472 = vmatpush2.msra.mxu0 0.0
    %1473 = vmatprep.subr.mxu0 0.0
    %1474 = vmatpush2.msra.mxu0 0.0
    %1475 = vmatprep.subr.mxu0 0.0
    %1476 = vmatpush2.msra.mxu0 0.0
    %1477 = vmatprep.subr.mxu0 0.0
    %1478 = vmatpush2.msra.mxu0 0.0
    %1479 = vmatprep.subr.mxu0 0.0
    %1480 = vmatpush2.msra.mxu0 0.0
    %1481 = vmatprep.mubr.f32.mxu0 0.0
    %v1482 = vand.u32 %v1132, 4294901760
    %v1483 = vsub.f32 %v1132, %v1482
    %v1484 = vand.u32 %v1483, 4294901760
    %1485 = vmatmul.mubr.f32.gmra.mxu0 %v1484
    %v1486 = vpop.f32.mrf.mxu0
    %v1487 = vadd.f32 %v1403, %v1486
    %v1488 = vpop.f32.mrf.mxu0
    %1489 = vmatprep.mubr.f32.mxu0 0.0
    %v1490 = vand.u32 %v1135, 4294901760
    %v1491 = vsub.f32 %v1135, %v1490
    %v1492 = vand.u32 %v1491, 4294901760
    %1493 = vmatmul.mubr.f32.gmra.mxu0 %v1492
    %v1494 = vpop.f32.mrf.mxu0
    %v1495 = vadd.f32 %v1410, %v1494
    %v1496 = vpop.f32.mrf.mxu0
    %1497 = vdwg.mxu0
    %1498 = vmatprep.subr.mxu0 0.0
    %1499 = vmatpush1.msra.mxu0 0.0
    %1500 = vmatprep.subr.mxu0 0.0
    %1501 = vmatpush1.msra.mxu0 0.0
    %1502 = vmatprep.subr.mxu0 0.0
    %1503 = vmatpush1.msra.mxu0 0.0
    %1504 = vmatprep.subr.mxu0 0.0
    %1505 = vmatpush1.msra.mxu0 0.0
    %1506 = vmatprep.subr.mxu0 0.0
    %1507 = vmatpush1.msra.mxu0 0.0
    %1508 = vmatprep.subr.mxu0 0.0
    %1509 = vmatpush1.msra.mxu0 0.0
    %1510 = vmatprep.subr.mxu0 0.0
    %1511 = vmatpush1.msra.mxu0 0.0
    %1512 = vmatprep.subr.mxu0 0.0
    %1513 = vmatpush1.msra.mxu0 0.0
    %1514 = vmatprep.subr.mxu0 0.0
    %1515 = vmatpush1.msra.mxu0 0.0
    %1516 = vmatprep.subr.mxu0 0.0
    %1517 = vmatpush1.msra.mxu0 0.0
    %1518 = vmatprep.subr.mxu0 0.0
    %1519 = vmatpush1.msra.mxu0 0.0
    %1520 = vmatprep.subr.mxu0 0.0
    %1521 = vmatpush1.msra.mxu0 0.0
    %1522 = vmatprep.subr.mxu0 0.0
    %v1523 = vand.u32 %v1138, 4294901760
    %v1524 = vsub.f32 %v1138, %v1523
    %v1525 = vand.u32 %v1524, 4294901760
    %1526 = vmatpush1.msra.mxu0 %v1525
    %1527 = vmatprep.subr.mxu0 0.0
    %v1528 = vand.u32 %v1115, 4294901760
    %v1529 = vsub.f32 %v1115, %v1528
    %v1530 = vand.u32 %v1529, 4294901760
    %1531 = vmatpush1.msra.mxu0 %v1530
    %1532 = vmatprep.subr.mxu0 0.0
    %v1533 = vand.u32 %v1114, 4294901760
    %v1534 = vsub.f32 %v1114, %v1533
    %v1535 = vand.u32 %v1534, 4294901760
    %1536 = vmatpush1.msra.mxu0 %v1535
    %1537 = vmatprep.subr.mxu0 0.0
    %v1538 = vand.u32 %v1091, 4294901760
    %v1539 = vsub.f32 %v1091, %v1538
    %v1540 = vand.u32 %v1539, 4294901760
    %1541 = vmatpush1.msra.mxu0 %v1540
    %1542 = vmatprep.subr.mxu0 0.0
    %1543 = vmatpush2.msra.mxu0 0.0
    %1544 = vmatprep.subr.mxu0 0.0
    %1545 = vmatpush2.msra.mxu0 0.0
    %1546 = vmatprep.subr.mxu0 0.0
    %1547 = vmatpush2.msra.mxu0 0.0
    %1548 = vmatprep.subr.mxu0 0.0
    %1549 = vmatpush2.msra.mxu0 0.0
    %1550 = vmatprep.subr.mxu0 0.0
    %1551 = vmatpush2.msra.mxu0 0.0
    %1552 = vmatprep.subr.mxu0 0.0
    %1553 = vmatpush2.msra.mxu0 0.0
    %1554 = vmatprep.subr.mxu0 0.0
    %1555 = vmatpush2.msra.mxu0 0.0
    %1556 = vmatprep.subr.mxu0 0.0
    %1557 = vmatpush2.msra.mxu0 0.0
    %1558 = vmatprep.subr.mxu0 0.0
    %1559 = vmatpush2.msra.mxu0 0.0
    %1560 = vmatprep.subr.mxu0 0.0
    %1561 = vmatpush2.msra.mxu0 0.0
    %1562 = vmatprep.subr.mxu0 0.0
    %1563 = vmatpush2.msra.mxu0 0.0
    %1564 = vmatprep.subr.mxu0 0.0
    %1565 = vmatpush2.msra.mxu0 0.0
    %1566 = vmatprep.subr.mxu0 0.0
    %1567 = vmatpush2.msra.mxu0 0.0
    %1568 = vmatprep.subr.mxu0 0.0
    %1569 = vmatpush2.msra.mxu0 0.0
    %1570 = vmatprep.subr.mxu0 0.0
    %1571 = vmatpush2.msra.mxu0 0.0
    %1572 = vmatprep.subr.mxu0 0.0
    %1573 = vmatpush2.msra.mxu0 0.0
    %1574 = vmatprep.mubr.f32.mxu0 0.0
    %v1575 = vand.u32 %v1132, 4294901760
    %1576 = vmatmul.mubr.f32.gmra.mxu0 %v1575
    %v1577 = vpop.f32.mrf.mxu0
    %v1578 = vadd.f32 %v1487, %v1577
    %v1579 = vpop.f32.mrf.mxu0
    %1580 = vmatprep.mubr.f32.mxu0 0.0
    %v1581 = vand.u32 %v1135, 4294901760
    %1582 = vmatmul.mubr.f32.gmra.mxu0 %v1581
    %v1583 = vpop.f32.mrf.mxu0
    %v1584 = vadd.f32 %v1495, %v1583
    %v1585 = vpop.f32.mrf.mxu0
    %1586 = vdwg.mxu0
    %1587 = vmatprep.subr.mxu0 0.0
    %1588 = vmatpush1.msra.mxu0 0.0
    %1589 = vmatprep.subr.mxu0 0.0
    %1590 = vmatpush1.msra.mxu0 0.0
    %1591 = vmatprep.subr.mxu0 0.0
    %1592 = vmatpush1.msra.mxu0 0.0
    %1593 = vmatprep.subr.mxu0 0.0
    %1594 = vmatpush1.msra.mxu0 0.0
    %1595 = vmatprep.subr.mxu0 0.0
    %1596 = vmatpush1.msra.mxu0 0.0
    %1597 = vmatprep.subr.mxu0 0.0
    %1598 = vmatpush1.msra.mxu0 0.0
    %1599 = vmatprep.subr.mxu0 0.0
    %1600 = vmatpush1.msra.mxu0 0.0
    %1601 = vmatprep.subr.mxu0 0.0
    %1602 = vmatpush1.msra.mxu0 0.0
    %1603 = vmatprep.subr.mxu0 0.0
    %1604 = vmatpush1.msra.mxu0 0.0
    %1605 = vmatprep.subr.mxu0 0.0
    %1606 = vmatpush1.msra.mxu0 0.0
    %1607 = vmatprep.subr.mxu0 0.0
    %1608 = vmatpush1.msra.mxu0 0.0
    %1609 = vmatprep.subr.mxu0 0.0
    %1610 = vmatpush1.msra.mxu0 0.0
    %1611 = vmatprep.subr.mxu0 0.0
    %v1612 = vand.u32 %v1138, 4294901760
    %1613 = vmatpush1.msra.mxu0 %v1612
    %1614 = vmatprep.subr.mxu0 0.0
    %v1615 = vand.u32 %v1115, 4294901760
    %1616 = vmatpush1.msra.mxu0 %v1615
    %1617 = vmatprep.subr.mxu0 0.0
    %v1618 = vand.u32 %v1114, 4294901760
    %1619 = vmatpush1.msra.mxu0 %v1618
    %1620 = vmatprep.subr.mxu0 0.0
    %v1621 = vand.u32 %v1091, 4294901760
    %1622 = vmatpush1.msra.mxu0 %v1621
    %1623 = vmatprep.subr.mxu0 0.0
    %1624 = vmatpush2.msra.mxu0 0.0
    %1625 = vmatprep.subr.mxu0 0.0
    %1626 = vmatpush2.msra.mxu0 0.0
    %1627 = vmatprep.subr.mxu0 0.0
    %1628 = vmatpush2.msra.mxu0 0.0
    %1629 = vmatprep.subr.mxu0 0.0
    %1630 = vmatpush2.msra.mxu0 0.0
    %1631 = vmatprep.subr.mxu0 0.0
    %1632 = vmatpush2.msra.mxu0 0.0
    %1633 = vmatprep.subr.mxu0 0.0
    %1634 = vmatpush2.msra.mxu0 0.0
    %1635 = vmatprep.subr.mxu0 0.0
    %1636 = vmatpush2.msra.mxu0 0.0
    %1637 = vmatprep.subr.mxu0 0.0
    %1638 = vmatpush2.msra.mxu0 0.0
    %1639 = vmatprep.subr.mxu0 0.0
    %1640 = vmatpush2.msra.mxu0 0.0
    %1641 = vmatprep.subr.mxu0 0.0
    %1642 = vmatpush2.msra.mxu0 0.0
    %1643 = vmatprep.subr.mxu0 0.0
    %1644 = vmatpush2.msra.mxu0 0.0
    %1645 = vmatprep.subr.mxu0 0.0
    %1646 = vmatpush2.msra.mxu0 0.0
    %1647 = vmatprep.subr.mxu0 0.0
    %1648 = vmatpush2.msra.mxu0 0.0
    %1649 = vmatprep.subr.mxu0 0.0
    %1650 = vmatpush2.msra.mxu0 0.0
    %1651 = vmatprep.subr.mxu0 0.0
    %1652 = vmatpush2.msra.mxu0 0.0
    %1653 = vmatprep.subr.mxu0 0.0
    %1654 = vmatpush2.msra.mxu0 0.0
    %1655 = vmatprep.mubr.f32.mxu0 0.0
    %v1656 = vand.u32 %v1132, 4294901760
    %1657 = vmatmul.mubr.f32.gmra.mxu0 %v1656
    %v1658 = vpop.f32.mrf.mxu0
    %v1659 = vadd.f32 %v1578, %v1658
    %v1660 = vpop.f32.mrf.mxu0
    %1661 = vmatprep.mubr.f32.mxu0 0.0
    %v1662 = vand.u32 %v1135, 4294901760
    %1663 = vmatmul.mubr.f32.gmra.mxu0 %v1662
    %v1664 = vpop.f32.mrf.mxu0
    %v1665 = vadd.f32 %v1584, %v1664
    %v1666 = vpop.f32.mrf.mxu0
    %1667 = vdwg.mxu0
    %s1668 = sld [smem:[#allocation2 + $0x1]]
    %v1669 = vld [vmem:[%s12] sm:$0x1f]
    %v1670 = vld [vmem:[%s13] sm:$0x1f]
    %v1671 = vsel %vm222, %v1659, 0.0
    %1672 = vadd.xlane.f32.xlu0 %v1671
    %v1673 = vpop.xlane.xlu0 %1672
    %v1674 = vmul.f32 %v1659, %v1659
    %v1675 = vsel %vm222, %v1674, 0.0
    %1676 = vadd.xlane.f32.xlu0 %v1675
    %v1677 = vpop.xlane.xlu0 %1676
    %v1678 = vsel %vm230, %v1659, 0.0
    %1679 = vadd.xlane.f32.xlu0 %v1678
    %v1680 = vpop.xlane.xlu0 %1679
    %v1681 = vsel %vm234, %v1665, 0.0
    %1682 = vadd.xlane.f32.xlu0 %v1681
    %v1683 = vpop.xlane.xlu0 %1682
    %v1686 = vrot.slane %v1680, 5
    %v1687 = vrot.slane %v1683, 5
    %v1688 = vsel %vm240, %v1686, %v1687
    %v1690 = vadd.f32 %v1673, %v1688
    %v1691 = vmul.f32 %v1665, %v1665
    %v1692 = vsel %vm230, %v1674, 0.0
    %1693 = vadd.xlane.f32.xlu0 %v1692
    %v1694 = vpop.xlane.xlu0 %1693
    %v1695 = vsel %vm234, %v1691, 0.0
    %1696 = vadd.xlane.f32.xlu0 %v1695
    %v1697 = vpop.xlane.xlu0 %1696
    %v1700 = vrot.slane %v1694, 5
    %v1701 = vrot.slane %v1697, 5
    %v1702 = vsel %vm240, %v1700, %v1701
    %v1704 = vadd.f32 %v1677, %v1702
    %v1705 = vmul.f32 %v1690, 0.00390625
    %v1706 = vmul.f32 %v1704, 0.00390625
    %v1707 = vmul.f32 %v1705, %v1705
    %v1708 = vsub.f32 %v1706, %v1707
    %v1709 = vadd.f32 %v1708, 1e-05
    %v1710 = vrsqrt.pop %v1709
    %v1711 = vmul.f32 %v1669, %v1710
    %v1712 = vmul.f32 %v1705, %v1711
    %v1713 = vsub.f32 %v1670, %v1712
    %v1715 = vrot.slane %v1711, 3
    %v1717 = vsel %vm222, %v1711, %v1715
    %v1719 = vrot.slane %v1713, 3
    %v1721 = vsel %vm222, %v1713, %v1719
    %1723 = vset.pattern.permute.xlu0 0
    %1724 = vperm.xlu0 %1723, %v1717
    %v1725 = vpop.permute.xlu0 %1724
    %1727 = vset.pattern.permute.xlu0 0
    %1728 = vperm.xlu0 %1727, %v1715
    %v1729 = vpop.permute.xlu0 %1728
    %v1731 = vmul.f32 %v1659, %v1725
    %v1732 = vmul.f32 %v1665, %v1729
    %1734 = vset.pattern.permute.xlu0 0
    %1735 = vperm.xlu0 %1734, %v1721
    %v1736 = vpop.permute.xlu0 %1735
    %1738 = vset.pattern.permute.xlu0 0
    %1739 = vperm.xlu0 %1738, %v1719
    %v1740 = vpop.permute.xlu0 %1739
    %v1742 = vadd.f32 %v1731, %v1736
    %v1743 = vadd.f32 %v1732, %v1740
    %v1744 = vadd.f32 %v1742, %v297
    %v1745 = vadd.f32 %v1743, %v298
    %vm1746 = vcmp.ge.f32.partialorder %v1744, 0.0
    %vm1747 = vcmp.ge.f32.partialorder %v1745, 0.0
    %v1748 = vstv %s1668
    %v1749 = vmul.f32 %v1748, %v1744
    %v1750 = vmul.f32 %v1748, %v1745
    %v1751 = vsel %vm1746, %v1744, %v1749
    %v1752 = vsel %vm1747, %v1745, %v1750
    %v1754 = vrot.slane %v1751, 1
    %v1755 = vrot.slane %v1751, 2
    %v1756 = vrot.slane %v1751, 3
    %v1757 = vrot.slane %v1751, 4
    %v1759 = vrot.slane %v1752, 3
    %v1760 = vrot.slane %v1752, 4
    %v1761 = vrot.slane %v1751, 7
    %v1762 = vrot.slane %v1754, 7
    %1763 = vrot.lane.b32.xlu0 %v1761, 48
    %v1764 = vpop.permute.xlu0 %1763
    %1765 = vrot.lane.b32.xlu0 %v1762, 48
    %v1766 = vpop.permute.xlu0 %1765
    %vm1767 = vcmask 392192
    %v1768 = vsel %vm1767, %v1764, %v1766
    %v1770 = vrot.slane %v1754, 6
    %1771 = vrot.lane.b32.xlu0 %v1770, 96
    %v1772 = vpop.permute.xlu0 %1771
    %v1774 = vrot.slane %v1754, 5
    %v1775 = vrot.slane %v1755, 5
    %1776 = vrot.lane.b32.xlu0 %v1774, 16
    %v1777 = vpop.permute.xlu0 %1776
    %1778 = vrot.lane.b32.xlu0 %v1775, 16
    %v1779 = vpop.permute.xlu0 %1778
    %v1780 = vsel %vm1090, %v1777, %v1779
    %v1782 = vrot.slane %v1755, 4
    %v1783 = vrot.slane %v1756, 4
    %1784 = vrot.lane.b32.xlu0 %v1782, 64
    %v1785 = vpop.permute.xlu0 %1784
    %1786 = vrot.lane.b32.xlu0 %v1783, 64
    %v1787 = vpop.permute.xlu0 %1786
    %vm1788 = vcmask 523264
    %v1789 = vsel %vm1788, %v1785, %v1787
    %v1791 = vrot.slane %v1756, 3
    %1792 = vrot.lane.b32.xlu0 %v1791, 112
    %v1793 = vpop.permute.xlu0 %1792
    %v1795 = vrot.slane %v1756, 2
    %v1796 = vrot.slane %v1757, 2
    %1797 = vrot.lane.b32.xlu0 %v1795, 32
    %v1798 = vpop.permute.xlu0 %1797
    %1799 = vrot.lane.b32.xlu0 %v1796, 32
    %v1800 = vpop.permute.xlu0 %1799
    %vm1801 = vcmask 261120
    %v1802 = vsel %vm1801, %v1798, %v1800
    %v1804 = vrot.slane %v1757, 1
    %1805 = vrot.lane.b32.xlu0 %v1804, 80
    %v1806 = vpop.permute.xlu0 %1805
    %v1808 = vrot.slane %v1751, 5
    %v1810 = vrot.slane %v1754, 4
    %1811 = vrot.lane.b32.xlu0 %v1757, 48
    %v1812 = vpop.permute.xlu0 %1811
    %1813 = vrot.lane.b32.xlu0 %v1810, 48
    %v1814 = vpop.permute.xlu0 %1813
    %v1815 = vsel %vm1767, %v1812, %v1814
    %v1817 = vrot.slane %v1754, 3
    %1818 = vrot.lane.b32.xlu0 %v1817, 96
    %v1819 = vpop.permute.xlu0 %1818
    %v1821 = vrot.slane %v1754, 2
    %v1822 = vrot.slane %v1755, 2
    %1823 = vrot.lane.b32.xlu0 %v1821, 16
    %v1824 = vpop.permute.xlu0 %1823
    %1825 = vrot.lane.b32.xlu0 %v1822, 16
    %v1826 = vpop.permute.xlu0 %1825
    %v1827 = vsel %vm1090, %v1824, %v1826
    %v1829 = vrot.slane %v1755, 1
    %v1830 = vrot.slane %v1759, 1
    %1831 = vrot.lane.b32.xlu0 %v1829, 64
    %v1832 = vpop.permute.xlu0 %1831
    %1833 = vrot.lane.b32.xlu0 %v1830, 64
    %v1834 = vpop.permute.xlu0 %1833
    %v1835 = vsel %vm1788, %v1832, %v1834
    %1837 = vrot.lane.b32.xlu0 %v1759, 112
    %v1838 = vpop.permute.xlu0 %1837
    %v1840 = vrot.slane %v1759, 7
    %v1841 = vrot.slane %v1760, 7
    %1842 = vrot.lane.b32.xlu0 %v1840, 32
    %v1843 = vpop.permute.xlu0 %1842
    %1844 = vrot.lane.b32.xlu0 %v1841, 32
    %v1845 = vpop.permute.xlu0 %1844
    %v1846 = vsel %vm1801, %v1843, %v1845
    %v1848 = vrot.slane %v1760, 6
    %1849 = vrot.lane.b32.xlu0 %v1848, 80
    %v1850 = vpop.permute.xlu0 %1849
    %vm1852 = vcmask 1040384
    %v1853 = vsel %vm1852, %v1751, %v1768
    %v1854 = vsel %vm234, %v1853, %v1772
    %v1855 = vsel %vm240, %v1854, %v1780
    %v1856 = vsel %vm1109, %v1855, %v1789
    %v1857 = vsel %vm222, %v1856, %v1793
    %v1858 = vsel %vm1137, %v1857, %v1802
    %vm1859 = vcmask 1046528
    %v1860 = vsel %vm1859, %v1858, %v1806
    %v1861 = vsel %vm1852, %v1808, %v1815
    %v1862 = vsel %vm234, %v1861, %v1819
    %v1863 = vsel %vm240, %v1862, %v1827
    %v1864 = vsel %vm1109, %v1863, %v1835
    %v1865 = vsel %vm222, %v1864, %v1838
    %v1866 = vsel %vm1137, %v1865, %v1846
    %v1867 = vsel %vm1859, %v1866, %v1850
    %v1868 = vlaneseq
    %v1869 = vand.u32 %v1868, 127
    %v1870 = vand.u32 %v1869, 15
    %s1871 = sld [smem:[#allocation2 + $0x2]]
    %v1872 = vld [vmem:[%s14] sm:$0xff]
    %v1873 = vld [vmem:[%s14 + $0x8] sm:$0xff]
    %v1874 = vld [vmem:[%s14 + $0x10] sm:$0xff]
    %v1875 = vld [vmem:[%s14 + $0x18] sm:$0xff]
    %v1876 = vld [vmem:[%s14 + $0x20] sm:$0xff]
    %v1877 = vld [vmem:[%s14 + $0x28] sm:$0xff]
    %vm1878 = vcmp.ge.s32.totalorder %v1869, 16
    %vm1879 = vcmp.ge.s32.totalorder %v1870, 1
    %1882 = vrot.lane.b32.xlu0 %v1860, 17
    %v1883 = vpop.permute.xlu0 %1882
    %1884 = vrot.lane.b32.xlu0 %v1867, 17
    %v1885 = vpop.permute.xlu0 %1884
    %vm1888 = vcmask 138240
    %v1889 = vsel %vm1888, 0.0, %v1883
    %v1890 = vsel %vm1888, 0.0, %v1885
    %vm1891 = vmand %vm1878, %vm1879
    %v1892 = vsel %vm1891, 1, 0
    %vm1893 = vcmp.eq.s32.totalorder %v1892, 1
    %v1894 = vsel %vm1893, %v1889, 0.0
    %v1895 = vsel %vm1893, %v1890, 0.0
    %1896 = vrot.lane.b32.xlu0 %v1860, 16
    %v1897 = vpop.permute.xlu0 %1896
    %1898 = vrot.lane.b32.xlu0 %v1867, 16
    %v1899 = vpop.permute.xlu0 %1898
    %v1902 = vsel %vm1090, 0.0, %v1897
    %v1903 = vsel %vm1090, 0.0, %v1899
    %v1904 = vsel %vm1878, 1, 0
    %vm1905 = vcmp.eq.s32.totalorder %v1904, 1
    %v1906 = vsel %vm1905, %v1902, 0.0
    %v1907 = vsel %vm1905, %v1903, 0.0
    %vm1908 = vcmp.lt.s32.totalorder %v1870, 15
    %1909 = vrot.lane.b32.xlu0 %v1860, 15
    %v1910 = vpop.permute.xlu0 %1909
    %1911 = vrot.lane.b32.xlu0 %v1867, 15
    %v1912 = vpop.permute.xlu0 %1911
    %vm1915 = vcmask 121856
    %v1916 = vsel %vm1915, 0.0, %v1910
    %v1917 = vsel %vm1915, 0.0, %v1912
    %vm1918 = vmand %vm1878, %vm1908
    %v1919 = vsel %vm1918, 1, 0
    %vm1920 = vcmp.eq.s32.totalorder %v1919, 1
    %v1921 = vsel %vm1920, %v1916, 0.0
    %v1922 = vsel %vm1920, %v1917, 0.0
    %1923 = vrot.lane.b32.xlu0 %v1860, 1
    %v1924 = vpop.permute.xlu0 %1923
    %1925 = vrot.lane.b32.xlu0 %v1867, 1
    %v1926 = vpop.permute.xlu0 %1925
    %vm1929 = vcmask 7168
    %v1930 = vsel %vm1929, 0.0, %v1924
    %v1931 = vsel %vm1929, 0.0, %v1926
    %v1932 = vsel %vm1879, 1, 0
    %vm1933 = vcmp.eq.s32.totalorder %v1932, 1
    %v1934 = vsel %vm1933, %v1930, 0.0
    %v1935 = vsel %vm1933, %v1931, 0.0
    %1936 = vrot.lane.b32.xlu0 %v1860, 127
    %v1937 = vpop.permute.xlu0 %1936
    %1938 = vrot.lane.b32.xlu0 %v1867, 127
    %v1939 = vpop.permute.xlu0 %1938
    %vm1942 = vcmask 646144
    %v1943 = vsel %vm1942, %v1937, 0.0
    %v1944 = vsel %vm1942, %v1939, 0.0
    %v1945 = vsel %vm1908, 1, 0
    %vm1946 = vcmp.eq.s32.totalorder %v1945, 1
    %v1947 = vsel %vm1946, %v1943, 0.0
    %v1948 = vsel %vm1946, %v1944, 0.0
    %vm1949 = vcmp.lt.s32.totalorder %v1869, 64
    %1950 = vrot.lane.b32.xlu0 %v1860, 113
    %v1951 = vpop.permute.xlu0 %1950
    %1952 = vrot.lane.b32.xlu0 %v1867, 113
    %v1953 = vpop.permute.xlu0 %1952
    %vm1956 = vcmask 531456
    %v1957 = vsel %vm1956, %v1951, 0.0
    %v1958 = vsel %vm1956, %v1953, 0.0
    %vm1959 = vmand %vm1949, %vm1879
    %v1960 = vsel %vm1959, 1, 0
    %vm1961 = vcmp.eq.s32.totalorder %v1960, 1
    %v1962 = vsel %vm1961, %v1957, 0.0
    %v1963 = vsel %vm1961, %v1958, 0.0
    %1964 = vrot.lane.b32.xlu0 %v1860, 112
    %v1965 = vpop.permute.xlu0 %1964
    %1966 = vrot.lane.b32.xlu0 %v1867, 112
    %v1967 = vpop.permute.xlu0 %1966
    %v1970 = vsel %vm1788, %v1965, 0.0
    %v1971 = vsel %vm1788, %v1967, 0.0
    %v1972 = vsel %vm1949, 1, 0
    %vm1973 = vcmp.eq.s32.totalorder %v1972, 1
    %v1974 = vsel %vm1973, %v1970, 0.0
    %v1975 = vsel %vm1973, %v1971, 0.0
    %1976 = vrot.lane.b32.xlu0 %v1860, 111
    %v1977 = vpop.permute.xlu0 %1976
    %1978 = vrot.lane.b32.xlu0 %v1867, 111
    %v1979 = vpop.permute.xlu0 %1978
    %vm1982 = vcmask 515072
    %v1983 = vsel %vm1982, %v1977, 0.0
    %v1984 = vsel %vm1982, %v1979, 0.0
    %vm1985 = vmand %vm1949, %vm1908
    %v1986 = vsel %vm1985, 1, 0
    %vm1987 = vcmp.eq.s32.totalorder %v1986, 1
    %v1988 = vsel %vm1987, %v1983, 0.0
    %v1989 = vsel %vm1987, %v1984, 0.0
    %v1990 = vld [vmem:[%s15] sm:$0xff]
    %v1991 = vld [vmem:[%s15 + $0x8] sm:$0xff]
    %v1992 = vld [vmem:[%s15 + $0x10] sm:$0xff]
    %1994 = vset.pattern.permute.xlu0 0
    %1995 = vperm.xlu0 %1994, %v1990
    %v1996 = vpop.permute.xlu0 %1995
    %1999 = vset.pattern.permute.xlu0 0
    %2000 = vperm.xlu0 %1999, %v1991
    %v2001 = vpop.permute.xlu0 %2000
    %2004 = vset.pattern.permute.xlu0 0
    %2005 = vperm.xlu0 %2004, %v1992
    %v2006 = vpop.permute.xlu0 %2005
    %v2009 = vsel %vm1090, %v1873, 0
    %v2012 = vsel %vm1090, %v1875, 0
    %v2015 = vsel %vm1090, %v1877, 0
    %2017 = vmatprep.subr.mxu0 0.0
    %v2018 = vand.u32 %v1975, 4294901760
    %2019 = vmatpush1.msra.mxu0 %v2018
    %2020 = vmatprep.subr.mxu0 0.0
    %v2021 = vand.u32 %v1974, 4294901760
    %2022 = vmatpush1.msra.mxu0 %v2021
    %2023 = vmatprep.subr.mxu0 0.0
    %v2024 = vand.u32 %v1963, 4294901760
    %2025 = vmatpush1.msra.mxu0 %v2024
    %2026 = vmatprep.subr.mxu0 0.0
    %v2027 = vand.u32 %v1962, 4294901760
    %2028 = vmatpush1.msra.mxu0 %v2027
    %2029 = vmatprep.subr.mxu0 0.0
    %v2030 = vand.u32 %v1948, 4294901760
    %2031 = vmatpush1.msra.mxu0 %v2030
    %2032 = vmatprep.subr.mxu0 0.0
    %v2033 = vand.u32 %v1947, 4294901760
    %2034 = vmatpush1.msra.mxu0 %v2033
    %2035 = vmatprep.subr.mxu0 0.0
    %v2036 = vand.u32 %v1867, 4294901760
    %2037 = vmatpush1.msra.mxu0 %v2036
    %2038 = vmatprep.subr.mxu0 0.0
    %v2039 = vand.u32 %v1860, 4294901760
    %2040 = vmatpush1.msra.mxu0 %v2039
    %2041 = vmatprep.subr.mxu0 0.0
    %v2042 = vand.u32 %v1935, 4294901760
    %2043 = vmatpush1.msra.mxu0 %v2042
    %2044 = vmatprep.subr.mxu0 0.0
    %v2045 = vand.u32 %v1934, 4294901760
    %2046 = vmatpush1.msra.mxu0 %v2045
    %2047 = vmatprep.subr.mxu0 0.0
    %v2048 = vand.u32 %v1922, 4294901760
    %2049 = vmatpush1.msra.mxu0 %v2048
    %2050 = vmatprep.subr.mxu0 0.0
    %v2051 = vand.u32 %v1921, 4294901760
    %2052 = vmatpush1.msra.mxu0 %v2051
    %2053 = vmatprep.subr.mxu0 0.0
    %v2054 = vand.u32 %v1907, 4294901760
    %2055 = vmatpush1.msra.mxu0 %v2054
    %2056 = vmatprep.subr.mxu0 0.0
    %v2057 = vand.u32 %v1906, 4294901760
    %2058 = vmatpush1.msra.mxu0 %v2057
    %2059 = vmatprep.subr.mxu0 0.0
    %v2060 = vand.u32 %v1895, 4294901760
    %2061 = vmatpush1.msra.mxu0 %v2060
    %2062 = vmatprep.subr.mxu0 0.0
    %v2063 = vand.u32 %v1894, 4294901760
    %2064 = vmatpush1.msra.mxu0 %v2063
    %2065 = vmatprep.subr.mxu0 0.0
    %2066 = vmatpush2.msra.mxu0 0.0
    %2067 = vmatprep.subr.mxu0 0.0
    %2068 = vmatpush2.msra.mxu0 0.0
    %2069 = vmatprep.subr.mxu0 0.0
    %2070 = vmatpush2.msra.mxu0 0.0
    %2071 = vmatprep.subr.mxu0 0.0
    %2072 = vmatpush2.msra.mxu0 0.0
    %2073 = vmatprep.subr.mxu0 0.0
    %2074 = vmatpush2.msra.mxu0 0.0
    %2075 = vmatprep.subr.mxu0 0.0
    %2076 = vmatpush2.msra.mxu0 0.0
    %2077 = vmatprep.subr.mxu0 0.0
    %2078 = vmatpush2.msra.mxu0 0.0
    %2079 = vmatprep.subr.mxu0 0.0
    %2080 = vmatpush2.msra.mxu0 0.0
    %2081 = vmatprep.subr.mxu0 0.0
    %2082 = vmatpush2.msra.mxu0 0.0
    %2083 = vmatprep.subr.mxu0 0.0
    %2084 = vmatpush2.msra.mxu0 0.0
    %2085 = vmatprep.subr.mxu0 0.0
    %2086 = vmatpush2.msra.mxu0 0.0
    %2087 = vmatprep.subr.mxu0 0.0
    %2088 = vmatpush2.msra.mxu0 0.0
    %2089 = vmatprep.subr.mxu0 0.0
    %2090 = vmatpush2.msra.mxu0 0.0
    %2091 = vmatprep.subr.mxu0 0.0
    %2092 = vmatpush2.msra.mxu0 0.0
    %2093 = vmatprep.subr.mxu0 0.0
    %v2094 = vand.u32 %v1989, 4294901760
    %2095 = vmatpush2.msra.mxu0 %v2094
    %2096 = vmatprep.subr.mxu0 0.0
    %v2097 = vand.u32 %v1988, 4294901760
    %2098 = vmatpush2.msra.mxu0 %v2097
    %v2099 = vand.u32 %v2009, 4294901760
    %v2100 = vsub.f32 %v2009, %v2099
    %v2101 = vand.u32 %v2100, 4294901760
    %v2102 = vsub.f32 %v2100, %v2101
    %v2103 = vand.u32 %v2102, 4294901760
    %2104 = vmatprep.mubr.f32.mxu0 %v2103
    %v2105 = vand.u32 %v1872, 4294901760
    %v2106 = vsub.f32 %v1872, %v2105
    %v2107 = vand.u32 %v2106, 4294901760
    %v2108 = vsub.f32 %v2106, %v2107
    %v2109 = vand.u32 %v2108, 4294901760
    %2110 = vmatmul.mubr.f32.gmra.mxu0 %v2109
    %v2111 = vpop.f32.mrf.mxu0
    %v2112 = vadd.f32 %v1996, %v2111
    %v2113 = vpop.f32.mrf.mxu0
    %v2114 = vand.u32 %v2012, 4294901760
    %v2115 = vsub.f32 %v2012, %v2114
    %v2116 = vand.u32 %v2115, 4294901760
    %v2117 = vsub.f32 %v2115, %v2116
    %v2118 = vand.u32 %v2117, 4294901760
    %2119 = vmatprep.mubr.f32.mxu0 %v2118
    %v2120 = vand.u32 %v1874, 4294901760
    %v2121 = vsub.f32 %v1874, %v2120
    %v2122 = vand.u32 %v2121, 4294901760
    %v2123 = vsub.f32 %v2121, %v2122
    %v2124 = vand.u32 %v2123, 4294901760
    %2125 = vmatmul.mubr.f32.gmra.mxu0 %v2124
    %v2126 = vpop.f32.mrf.mxu0
    %v2127 = vadd.f32 %v2001, %v2126
    %v2128 = vpop.f32.mrf.mxu0
    %v2129 = vand.u32 %v2015, 4294901760
    %v2130 = vsub.f32 %v2015, %v2129
    %v2131 = vand.u32 %v2130, 4294901760
    %v2132 = vsub.f32 %v2130, %v2131
    %v2133 = vand.u32 %v2132, 4294901760
    %2134 = vmatprep.mubr.f32.mxu0 %v2133
    %v2135 = vand.u32 %v1876, 4294901760
    %v2136 = vsub.f32 %v1876, %v2135
    %v2137 = vand.u32 %v2136, 4294901760
    %v2138 = vsub.f32 %v2136, %v2137
    %v2139 = vand.u32 %v2138, 4294901760
    %2140 = vmatmul.mubr.f32.gmra.mxu0 %v2139
    %v2141 = vpop.f32.mrf.mxu0
    %v2142 = vadd.f32 %v2006, %v2141
    %v2143 = vpop.f32.mrf.mxu0
    %2144 = vdwg.mxu0
    %2145 = vmatprep.subr.mxu0 0.0
    %v2146 = vand.u32 %v1975, 4294901760
    %v2147 = vsub.f32 %v1975, %v2146
    %v2148 = vand.u32 %v2147, 4294901760
    %v2149 = vsub.f32 %v2147, %v2148
    %v2150 = vand.u32 %v2149, 4294901760
    %2151 = vmatpush1.msra.mxu0 %v2150
    %2152 = vmatprep.subr.mxu0 0.0
    %v2153 = vand.u32 %v1974, 4294901760
    %v2154 = vsub.f32 %v1974, %v2153
    %v2155 = vand.u32 %v2154, 4294901760
    %v2156 = vsub.f32 %v2154, %v2155
    %v2157 = vand.u32 %v2156, 4294901760
    %2158 = vmatpush1.msra.mxu0 %v2157
    %2159 = vmatprep.subr.mxu0 0.0
    %v2160 = vand.u32 %v1963, 4294901760
    %v2161 = vsub.f32 %v1963, %v2160
    %v2162 = vand.u32 %v2161, 4294901760
    %v2163 = vsub.f32 %v2161, %v2162
    %v2164 = vand.u32 %v2163, 4294901760
    %2165 = vmatpush1.msra.mxu0 %v2164
    %2166 = vmatprep.subr.mxu0 0.0
    %v2167 = vand.u32 %v1962, 4294901760
    %v2168 = vsub.f32 %v1962, %v2167
    %v2169 = vand.u32 %v2168, 4294901760
    %v2170 = vsub.f32 %v2168, %v2169
    %v2171 = vand.u32 %v2170, 4294901760
    %2172 = vmatpush1.msra.mxu0 %v2171
    %2173 = vmatprep.subr.mxu0 0.0
    %v2174 = vand.u32 %v1948, 4294901760
    %v2175 = vsub.f32 %v1948, %v2174
    %v2176 = vand.u32 %v2175, 4294901760
    %v2177 = vsub.f32 %v2175, %v2176
    %v2178 = vand.u32 %v2177, 4294901760
    %2179 = vmatpush1.msra.mxu0 %v2178
    %2180 = vmatprep.subr.mxu0 0.0
    %v2181 = vand.u32 %v1947, 4294901760
    %v2182 = vsub.f32 %v1947, %v2181
    %v2183 = vand.u32 %v2182, 4294901760
    %v2184 = vsub.f32 %v2182, %v2183
    %v2185 = vand.u32 %v2184, 4294901760
    %2186 = vmatpush1.msra.mxu0 %v2185
    %2187 = vmatprep.subr.mxu0 0.0
    %v2188 = vand.u32 %v1867, 4294901760
    %v2189 = vsub.f32 %v1867, %v2188
    %v2190 = vand.u32 %v2189, 4294901760
    %v2191 = vsub.f32 %v2189, %v2190
    %v2192 = vand.u32 %v2191, 4294901760
    %2193 = vmatpush1.msra.mxu0 %v2192
    %2194 = vmatprep.subr.mxu0 0.0
    %v2195 = vand.u32 %v1860, 4294901760
    %v2196 = vsub.f32 %v1860, %v2195
    %v2197 = vand.u32 %v2196, 4294901760
    %v2198 = vsub.f32 %v2196, %v2197
    %v2199 = vand.u32 %v2198, 4294901760
    %2200 = vmatpush1.msra.mxu0 %v2199
    %2201 = vmatprep.subr.mxu0 0.0
    %v2202 = vand.u32 %v1935, 4294901760
    %v2203 = vsub.f32 %v1935, %v2202
    %v2204 = vand.u32 %v2203, 4294901760
    %v2205 = vsub.f32 %v2203, %v2204
    %v2206 = vand.u32 %v2205, 4294901760
    %2207 = vmatpush1.msra.mxu0 %v2206
    %2208 = vmatprep.subr.mxu0 0.0
    %v2209 = vand.u32 %v1934, 4294901760
    %v2210 = vsub.f32 %v1934, %v2209
    %v2211 = vand.u32 %v2210, 4294901760
    %v2212 = vsub.f32 %v2210, %v2211
    %v2213 = vand.u32 %v2212, 4294901760
    %2214 = vmatpush1.msra.mxu0 %v2213
    %2215 = vmatprep.subr.mxu0 0.0
    %v2216 = vand.u32 %v1922, 4294901760
    %v2217 = vsub.f32 %v1922, %v2216
    %v2218 = vand.u32 %v2217, 4294901760
    %v2219 = vsub.f32 %v2217, %v2218
    %v2220 = vand.u32 %v2219, 4294901760
    %2221 = vmatpush1.msra.mxu0 %v2220
    %2222 = vmatprep.subr.mxu0 0.0
    %v2223 = vand.u32 %v1921, 4294901760
    %v2224 = vsub.f32 %v1921, %v2223
    %v2225 = vand.u32 %v2224, 4294901760
    %v2226 = vsub.f32 %v2224, %v2225
    %v2227 = vand.u32 %v2226, 4294901760
    %2228 = vmatpush1.msra.mxu0 %v2227
    %2229 = vmatprep.subr.mxu0 0.0
    %v2230 = vand.u32 %v1907, 4294901760
    %v2231 = vsub.f32 %v1907, %v2230
    %v2232 = vand.u32 %v2231, 4294901760
    %v2233 = vsub.f32 %v2231, %v2232
    %v2234 = vand.u32 %v2233, 4294901760
    %2235 = vmatpush1.msra.mxu0 %v2234
    %2236 = vmatprep.subr.mxu0 0.0
    %v2237 = vand.u32 %v1906, 4294901760
    %v2238 = vsub.f32 %v1906, %v2237
    %v2239 = vand.u32 %v2238, 4294901760
    %v2240 = vsub.f32 %v2238, %v2239
    %v2241 = vand.u32 %v2240, 4294901760
    %2242 = vmatpush1.msra.mxu0 %v2241
    %2243 = vmatprep.subr.mxu0 0.0
    %v2244 = vand.u32 %v1895, 4294901760
    %v2245 = vsub.f32 %v1895, %v2244
    %v2246 = vand.u32 %v2245, 4294901760
    %v2247 = vsub.f32 %v2245, %v2246
    %v2248 = vand.u32 %v2247, 4294901760
    %2249 = vmatpush1.msra.mxu0 %v2248
    %2250 = vmatprep.subr.mxu0 0.0
    %v2251 = vand.u32 %v1894, 4294901760
    %v2252 = vsub.f32 %v1894, %v2251
    %v2253 = vand.u32 %v2252, 4294901760
    %v2254 = vsub.f32 %v2252, %v2253
    %v2255 = vand.u32 %v2254, 4294901760
    %2256 = vmatpush1.msra.mxu0 %v2255
    %2257 = vmatprep.subr.mxu0 0.0
    %2258 = vmatpush2.msra.mxu0 0.0
    %2259 = vmatprep.subr.mxu0 0.0
    %2260 = vmatpush2.msra.mxu0 0.0
    %2261 = vmatprep.subr.mxu0 0.0
    %2262 = vmatpush2.msra.mxu0 0.0
    %2263 = vmatprep.subr.mxu0 0.0
    %2264 = vmatpush2.msra.mxu0 0.0
    %2265 = vmatprep.subr.mxu0 0.0
    %2266 = vmatpush2.msra.mxu0 0.0
    %2267 = vmatprep.subr.mxu0 0.0
    %2268 = vmatpush2.msra.mxu0 0.0
    %2269 = vmatprep.subr.mxu0 0.0
    %2270 = vmatpush2.msra.mxu0 0.0
    %2271 = vmatprep.subr.mxu0 0.0
    %2272 = vmatpush2.msra.mxu0 0.0
    %2273 = vmatprep.subr.mxu0 0.0
    %2274 = vmatpush2.msra.mxu0 0.0
    %2275 = vmatprep.subr.mxu0 0.0
    %2276 = vmatpush2.msra.mxu0 0.0
    %2277 = vmatprep.subr.mxu0 0.0
    %2278 = vmatpush2.msra.mxu0 0.0
    %2279 = vmatprep.subr.mxu0 0.0
    %2280 = vmatpush2.msra.mxu0 0.0
    %2281 = vmatprep.subr.mxu0 0.0
    %2282 = vmatpush2.msra.mxu0 0.0
    %2283 = vmatprep.subr.mxu0 0.0
    %2284 = vmatpush2.msra.mxu0 0.0
    %2285 = vmatprep.subr.mxu0 0.0
    %v2286 = vand.u32 %v1989, 4294901760
    %v2287 = vsub.f32 %v1989, %v2286
    %v2288 = vand.u32 %v2287, 4294901760
    %v2289 = vsub.f32 %v2287, %v2288
    %v2290 = vand.u32 %v2289, 4294901760
    %2291 = vmatpush2.msra.mxu0 %v2290
    %2292 = vmatprep.subr.mxu0 0.0
    %v2293 = vand.u32 %v1988, 4294901760
    %v2294 = vsub.f32 %v1988, %v2293
    %v2295 = vand.u32 %v2294, 4294901760
    %v2296 = vsub.f32 %v2294, %v2295
    %v2297 = vand.u32 %v2296, 4294901760
    %2298 = vmatpush2.msra.mxu0 %v2297
    %v2299 = vand.u32 %v2009, 4294901760
    %2300 = vmatprep.mubr.f32.mxu0 %v2299
    %v2301 = vand.u32 %v1872, 4294901760
    %2302 = vmatmul.mubr.f32.gmra.mxu0 %v2301
    %v2303 = vpop.f32.mrf.mxu0
    %v2304 = vadd.f32 %v2112, %v2303
    %v2305 = vpop.f32.mrf.mxu0
    %v2306 = vand.u32 %v2012, 4294901760
    %2307 = vmatprep.mubr.f32.mxu0 %v2306
    %v2308 = vand.u32 %v1874, 4294901760
    %2309 = vmatmul.mubr.f32.gmra.mxu0 %v2308
    %v2310 = vpop.f32.mrf.mxu0
    %v2311 = vadd.f32 %v2127, %v2310
    %v2312 = vpop.f32.mrf.mxu0
    %v2313 = vand.u32 %v2015, 4294901760
    %2314 = vmatprep.mubr.f32.mxu0 %v2313
    %v2315 = vand.u32 %v1876, 4294901760
    %2316 = vmatmul.mubr.f32.gmra.mxu0 %v2315
    %v2317 = vpop.f32.mrf.mxu0
    %v2318 = vadd.f32 %v2142, %v2317
    %v2319 = vpop.f32.mrf.mxu0
    %2320 = vdwg.mxu0
    %2321 = vmatprep.subr.mxu0 0.0
    %v2322 = vand.u32 %v1975, 4294901760
    %v2323 = vsub.f32 %v1975, %v2322
    %2324 = vmatpush1.msra.mxu0 %v2323
    %2325 = vmatprep.subr.mxu0 0.0
    %v2326 = vand.u32 %v1974, 4294901760
    %v2327 = vsub.f32 %v1974, %v2326
    %2328 = vmatpush1.msra.mxu0 %v2327
    %2329 = vmatprep.subr.mxu0 0.0
    %v2330 = vand.u32 %v1963, 4294901760
    %v2331 = vsub.f32 %v1963, %v2330
    %2332 = vmatpush1.msra.mxu0 %v2331
    %2333 = vmatprep.subr.mxu0 0.0
    %v2334 = vand.u32 %v1962, 4294901760
    %v2335 = vsub.f32 %v1962, %v2334
    %2336 = vmatpush1.msra.mxu0 %v2335
    %2337 = vmatprep.subr.mxu0 0.0
    %v2338 = vand.u32 %v1948, 4294901760
    %v2339 = vsub.f32 %v1948, %v2338
    %2340 = vmatpush1.msra.mxu0 %v2339
    %2341 = vmatprep.subr.mxu0 0.0
    %v2342 = vand.u32 %v1947, 4294901760
    %v2343 = vsub.f32 %v1947, %v2342
    %2344 = vmatpush1.msra.mxu0 %v2343
    %2345 = vmatprep.subr.mxu0 0.0
    %v2346 = vand.u32 %v1867, 4294901760
    %v2347 = vsub.f32 %v1867, %v2346
    %2348 = vmatpush1.msra.mxu0 %v2347
    %2349 = vmatprep.subr.mxu0 0.0
    %v2350 = vand.u32 %v1860, 4294901760
    %v2351 = vsub.f32 %v1860, %v2350
    %2352 = vmatpush1.msra.mxu0 %v2351
    %2353 = vmatprep.subr.mxu0 0.0
    %v2354 = vand.u32 %v1935, 4294901760
    %v2355 = vsub.f32 %v1935, %v2354
    %2356 = vmatpush1.msra.mxu0 %v2355
    %2357 = vmatprep.subr.mxu0 0.0
    %v2358 = vand.u32 %v1934, 4294901760
    %v2359 = vsub.f32 %v1934, %v2358
    %2360 = vmatpush1.msra.mxu0 %v2359
    %2361 = vmatprep.subr.mxu0 0.0
    %v2362 = vand.u32 %v1922, 4294901760
    %v2363 = vsub.f32 %v1922, %v2362
    %2364 = vmatpush1.msra.mxu0 %v2363
    %2365 = vmatprep.subr.mxu0 0.0
    %v2366 = vand.u32 %v1921, 4294901760
    %v2367 = vsub.f32 %v1921, %v2366
    %2368 = vmatpush1.msra.mxu0 %v2367
    %2369 = vmatprep.subr.mxu0 0.0
    %v2370 = vand.u32 %v1907, 4294901760
    %v2371 = vsub.f32 %v1907, %v2370
    %2372 = vmatpush1.msra.mxu0 %v2371
    %2373 = vmatprep.subr.mxu0 0.0
    %v2374 = vand.u32 %v1906, 4294901760
    %v2375 = vsub.f32 %v1906, %v2374
    %2376 = vmatpush1.msra.mxu0 %v2375
    %2377 = vmatprep.subr.mxu0 0.0
    %v2378 = vand.u32 %v1895, 4294901760
    %v2379 = vsub.f32 %v1895, %v2378
    %2380 = vmatpush1.msra.mxu0 %v2379
    %2381 = vmatprep.subr.mxu0 0.0
    %v2382 = vand.u32 %v1894, 4294901760
    %v2383 = vsub.f32 %v1894, %v2382
    %2384 = vmatpush1.msra.mxu0 %v2383
    %2385 = vmatprep.subr.mxu0 0.0
    %2386 = vmatpush2.msra.mxu0 0.0
    %2387 = vmatprep.subr.mxu0 0.0
    %2388 = vmatpush2.msra.mxu0 0.0
    %2389 = vmatprep.subr.mxu0 0.0
    %2390 = vmatpush2.msra.mxu0 0.0
    %2391 = vmatprep.subr.mxu0 0.0
    %2392 = vmatpush2.msra.mxu0 0.0
    %2393 = vmatprep.subr.mxu0 0.0
    %2394 = vmatpush2.msra.mxu0 0.0
    %2395 = vmatprep.subr.mxu0 0.0
    %2396 = vmatpush2.msra.mxu0 0.0
    %2397 = vmatprep.subr.mxu0 0.0
    %2398 = vmatpush2.msra.mxu0 0.0
    %2399 = vmatprep.subr.mxu0 0.0
    %2400 = vmatpush2.msra.mxu0 0.0
    %2401 = vmatprep.subr.mxu0 0.0
    %2402 = vmatpush2.msra.mxu0 0.0
    %2403 = vmatprep.subr.mxu0 0.0
    %2404 = vmatpush2.msra.mxu0 0.0
    %2405 = vmatprep.subr.mxu0 0.0
    %2406 = vmatpush2.msra.mxu0 0.0
    %2407 = vmatprep.subr.mxu0 0.0
    %2408 = vmatpush2.msra.mxu0 0.0
    %2409 = vmatprep.subr.mxu0 0.0
    %2410 = vmatpush2.msra.mxu0 0.0
    %2411 = vmatprep.subr.mxu0 0.0
    %2412 = vmatpush2.msra.mxu0 0.0
    %2413 = vmatprep.subr.mxu0 0.0
    %v2414 = vand.u32 %v1989, 4294901760
    %v2415 = vsub.f32 %v1989, %v2414
    %2416 = vmatpush2.msra.mxu0 %v2415
    %2417 = vmatprep.subr.mxu0 0.0
    %v2418 = vand.u32 %v1988, 4294901760
    %v2419 = vsub.f32 %v1988, %v2418
    %2420 = vmatpush2.msra.mxu0 %v2419
    %v2421 = vand.u32 %v2009, 4294901760
    %v2422 = vsub.f32 %v2009, %v2421
    %2423 = vmatprep.mubr.f32.mxu0 %v2422
    %v2424 = vand.u32 %v1872, 4294901760
    %v2425 = vsub.f32 %v1872, %v2424
    %2426 = vmatmul.mubr.f32.gmra.mxu0 %v2425
    %v2427 = vpop.f32.mrf.mxu0
    %v2428 = vadd.f32 %v2304, %v2427
    %v2429 = vpop.f32.mrf.mxu0
    %v2430 = vand.u32 %v2012, 4294901760
    %v2431 = vsub.f32 %v2012, %v2430
    %2432 = vmatprep.mubr.f32.mxu0 %v2431
    %v2433 = vand.u32 %v1874, 4294901760
    %v2434 = vsub.f32 %v1874, %v2433
    %2435 = vmatmul.mubr.f32.gmra.mxu0 %v2434
    %v2436 = vpop.f32.mrf.mxu0
    %v2437 = vadd.f32 %v2311, %v2436
    %v2438 = vpop.f32.mrf.mxu0
    %v2439 = vand.u32 %v2015, 4294901760
    %v2440 = vsub.f32 %v2015, %v2439
    %2441 = vmatprep.mubr.f32.mxu0 %v2440
    %v2442 = vand.u32 %v1876, 4294901760
    %v2443 = vsub.f32 %v1876, %v2442
    %2444 = vmatmul.mubr.f32.gmra.mxu0 %v2443
    %v2445 = vpop.f32.mrf.mxu0
    %v2446 = vadd.f32 %v2318, %v2445
    %v2447 = vpop.f32.mrf.mxu0
    %2448 = vdwg.mxu0
    %2449 = vmatprep.subr.mxu0 0.0
    %v2450 = vand.u32 %v1975, 4294901760
    %2451 = vmatpush1.msra.mxu0 %v2450
    %2452 = vmatprep.subr.mxu0 0.0
    %v2453 = vand.u32 %v1974, 4294901760
    %2454 = vmatpush1.msra.mxu0 %v2453
    %2455 = vmatprep.subr.mxu0 0.0
    %v2456 = vand.u32 %v1963, 4294901760
    %2457 = vmatpush1.msra.mxu0 %v2456
    %2458 = vmatprep.subr.mxu0 0.0
    %v2459 = vand.u32 %v1962, 4294901760
    %2460 = vmatpush1.msra.mxu0 %v2459
    %2461 = vmatprep.subr.mxu0 0.0
    %v2462 = vand.u32 %v1948, 4294901760
    %2463 = vmatpush1.msra.mxu0 %v2462
    %2464 = vmatprep.subr.mxu0 0.0
    %v2465 = vand.u32 %v1947, 4294901760
    %2466 = vmatpush1.msra.mxu0 %v2465
    %2467 = vmatprep.subr.mxu0 0.0
    %v2468 = vand.u32 %v1867, 4294901760
    %2469 = vmatpush1.msra.mxu0 %v2468
    %2470 = vmatprep.subr.mxu0 0.0
    %v2471 = vand.u32 %v1860, 4294901760
    %2472 = vmatpush1.msra.mxu0 %v2471
    %2473 = vmatprep.subr.mxu0 0.0
    %v2474 = vand.u32 %v1935, 4294901760
    %2475 = vmatpush1.msra.mxu0 %v2474
    %2476 = vmatprep.subr.mxu0 0.0
    %v2477 = vand.u32 %v1934, 4294901760
    %2478 = vmatpush1.msra.mxu0 %v2477
    %2479 = vmatprep.subr.mxu0 0.0
    %v2480 = vand.u32 %v1922, 4294901760
    %2481 = vmatpush1.msra.mxu0 %v2480
    %2482 = vmatprep.subr.mxu0 0.0
    %v2483 = vand.u32 %v1921, 4294901760
    %2484 = vmatpush1.msra.mxu0 %v2483
    %2485 = vmatprep.subr.mxu0 0.0
    %v2486 = vand.u32 %v1907, 4294901760
    %2487 = vmatpush1.msra.mxu0 %v2486
    %2488 = vmatprep.subr.mxu0 0.0
    %v2489 = vand.u32 %v1906, 4294901760
    %2490 = vmatpush1.msra.mxu0 %v2489
    %2491 = vmatprep.subr.mxu0 0.0
    %v2492 = vand.u32 %v1895, 4294901760
    %2493 = vmatpush1.msra.mxu0 %v2492
    %2494 = vmatprep.subr.mxu0 0.0
    %v2495 = vand.u32 %v1894, 4294901760
    %2496 = vmatpush1.msra.mxu0 %v2495
    %2497 = vmatprep.subr.mxu0 0.0
    %2498 = vmatpush2.msra.mxu0 0.0
    %2499 = vmatprep.subr.mxu0 0.0
    %2500 = vmatpush2.msra.mxu0 0.0
    %2501 = vmatprep.subr.mxu0 0.0
    %2502 = vmatpush2.msra.mxu0 0.0
    %2503 = vmatprep.subr.mxu0 0.0
    %2504 = vmatpush2.msra.mxu0 0.0
    %2505 = vmatprep.subr.mxu0 0.0
    %2506 = vmatpush2.msra.mxu0 0.0
    %2507 = vmatprep.subr.mxu0 0.0
    %2508 = vmatpush2.msra.mxu0 0.0
    %2509 = vmatprep.subr.mxu0 0.0
    %2510 = vmatpush2.msra.mxu0 0.0
    %2511 = vmatprep.subr.mxu0 0.0
    %2512 = vmatpush2.msra.mxu0 0.0
    %2513 = vmatprep.subr.mxu0 0.0
    %2514 = vmatpush2.msra.mxu0 0.0
    %2515 = vmatprep.subr.mxu0 0.0
    %2516 = vmatpush2.msra.mxu0 0.0
    %2517 = vmatprep.subr.mxu0 0.0
    %2518 = vmatpush2.msra.mxu0 0.0
    %2519 = vmatprep.subr.mxu0 0.0
    %2520 = vmatpush2.msra.mxu0 0.0
    %2521 = vmatprep.subr.mxu0 0.0
    %2522 = vmatpush2.msra.mxu0 0.0
    %2523 = vmatprep.subr.mxu0 0.0
    %2524 = vmatpush2.msra.mxu0 0.0
    %2525 = vmatprep.subr.mxu0 0.0
    %v2526 = vand.u32 %v1989, 4294901760
    %2527 = vmatpush2.msra.mxu0 %v2526
    %2528 = vmatprep.subr.mxu0 0.0
    %v2529 = vand.u32 %v1988, 4294901760
    %2530 = vmatpush2.msra.mxu0 %v2529
    %v2531 = vand.u32 %v2009, 4294901760
    %v2532 = vsub.f32 %v2009, %v2531
    %v2533 = vand.u32 %v2532, 4294901760
    %2534 = vmatprep.mubr.f32.mxu0 %v2533
    %v2535 = vand.u32 %v1872, 4294901760
    %v2536 = vsub.f32 %v1872, %v2535
    %v2537 = vand.u32 %v2536, 4294901760
    %2538 = vmatmul.mubr.f32.gmra.mxu0 %v2537
    %v2539 = vpop.f32.mrf.mxu0
    %v2540 = vadd.f32 %v2428, %v2539
    %v2541 = vpop.f32.mrf.mxu0
    %v2542 = vand.u32 %v2012, 4294901760
    %v2543 = vsub.f32 %v2012, %v2542
    %v2544 = vand.u32 %v2543, 4294901760
    %2545 = vmatprep.mubr.f32.mxu0 %v2544
    %v2546 = vand.u32 %v1874, 4294901760
    %v2547 = vsub.f32 %v1874, %v2546
    %v2548 = vand.u32 %v2547, 4294901760
    %2549 = vmatmul.mubr.f32.gmra.mxu0 %v2548
    %v2550 = vpop.f32.mrf.mxu0
    %v2551 = vadd.f32 %v2437, %v2550
    %v2552 = vpop.f32.mrf.mxu0
    %v2553 = vand.u32 %v2015, 4294901760
    %v2554 = vsub.f32 %v2015, %v2553
    %v2555 = vand.u32 %v2554, 4294901760
    %2556 = vmatprep.mubr.f32.mxu0 %v2555
    %v2557 = vand.u32 %v1876, 4294901760
    %v2558 = vsub.f32 %v1876, %v2557
    %v2559 = vand.u32 %v2558, 4294901760
    %2560 = vmatmul.mubr.f32.gmra.mxu0 %v2559
    %v2561 = vpop.f32.mrf.mxu0
    %v2562 = vadd.f32 %v2446, %v2561
    %v2563 = vpop.f32.mrf.mxu0
    %2564 = vdwg.mxu0
    %2565 = vmatprep.subr.mxu0 0.0
    %v2566 = vand.u32 %v1975, 4294901760
    %v2567 = vsub.f32 %v1975, %v2566
    %v2568 = vand.u32 %v2567, 4294901760
    %2569 = vmatpush1.msra.mxu0 %v2568
    %2570 = vmatprep.subr.mxu0 0.0
    %v2571 = vand.u32 %v1974, 4294901760
    %v2572 = vsub.f32 %v1974, %v2571
    %v2573 = vand.u32 %v2572, 4294901760
    %2574 = vmatpush1.msra.mxu0 %v2573
    %2575 = vmatprep.subr.mxu0 0.0
    %v2576 = vand.u32 %v1963, 4294901760
    %v2577 = vsub.f32 %v1963, %v2576
    %v2578 = vand.u32 %v2577, 4294901760
    %2579 = vmatpush1.msra.mxu0 %v2578
    %2580 = vmatprep.subr.mxu0 0.0
    %v2581 = vand.u32 %v1962, 4294901760
    %v2582 = vsub.f32 %v1962, %v2581
    %v2583 = vand.u32 %v2582, 4294901760
    %2584 = vmatpush1.msra.mxu0 %v2583
    %2585 = vmatprep.subr.mxu0 0.0
    %v2586 = vand.u32 %v1948, 4294901760
    %v2587 = vsub.f32 %v1948, %v2586
    %v2588 = vand.u32 %v2587, 4294901760
    %2589 = vmatpush1.msra.mxu0 %v2588
    %2590 = vmatprep.subr.mxu0 0.0
    %v2591 = vand.u32 %v1947, 4294901760
    %v2592 = vsub.f32 %v1947, %v2591
    %v2593 = vand.u32 %v2592, 4294901760
    %2594 = vmatpush1.msra.mxu0 %v2593
    %2595 = vmatprep.subr.mxu0 0.0
    %v2596 = vand.u32 %v1867, 4294901760
    %v2597 = vsub.f32 %v1867, %v2596
    %v2598 = vand.u32 %v2597, 4294901760
    %2599 = vmatpush1.msra.mxu0 %v2598
    %2600 = vmatprep.subr.mxu0 0.0
    %v2601 = vand.u32 %v1860, 4294901760
    %v2602 = vsub.f32 %v1860, %v2601
    %v2603 = vand.u32 %v2602, 4294901760
    %2604 = vmatpush1.msra.mxu0 %v2603
    %2605 = vmatprep.subr.mxu0 0.0
    %v2606 = vand.u32 %v1935, 4294901760
    %v2607 = vsub.f32 %v1935, %v2606
    %v2608 = vand.u32 %v2607, 4294901760
    %2609 = vmatpush1.msra.mxu0 %v2608
    %2610 = vmatprep.subr.mxu0 0.0
    %v2611 = vand.u32 %v1934, 4294901760
    %v2612 = vsub.f32 %v1934, %v2611
    %v2613 = vand.u32 %v2612, 4294901760
    %2614 = vmatpush1.msra.mxu0 %v2613
    %2615 = vmatprep.subr.mxu0 0.0
    %v2616 = vand.u32 %v1922, 4294901760
    %v2617 = vsub.f32 %v1922, %v2616
    %v2618 = vand.u32 %v2617, 4294901760
    %2619 = vmatpush1.msra.mxu0 %v2618
    %2620 = vmatprep.subr.mxu0 0.0
    %v2621 = vand.u32 %v1921, 4294901760
    %v2622 = vsub.f32 %v1921, %v2621
    %v2623 = vand.u32 %v2622, 4294901760
    %2624 = vmatpush1.msra.mxu0 %v2623
    %2625 = vmatprep.subr.mxu0 0.0
    %v2626 = vand.u32 %v1907, 4294901760
    %v2627 = vsub.f32 %v1907, %v2626
    %v2628 = vand.u32 %v2627, 4294901760
    %2629 = vmatpush1.msra.mxu0 %v2628
    %2630 = vmatprep.subr.mxu0 0.0
    %v2631 = vand.u32 %v1906, 4294901760
    %v2632 = vsub.f32 %v1906, %v2631
    %v2633 = vand.u32 %v2632, 4294901760
    %2634 = vmatpush1.msra.mxu0 %v2633
    %2635 = vmatprep.subr.mxu0 0.0
    %v2636 = vand.u32 %v1895, 4294901760
    %v2637 = vsub.f32 %v1895, %v2636
    %v2638 = vand.u32 %v2637, 4294901760
    %2639 = vmatpush1.msra.mxu0 %v2638
    %2640 = vmatprep.subr.mxu0 0.0
    %v2641 = vand.u32 %v1894, 4294901760
    %v2642 = vsub.f32 %v1894, %v2641
    %v2643 = vand.u32 %v2642, 4294901760
    %2644 = vmatpush1.msra.mxu0 %v2643
    %2645 = vmatprep.subr.mxu0 0.0
    %2646 = vmatpush2.msra.mxu0 0.0
    %2647 = vmatprep.subr.mxu0 0.0
    %2648 = vmatpush2.msra.mxu0 0.0
    %2649 = vmatprep.subr.mxu0 0.0
    %2650 = vmatpush2.msra.mxu0 0.0
    %2651 = vmatprep.subr.mxu0 0.0
    %2652 = vmatpush2.msra.mxu0 0.0
    %2653 = vmatprep.subr.mxu0 0.0
    %2654 = vmatpush2.msra.mxu0 0.0
    %2655 = vmatprep.subr.mxu0 0.0
    %2656 = vmatpush2.msra.mxu0 0.0
    %2657 = vmatprep.subr.mxu0 0.0
    %2658 = vmatpush2.msra.mxu0 0.0
    %2659 = vmatprep.subr.mxu0 0.0
    %2660 = vmatpush2.msra.mxu0 0.0
    %2661 = vmatprep.subr.mxu0 0.0
    %2662 = vmatpush2.msra.mxu0 0.0
    %2663 = vmatprep.subr.mxu0 0.0
    %2664 = vmatpush2.msra.mxu0 0.0
    %2665 = vmatprep.subr.mxu0 0.0
    %2666 = vmatpush2.msra.mxu0 0.0
    %2667 = vmatprep.subr.mxu0 0.0
    %2668 = vmatpush2.msra.mxu0 0.0
    %2669 = vmatprep.subr.mxu0 0.0
    %2670 = vmatpush2.msra.mxu0 0.0
    %2671 = vmatprep.subr.mxu0 0.0
    %2672 = vmatpush2.msra.mxu0 0.0
    %2673 = vmatprep.subr.mxu0 0.0
    %v2674 = vand.u32 %v1989, 4294901760
    %v2675 = vsub.f32 %v1989, %v2674
    %v2676 = vand.u32 %v2675, 4294901760
    %2677 = vmatpush2.msra.mxu0 %v2676
    %2678 = vmatprep.subr.mxu0 0.0
    %v2679 = vand.u32 %v1988, 4294901760
    %v2680 = vsub.f32 %v1988, %v2679
    %v2681 = vand.u32 %v2680, 4294901760
    %2682 = vmatpush2.msra.mxu0 %v2681
    %v2683 = vand.u32 %v2009, 4294901760
    %2684 = vmatprep.mubr.f32.mxu0 %v2683
    %v2685 = vand.u32 %v1872, 4294901760
    %2686 = vmatmul.mubr.f32.gmra.mxu0 %v2685
    %v2687 = vpop.f32.mrf.mxu0
    %v2688 = vadd.f32 %v2540, %v2687
    %v2689 = vpop.f32.mrf.mxu0
    %v2690 = vand.u32 %v2012, 4294901760
    %2691 = vmatprep.mubr.f32.mxu0 %v2690
    %v2692 = vand.u32 %v1874, 4294901760
    %2693 = vmatmul.mubr.f32.gmra.mxu0 %v2692
    %v2694 = vpop.f32.mrf.mxu0
    %v2695 = vadd.f32 %v2551, %v2694
    %v2696 = vpop.f32.mrf.mxu0
    %v2697 = vand.u32 %v2015, 4294901760
    %2698 = vmatprep.mubr.f32.mxu0 %v2697
    %v2699 = vand.u32 %v1876, 4294901760
    %2700 = vmatmul.mubr.f32.gmra.mxu0 %v2699
    %v2701 = vpop.f32.mrf.mxu0
    %v2702 = vadd.f32 %v2562, %v2701
    %v2703 = vpop.f32.mrf.mxu0
    %2704 = vdwg.mxu0
    %2705 = vmatprep.subr.mxu0 0.0
    %v2706 = vand.u32 %v1975, 4294901760
    %2707 = vmatpush1.msra.mxu0 %v2706
    %2708 = vmatprep.subr.mxu0 0.0
    %v2709 = vand.u32 %v1974, 4294901760
    %2710 = vmatpush1.msra.mxu0 %v2709
    %2711 = vmatprep.subr.mxu0 0.0
    %v2712 = vand.u32 %v1963, 4294901760
    %2713 = vmatpush1.msra.mxu0 %v2712
    %2714 = vmatprep.subr.mxu0 0.0
    %v2715 = vand.u32 %v1962, 4294901760
    %2716 = vmatpush1.msra.mxu0 %v2715
    %2717 = vmatprep.subr.mxu0 0.0
    %v2718 = vand.u32 %v1948, 4294901760
    %2719 = vmatpush1.msra.mxu0 %v2718
    %2720 = vmatprep.subr.mxu0 0.0
    %v2721 = vand.u32 %v1947, 4294901760
    %2722 = vmatpush1.msra.mxu0 %v2721
    %2723 = vmatprep.subr.mxu0 0.0
    %v2724 = vand.u32 %v1867, 4294901760
    %2725 = vmatpush1.msra.mxu0 %v2724
    %2726 = vmatprep.subr.mxu0 0.0
    %v2727 = vand.u32 %v1860, 4294901760
    %2728 = vmatpush1.msra.mxu0 %v2727
    %2729 = vmatprep.subr.mxu0 0.0
    %v2730 = vand.u32 %v1935, 4294901760
    %2731 = vmatpush1.msra.mxu0 %v2730
    %2732 = vmatprep.subr.mxu0 0.0
    %v2733 = vand.u32 %v1934, 4294901760
    %2734 = vmatpush1.msra.mxu0 %v2733
    %2735 = vmatprep.subr.mxu0 0.0
    %v2736 = vand.u32 %v1922, 4294901760
    %2737 = vmatpush1.msra.mxu0 %v2736
    %2738 = vmatprep.subr.mxu0 0.0
    %v2739 = vand.u32 %v1921, 4294901760
    %2740 = vmatpush1.msra.mxu0 %v2739
    %2741 = vmatprep.subr.mxu0 0.0
    %v2742 = vand.u32 %v1907, 4294901760
    %2743 = vmatpush1.msra.mxu0 %v2742
    %2744 = vmatprep.subr.mxu0 0.0
    %v2745 = vand.u32 %v1906, 4294901760
    %2746 = vmatpush1.msra.mxu0 %v2745
    %2747 = vmatprep.subr.mxu0 0.0
    %v2748 = vand.u32 %v1895, 4294901760
    %2749 = vmatpush1.msra.mxu0 %v2748
    %2750 = vmatprep.subr.mxu0 0.0
    %v2751 = vand.u32 %v1894, 4294901760
    %2752 = vmatpush1.msra.mxu0 %v2751
    %2753 = vmatprep.subr.mxu0 0.0
    %2754 = vmatpush2.msra.mxu0 0.0
    %2755 = vmatprep.subr.mxu0 0.0
    %2756 = vmatpush2.msra.mxu0 0.0
    %2757 = vmatprep.subr.mxu0 0.0
    %2758 = vmatpush2.msra.mxu0 0.0
    %2759 = vmatprep.subr.mxu0 0.0
    %2760 = vmatpush2.msra.mxu0 0.0
    %2761 = vmatprep.subr.mxu0 0.0
    %2762 = vmatpush2.msra.mxu0 0.0
    %2763 = vmatprep.subr.mxu0 0.0
    %2764 = vmatpush2.msra.mxu0 0.0
    %2765 = vmatprep.subr.mxu0 0.0
    %2766 = vmatpush2.msra.mxu0 0.0
    %2767 = vmatprep.subr.mxu0 0.0
    %2768 = vmatpush2.msra.mxu0 0.0
    %2769 = vmatprep.subr.mxu0 0.0
    %2770 = vmatpush2.msra.mxu0 0.0
    %2771 = vmatprep.subr.mxu0 0.0
    %2772 = vmatpush2.msra.mxu0 0.0
    %2773 = vmatprep.subr.mxu0 0.0
    %2774 = vmatpush2.msra.mxu0 0.0
    %2775 = vmatprep.subr.mxu0 0.0
    %2776 = vmatpush2.msra.mxu0 0.0
    %2777 = vmatprep.subr.mxu0 0.0
    %2778 = vmatpush2.msra.mxu0 0.0
    %2779 = vmatprep.subr.mxu0 0.0
    %2780 = vmatpush2.msra.mxu0 0.0
    %2781 = vmatprep.subr.mxu0 0.0
    %v2782 = vand.u32 %v1989, 4294901760
    %2783 = vmatpush2.msra.mxu0 %v2782
    %2784 = vmatprep.subr.mxu0 0.0
    %v2785 = vand.u32 %v1988, 4294901760
    %2786 = vmatpush2.msra.mxu0 %v2785
    %v2787 = vand.u32 %v2009, 4294901760
    %2788 = vmatprep.mubr.f32.mxu0 %v2787
    %v2789 = vand.u32 %v1872, 4294901760
    %2790 = vmatmul.mubr.f32.gmra.mxu0 %v2789
    %v2791 = vpop.f32.mrf.mxu0
    %v2792 = vadd.f32 %v2688, %v2791
    %v2793 = vpop.f32.mrf.mxu0
    %v2794 = vand.u32 %v2012, 4294901760
    %2795 = vmatprep.mubr.f32.mxu0 %v2794
    %v2796 = vand.u32 %v1874, 4294901760
    %2797 = vmatmul.mubr.f32.gmra.mxu0 %v2796
    %v2798 = vpop.f32.mrf.mxu0
    %v2799 = vadd.f32 %v2695, %v2798
    %v2800 = vpop.f32.mrf.mxu0
    %v2801 = vand.u32 %v2015, 4294901760
    %2802 = vmatprep.mubr.f32.mxu0 %v2801
    %v2803 = vand.u32 %v1876, 4294901760
    %2804 = vmatmul.mubr.f32.gmra.mxu0 %v2803
    %v2805 = vpop.f32.mrf.mxu0
    %v2806 = vadd.f32 %v2702, %v2805
    %v2807 = vpop.f32.mrf.mxu0
    %2808 = vdwg.mxu0
    %vm2809 = vcmp.ge.f32.partialorder %v2792, 0.0
    %vm2810 = vcmp.ge.f32.partialorder %v2799, 0.0
    %vm2811 = vcmp.ge.f32.partialorder %v2806, 0.0
    %v2812 = vstv %s1871
    %v2813 = vmul.f32 %v2812, %v2792
    %v2814 = vmul.f32 %v2812, %v2799
    %v2815 = vmul.f32 %v2812, %v2806
    %v2816 = vsel %vm2809, %v2792, %v2813
    %v2817 = vsel %vm2810, %v2799, %v2814
    %v2818 = vsel %vm2811, %v2806, %v2815
    %v2819 = vld [vmem:[%s16] sm:$0xff]
    %v2820 = vld [vmem:[%s16 + $0x8] sm:$0xff]
    %v2821 = vld [vmem:[%s16 + $0x10] sm:$0xff]
    %v2822 = vld [vmem:[%s16 + $0x18] sm:$0xff]
    %v2823 = vld [vmem:[%s16 + $0x20] sm:$0xff]
    %v2824 = vld [vmem:[%s16 + $0x28] sm:$0xff]
    %2828 = vrot.lane.b32.xlu0 %v2816, 17
    %v2829 = vpop.permute.xlu0 %2828
    %2830 = vrot.lane.b32.xlu0 %v2817, 17
    %v2831 = vpop.permute.xlu0 %2830
    %2832 = vrot.lane.b32.xlu0 %v2818, 17
    %v2833 = vpop.permute.xlu0 %2832
    %v2837 = vsel %vm1888, 0.0, %v2829
    %v2838 = vsel %vm1888, 0.0, %v2831
    %v2839 = vsel %vm1888, 0.0, %v2833
    %v2840 = vsel %vm1893, %v2837, 0.0
    %v2841 = vsel %vm1893, %v2838, 0.0
    %v2842 = vsel %vm1893, %v2839, 0.0
    %2843 = vrot.lane.b32.xlu0 %v2816, 16
    %v2844 = vpop.permute.xlu0 %2843
    %2845 = vrot.lane.b32.xlu0 %v2817, 16
    %v2846 = vpop.permute.xlu0 %2845
    %2847 = vrot.lane.b32.xlu0 %v2818, 16
    %v2848 = vpop.permute.xlu0 %2847
    %v2852 = vsel %vm1090, 0.0, %v2844
    %v2853 = vsel %vm1090, 0.0, %v2846
    %v2854 = vsel %vm1090, 0.0, %v2848
    %v2855 = vsel %vm1905, %v2852, 0.0
    %v2856 = vsel %vm1905, %v2853, 0.0
    %v2857 = vsel %vm1905, %v2854, 0.0
    %2858 = vrot.lane.b32.xlu0 %v2816, 15
    %v2859 = vpop.permute.xlu0 %2858
    %2860 = vrot.lane.b32.xlu0 %v2817, 15
    %v2861 = vpop.permute.xlu0 %2860
    %2862 = vrot.lane.b32.xlu0 %v2818, 15
    %v2863 = vpop.permute.xlu0 %2862
    %v2867 = vsel %vm1915, 0.0, %v2859
    %v2868 = vsel %vm1915, 0.0, %v2861
    %v2869 = vsel %vm1915, 0.0, %v2863
    %v2870 = vsel %vm1920, %v2867, 0.0
    %v2871 = vsel %vm1920, %v2868, 0.0
    %v2872 = vsel %vm1920, %v2869, 0.0
    %2873 = vrot.lane.b32.xlu0 %v2816, 1
    %v2874 = vpop.permute.xlu0 %2873
    %2875 = vrot.lane.b32.xlu0 %v2817, 1
    %v2876 = vpop.permute.xlu0 %2875
    %2877 = vrot.lane.b32.xlu0 %v2818, 1
    %v2878 = vpop.permute.xlu0 %2877
    %v2882 = vsel %vm1929, 0.0, %v2874
    %v2883 = vsel %vm1929, 0.0, %v2876
    %v2884 = vsel %vm1929, 0.0, %v2878
    %v2885 = vsel %vm1933, %v2882, 0.0
    %v2886 = vsel %vm1933, %v2883, 0.0
    %v2887 = vsel %vm1933, %v2884, 0.0
    %2888 = vrot.lane.b32.xlu0 %v2816, 127
    %v2889 = vpop.permute.xlu0 %2888
    %2890 = vrot.lane.b32.xlu0 %v2817, 127
    %v2891 = vpop.permute.xlu0 %2890
    %2892 = vrot.lane.b32.xlu0 %v2818, 127
    %v2893 = vpop.permute.xlu0 %2892
    %v2897 = vsel %vm1942, %v2889, 0.0
    %v2898 = vsel %vm1942, %v2891, 0.0
    %v2899 = vsel %vm1942, %v2893, 0.0
    %v2900 = vsel %vm1946, %v2897, 0.0
    %v2901 = vsel %vm1946, %v2898, 0.0
    %v2902 = vsel %vm1946, %v2899, 0.0
    %2903 = vrot.lane.b32.xlu0 %v2816, 113
    %v2904 = vpop.permute.xlu0 %2903
    %2905 = vrot.lane.b32.xlu0 %v2817, 113
    %v2906 = vpop.permute.xlu0 %2905
    %2907 = vrot.lane.b32.xlu0 %v2818, 113
    %v2908 = vpop.permute.xlu0 %2907
    %v2912 = vsel %vm1956, %v2904, 0.0
    %v2913 = vsel %vm1956, %v2906, 0.0
    %v2914 = vsel %vm1956, %v2908, 0.0
    %v2915 = vsel %vm1961, %v2912, 0.0
    %v2916 = vsel %vm1961, %v2913, 0.0
    %v2917 = vsel %vm1961, %v2914, 0.0
    %2918 = vrot.lane.b32.xlu0 %v2816, 112
    %v2919 = vpop.permute.xlu0 %2918
    %2920 = vrot.lane.b32.xlu0 %v2817, 112
    %v2921 = vpop.permute.xlu0 %2920
    %2922 = vrot.lane.b32.xlu0 %v2818, 112
    %v2923 = vpop.permute.xlu0 %2922
    %v2927 = vsel %vm1788, %v2919, 0.0
    %v2928 = vsel %vm1788, %v2921, 0.0
    %v2929 = vsel %vm1788, %v2923, 0.0
    %v2930 = vsel %vm1973, %v2927, 0.0
    %v2931 = vsel %vm1973, %v2928, 0.0
    %v2932 = vsel %vm1973, %v2929, 0.0
    %2933 = vrot.lane.b32.xlu0 %v2816, 111
    %v2934 = vpop.permute.xlu0 %2933
    %2935 = vrot.lane.b32.xlu0 %v2817, 111
    %v2936 = vpop.permute.xlu0 %2935
    %2937 = vrot.lane.b32.xlu0 %v2818, 111
    %v2938 = vpop.permute.xlu0 %2937
    %v2942 = vsel %vm1982, %v2934, 0.0
    %v2943 = vsel %vm1982, %v2936, 0.0
    %v2944 = vsel %vm1982, %v2938, 0.0
    %v2945 = vsel %vm1987, %v2942, 0.0
    %v2946 = vsel %vm1987, %v2943, 0.0
    %v2947 = vsel %vm1987, %v2944, 0.0
    %v2948 = vld [vmem:[%s17] sm:$0xff]
    %v2949 = vld [vmem:[%s17 + $0x8] sm:$0xff]
    %v2950 = vld [vmem:[%s17 + $0x10] sm:$0xff]
    %2952 = vset.pattern.permute.xlu0 0
    %2953 = vperm.xlu0 %2952, %v2948
    %v2954 = vpop.permute.xlu0 %2953
    %2957 = vset.pattern.permute.xlu0 0
    %2958 = vperm.xlu0 %2957, %v2949
    %v2959 = vpop.permute.xlu0 %2958
    %2962 = vset.pattern.permute.xlu0 0
    %2963 = vperm.xlu0 %2962, %v2950
    %v2964 = vpop.permute.xlu0 %2963
    %vm2966 = vcmask 719872
    %v2968 = vsel %vm2966, %v2820, 0
    %v2971 = vsel %vm2966, %v2822, 0
    %v2974 = vsel %vm2966, %v2824, 0
    %2976 = vmatprep.subr.mxu0 0.0
    %v2977 = vand.u32 %v2900, 4294901760
    %2978 = vmatpush1.msra.mxu0 %v2977
    %2979 = vmatprep.subr.mxu0 0.0
    %v2980 = vand.u32 %v2818, 4294901760
    %2981 = vmatpush1.msra.mxu0 %v2980
    %2982 = vmatprep.subr.mxu0 0.0
    %v2983 = vand.u32 %v2817, 4294901760
    %2984 = vmatpush1.msra.mxu0 %v2983
    %2985 = vmatprep.subr.mxu0 0.0
    %v2986 = vand.u32 %v2816, 4294901760
    %2987 = vmatpush1.msra.mxu0 %v2986
    %2988 = vmatprep.subr.mxu0 0.0
    %v2989 = vand.u32 %v2887, 4294901760
    %2990 = vmatpush1.msra.mxu0 %v2989
    %2991 = vmatprep.subr.mxu0 0.0
    %v2992 = vand.u32 %v2886, 4294901760
    %2993 = vmatpush1.msra.mxu0 %v2992
    %2994 = vmatprep.subr.mxu0 0.0
    %v2995 = vand.u32 %v2885, 4294901760
    %2996 = vmatpush1.msra.mxu0 %v2995
    %2997 = vmatprep.subr.mxu0 0.0
    %v2998 = vand.u32 %v2872, 4294901760
    %2999 = vmatpush1.msra.mxu0 %v2998
    %3000 = vmatprep.subr.mxu0 0.0
    %v3001 = vand.u32 %v2871, 4294901760
    %3002 = vmatpush1.msra.mxu0 %v3001
    %3003 = vmatprep.subr.mxu0 0.0
    %v3004 = vand.u32 %v2870, 4294901760
    %3005 = vmatpush1.msra.mxu0 %v3004
    %3006 = vmatprep.subr.mxu0 0.0
    %v3007 = vand.u32 %v2857, 4294901760
    %3008 = vmatpush1.msra.mxu0 %v3007
    %3009 = vmatprep.subr.mxu0 0.0
    %v3010 = vand.u32 %v2856, 4294901760
    %3011 = vmatpush1.msra.mxu0 %v3010
    %3012 = vmatprep.subr.mxu0 0.0
    %v3013 = vand.u32 %v2855, 4294901760
    %3014 = vmatpush1.msra.mxu0 %v3013
    %3015 = vmatprep.subr.mxu0 0.0
    %v3016 = vand.u32 %v2842, 4294901760
    %3017 = vmatpush1.msra.mxu0 %v3016
    %3018 = vmatprep.subr.mxu0 0.0
    %v3019 = vand.u32 %v2841, 4294901760
    %3020 = vmatpush1.msra.mxu0 %v3019
    %3021 = vmatprep.subr.mxu0 0.0
    %v3022 = vand.u32 %v2840, 4294901760
    %3023 = vmatpush1.msra.mxu0 %v3022
    %3024 = vmatprep.subr.mxu0 0.0
    %3025 = vmatpush2.msra.mxu0 0.0
    %3026 = vmatprep.subr.mxu0 0.0
    %3027 = vmatpush2.msra.mxu0 0.0
    %3028 = vmatprep.subr.mxu0 0.0
    %3029 = vmatpush2.msra.mxu0 0.0
    %3030 = vmatprep.subr.mxu0 0.0
    %3031 = vmatpush2.msra.mxu0 0.0
    %3032 = vmatprep.subr.mxu0 0.0
    %3033 = vmatpush2.msra.mxu0 0.0
    %3034 = vmatprep.subr.mxu0 0.0
    %v3035 = vand.u32 %v2947, 4294901760
    %3036 = vmatpush2.msra.mxu0 %v3035
    %3037 = vmatprep.subr.mxu0 0.0
    %v3038 = vand.u32 %v2946, 4294901760
    %3039 = vmatpush2.msra.mxu0 %v3038
    %3040 = vmatprep.subr.mxu0 0.0
    %v3041 = vand.u32 %v2945, 4294901760
    %3042 = vmatpush2.msra.mxu0 %v3041
    %3043 = vmatprep.subr.mxu0 0.0
    %v3044 = vand.u32 %v2932, 4294901760
    %3045 = vmatpush2.msra.mxu0 %v3044
    %3046 = vmatprep.subr.mxu0 0.0
    %v3047 = vand.u32 %v2931, 4294901760
    %3048 = vmatpush2.msra.mxu0 %v3047
    %3049 = vmatprep.subr.mxu0 0.0
    %v3050 = vand.u32 %v2930, 4294901760
    %3051 = vmatpush2.msra.mxu0 %v3050
    %3052 = vmatprep.subr.mxu0 0.0
    %v3053 = vand.u32 %v2917, 4294901760
    %3054 = vmatpush2.msra.mxu0 %v3053
    %3055 = vmatprep.subr.mxu0 0.0
    %v3056 = vand.u32 %v2916, 4294901760
    %3057 = vmatpush2.msra.mxu0 %v3056
    %3058 = vmatprep.subr.mxu0 0.0
    %v3059 = vand.u32 %v2915, 4294901760
    %3060 = vmatpush2.msra.mxu0 %v3059
    %3061 = vmatprep.subr.mxu0 0.0
    %v3062 = vand.u32 %v2902, 4294901760
    %3063 = vmatpush2.msra.mxu0 %v3062
    %3064 = vmatprep.subr.mxu0 0.0
    %v3065 = vand.u32 %v2901, 4294901760
    %3066 = vmatpush2.msra.mxu0 %v3065
    %v3067 = vand.u32 %v2968, 4294901760
    %v3068 = vsub.f32 %v2968, %v3067
    %v3069 = vand.u32 %v3068, 4294901760
    %v3070 = vsub.f32 %v3068, %v3069
    %v3071 = vand.u32 %v3070, 4294901760
    %3072 = vmatprep.mubr.f32.mxu0 %v3071
    %v3073 = vand.u32 %v2819, 4294901760
    %v3074 = vsub.f32 %v2819, %v3073
    %v3075 = vand.u32 %v3074, 4294901760
    %v3076 = vsub.f32 %v3074, %v3075
    %v3077 = vand.u32 %v3076, 4294901760
    %3078 = vmatmul.mubr.f32.gmra.mxu0 %v3077
    %v3079 = vpop.f32.mrf.mxu0
    %v3080 = vadd.f32 %v2954, %v3079
    %v3081 = vpop.f32.mrf.mxu0
    %v3082 = vand.u32 %v2971, 4294901760
    %v3083 = vsub.f32 %v2971, %v3082
    %v3084 = vand.u32 %v3083, 4294901760
    %v3085 = vsub.f32 %v3083, %v3084
    %v3086 = vand.u32 %v3085, 4294901760
    %3087 = vmatprep.mubr.f32.mxu0 %v3086
    %v3088 = vand.u32 %v2821, 4294901760
    %v3089 = vsub.f32 %v2821, %v3088
    %v3090 = vand.u32 %v3089, 4294901760
    %v3091 = vsub.f32 %v3089, %v3090
    %v3092 = vand.u32 %v3091, 4294901760
    %3093 = vmatmul.mubr.f32.gmra.mxu0 %v3092
    %v3094 = vpop.f32.mrf.mxu0
    %v3095 = vadd.f32 %v2959, %v3094
    %v3096 = vpop.f32.mrf.mxu0
    %v3097 = vand.u32 %v2974, 4294901760
    %v3098 = vsub.f32 %v2974, %v3097
    %v3099 = vand.u32 %v3098, 4294901760
    %v3100 = vsub.f32 %v3098, %v3099
    %v3101 = vand.u32 %v3100, 4294901760
    %3102 = vmatprep.mubr.f32.mxu0 %v3101
    %v3103 = vand.u32 %v2823, 4294901760
    %v3104 = vsub.f32 %v2823, %v3103
    %v3105 = vand.u32 %v3104, 4294901760
    %v3106 = vsub.f32 %v3104, %v3105
    %v3107 = vand.u32 %v3106, 4294901760
    %3108 = vmatmul.mubr.f32.gmra.mxu0 %v3107
    %v3109 = vpop.f32.mrf.mxu0
    %v3110 = vadd.f32 %v2964, %v3109
    %v3111 = vpop.f32.mrf.mxu0
    %3112 = vdwg.mxu0
    %3113 = vmatprep.subr.mxu0 0.0
    %v3114 = vand.u32 %v2900, 4294901760
    %v3115 = vsub.f32 %v2900, %v3114
    %v3116 = vand.u32 %v3115, 4294901760
    %v3117 = vsub.f32 %v3115, %v3116
    %v3118 = vand.u32 %v3117, 4294901760
    %3119 = vmatpush1.msra.mxu0 %v3118
    %3120 = vmatprep.subr.mxu0 0.0
    %v3121 = vand.u32 %v2818, 4294901760
    %v3122 = vsub.f32 %v2818, %v3121
    %v3123 = vand.u32 %v3122, 4294901760
    %v3124 = vsub.f32 %v3122, %v3123
    %v3125 = vand.u32 %v3124, 4294901760
    %3126 = vmatpush1.msra.mxu0 %v3125
    %3127 = vmatprep.subr.mxu0 0.0
    %v3128 = vand.u32 %v2817, 4294901760
    %v3129 = vsub.f32 %v2817, %v3128
    %v3130 = vand.u32 %v3129, 4294901760
    %v3131 = vsub.f32 %v3129, %v3130
    %v3132 = vand.u32 %v3131, 4294901760
    %3133 = vmatpush1.msra.mxu0 %v3132
    %3134 = vmatprep.subr.mxu0 0.0
    %v3135 = vand.u32 %v2816, 4294901760
    %v3136 = vsub.f32 %v2816, %v3135
    %v3137 = vand.u32 %v3136, 4294901760
    %v3138 = vsub.f32 %v3136, %v3137
    %v3139 = vand.u32 %v3138, 4294901760
    %3140 = vmatpush1.msra.mxu0 %v3139
    %3141 = vmatprep.subr.mxu0 0.0
    %v3142 = vand.u32 %v2887, 4294901760
    %v3143 = vsub.f32 %v2887, %v3142
    %v3144 = vand.u32 %v3143, 4294901760
    %v3145 = vsub.f32 %v3143, %v3144
    %v3146 = vand.u32 %v3145, 4294901760
    %3147 = vmatpush1.msra.mxu0 %v3146
    %3148 = vmatprep.subr.mxu0 0.0
    %v3149 = vand.u32 %v2886, 4294901760
    %v3150 = vsub.f32 %v2886, %v3149
    %v3151 = vand.u32 %v3150, 4294901760
    %v3152 = vsub.f32 %v3150, %v3151
    %v3153 = vand.u32 %v3152, 4294901760
    %3154 = vmatpush1.msra.mxu0 %v3153
    %3155 = vmatprep.subr.mxu0 0.0
    %v3156 = vand.u32 %v2885, 4294901760
    %v3157 = vsub.f32 %v2885, %v3156
    %v3158 = vand.u32 %v3157, 4294901760
    %v3159 = vsub.f32 %v3157, %v3158
    %v3160 = vand.u32 %v3159, 4294901760
    %3161 = vmatpush1.msra.mxu0 %v3160
    %3162 = vmatprep.subr.mxu0 0.0
    %v3163 = vand.u32 %v2872, 4294901760
    %v3164 = vsub.f32 %v2872, %v3163
    %v3165 = vand.u32 %v3164, 4294901760
    %v3166 = vsub.f32 %v3164, %v3165
    %v3167 = vand.u32 %v3166, 4294901760
    %3168 = vmatpush1.msra.mxu0 %v3167
    %3169 = vmatprep.subr.mxu0 0.0
    %v3170 = vand.u32 %v2871, 4294901760
    %v3171 = vsub.f32 %v2871, %v3170
    %v3172 = vand.u32 %v3171, 4294901760
    %v3173 = vsub.f32 %v3171, %v3172
    %v3174 = vand.u32 %v3173, 4294901760
    %3175 = vmatpush1.msra.mxu0 %v3174
    %3176 = vmatprep.subr.mxu0 0.0
    %v3177 = vand.u32 %v2870, 4294901760
    %v3178 = vsub.f32 %v2870, %v3177
    %v3179 = vand.u32 %v3178, 4294901760
    %v3180 = vsub.f32 %v3178, %v3179
    %v3181 = vand.u32 %v3180, 4294901760
    %3182 = vmatpush1.msra.mxu0 %v3181
    %3183 = vmatprep.subr.mxu0 0.0
    %v3184 = vand.u32 %v2857, 4294901760
    %v3185 = vsub.f32 %v2857, %v3184
    %v3186 = vand.u32 %v3185, 4294901760
    %v3187 = vsub.f32 %v3185, %v3186
    %v3188 = vand.u32 %v3187, 4294901760
    %3189 = vmatpush1.msra.mxu0 %v3188
    %3190 = vmatprep.subr.mxu0 0.0
    %v3191 = vand.u32 %v2856, 4294901760
    %v3192 = vsub.f32 %v2856, %v3191
    %v3193 = vand.u32 %v3192, 4294901760
    %v3194 = vsub.f32 %v3192, %v3193
    %v3195 = vand.u32 %v3194, 4294901760
    %3196 = vmatpush1.msra.mxu0 %v3195
    %3197 = vmatprep.subr.mxu0 0.0
    %v3198 = vand.u32 %v2855, 4294901760
    %v3199 = vsub.f32 %v2855, %v3198
    %v3200 = vand.u32 %v3199, 4294901760
    %v3201 = vsub.f32 %v3199, %v3200
    %v3202 = vand.u32 %v3201, 4294901760
    %3203 = vmatpush1.msra.mxu0 %v3202
    %3204 = vmatprep.subr.mxu0 0.0
    %v3205 = vand.u32 %v2842, 4294901760
    %v3206 = vsub.f32 %v2842, %v3205
    %v3207 = vand.u32 %v3206, 4294901760
    %v3208 = vsub.f32 %v3206, %v3207
    %v3209 = vand.u32 %v3208, 4294901760
    %3210 = vmatpush1.msra.mxu0 %v3209
    %3211 = vmatprep.subr.mxu0 0.0
    %v3212 = vand.u32 %v2841, 4294901760
    %v3213 = vsub.f32 %v2841, %v3212
    %v3214 = vand.u32 %v3213, 4294901760
    %v3215 = vsub.f32 %v3213, %v3214
    %v3216 = vand.u32 %v3215, 4294901760
    %3217 = vmatpush1.msra.mxu0 %v3216
    %3218 = vmatprep.subr.mxu0 0.0
    %v3219 = vand.u32 %v2840, 4294901760
    %v3220 = vsub.f32 %v2840, %v3219
    %v3221 = vand.u32 %v3220, 4294901760
    %v3222 = vsub.f32 %v3220, %v3221
    %v3223 = vand.u32 %v3222, 4294901760
    %3224 = vmatpush1.msra.mxu0 %v3223
    %3225 = vmatprep.subr.mxu0 0.0
    %3226 = vmatpush2.msra.mxu0 0.0
    %3227 = vmatprep.subr.mxu0 0.0
    %3228 = vmatpush2.msra.mxu0 0.0
    %3229 = vmatprep.subr.mxu0 0.0
    %3230 = vmatpush2.msra.mxu0 0.0
    %3231 = vmatprep.subr.mxu0 0.0
    %3232 = vmatpush2.msra.mxu0 0.0
    %3233 = vmatprep.subr.mxu0 0.0
    %3234 = vmatpush2.msra.mxu0 0.0
    %3235 = vmatprep.subr.mxu0 0.0
    %v3236 = vand.u32 %v2947, 4294901760
    %v3237 = vsub.f32 %v2947, %v3236
    %v3238 = vand.u32 %v3237, 4294901760
    %v3239 = vsub.f32 %v3237, %v3238
    %v3240 = vand.u32 %v3239, 4294901760
    %3241 = vmatpush2.msra.mxu0 %v3240
    %3242 = vmatprep.subr.mxu0 0.0
    %v3243 = vand.u32 %v2946, 4294901760
    %v3244 = vsub.f32 %v2946, %v3243
    %v3245 = vand.u32 %v3244, 4294901760
    %v3246 = vsub.f32 %v3244, %v3245
    %v3247 = vand.u32 %v3246, 4294901760
    %3248 = vmatpush2.msra.mxu0 %v3247
    %3249 = vmatprep.subr.mxu0 0.0
    %v3250 = vand.u32 %v2945, 4294901760
    %v3251 = vsub.f32 %v2945, %v3250
    %v3252 = vand.u32 %v3251, 4294901760
    %v3253 = vsub.f32 %v3251, %v3252
    %v3254 = vand.u32 %v3253, 4294901760
    %3255 = vmatpush2.msra.mxu0 %v3254
    %3256 = vmatprep.subr.mxu0 0.0
    %v3257 = vand.u32 %v2932, 4294901760
    %v3258 = vsub.f32 %v2932, %v3257
    %v3259 = vand.u32 %v3258, 4294901760
    %v3260 = vsub.f32 %v3258, %v3259
    %v3261 = vand.u32 %v3260, 4294901760
    %3262 = vmatpush2.msra.mxu0 %v3261
    %3263 = vmatprep.subr.mxu0 0.0
    %v3264 = vand.u32 %v2931, 4294901760
    %v3265 = vsub.f32 %v2931, %v3264
    %v3266 = vand.u32 %v3265, 4294901760
    %v3267 = vsub.f32 %v3265, %v3266
    %v3268 = vand.u32 %v3267, 4294901760
    %3269 = vmatpush2.msra.mxu0 %v3268
    %3270 = vmatprep.subr.mxu0 0.0
    %v3271 = vand.u32 %v2930, 4294901760
    %v3272 = vsub.f32 %v2930, %v3271
    %v3273 = vand.u32 %v3272, 4294901760
    %v3274 = vsub.f32 %v3272, %v3273
    %v3275 = vand.u32 %v3274, 4294901760
    %3276 = vmatpush2.msra.mxu0 %v3275
    %3277 = vmatprep.subr.mxu0 0.0
    %v3278 = vand.u32 %v2917, 4294901760
    %v3279 = vsub.f32 %v2917, %v3278
    %v3280 = vand.u32 %v3279, 4294901760
    %v3281 = vsub.f32 %v3279, %v3280
    %v3282 = vand.u32 %v3281, 4294901760
    %3283 = vmatpush2.msra.mxu0 %v3282
    %3284 = vmatprep.subr.mxu0 0.0
    %v3285 = vand.u32 %v2916, 4294901760
    %v3286 = vsub.f32 %v2916, %v3285
    %v3287 = vand.u32 %v3286, 4294901760
    %v3288 = vsub.f32 %v3286, %v3287
    %v3289 = vand.u32 %v3288, 4294901760
    %3290 = vmatpush2.msra.mxu0 %v3289
    %3291 = vmatprep.subr.mxu0 0.0
    %v3292 = vand.u32 %v2915, 4294901760
    %v3293 = vsub.f32 %v2915, %v3292
    %v3294 = vand.u32 %v3293, 4294901760
    %v3295 = vsub.f32 %v3293, %v3294
    %v3296 = vand.u32 %v3295, 4294901760
    %3297 = vmatpush2.msra.mxu0 %v3296
    %3298 = vmatprep.subr.mxu0 0.0
    %v3299 = vand.u32 %v2902, 4294901760
    %v3300 = vsub.f32 %v2902, %v3299
    %v3301 = vand.u32 %v3300, 4294901760
    %v3302 = vsub.f32 %v3300, %v3301
    %v3303 = vand.u32 %v3302, 4294901760
    %3304 = vmatpush2.msra.mxu0 %v3303
    %3305 = vmatprep.subr.mxu0 0.0
    %v3306 = vand.u32 %v2901, 4294901760
    %v3307 = vsub.f32 %v2901, %v3306
    %v3308 = vand.u32 %v3307, 4294901760
    %v3309 = vsub.f32 %v3307, %v3308
    %v3310 = vand.u32 %v3309, 4294901760
    %3311 = vmatpush2.msra.mxu0 %v3310
    %v3312 = vand.u32 %v2968, 4294901760
    %3313 = vmatprep.mubr.f32.mxu0 %v3312
    %v3314 = vand.u32 %v2819, 4294901760
    %3315 = vmatmul.mubr.f32.gmra.mxu0 %v3314
    %v3316 = vpop.f32.mrf.mxu0
    %v3317 = vadd.f32 %v3080, %v3316
    %v3318 = vpop.f32.mrf.mxu0
    %v3319 = vand.u32 %v2971, 4294901760
    %3320 = vmatprep.mubr.f32.mxu0 %v3319
    %v3321 = vand.u32 %v2821, 4294901760
    %3322 = vmatmul.mubr.f32.gmra.mxu0 %v3321
    %v3323 = vpop.f32.mrf.mxu0
    %v3324 = vadd.f32 %v3095, %v3323
    %v3325 = vpop.f32.mrf.mxu0
    %v3326 = vand.u32 %v2974, 4294901760
    %3327 = vmatprep.mubr.f32.mxu0 %v3326
    %v3328 = vand.u32 %v2823, 4294901760
    %3329 = vmatmul.mubr.f32.gmra.mxu0 %v3328
    %v3330 = vpop.f32.mrf.mxu0
    %v3331 = vadd.f32 %v3110, %v3330
    %v3332 = vpop.f32.mrf.mxu0
    %3333 = vdwg.mxu0
    %3334 = vmatprep.subr.mxu0 0.0
    %v3335 = vand.u32 %v2900, 4294901760
    %v3336 = vsub.f32 %v2900, %v3335
    %3337 = vmatpush1.msra.mxu0 %v3336
    %3338 = vmatprep.subr.mxu0 0.0
    %v3339 = vand.u32 %v2818, 4294901760
    %v3340 = vsub.f32 %v2818, %v3339
    %3341 = vmatpush1.msra.mxu0 %v3340
    %3342 = vmatprep.subr.mxu0 0.0
    %v3343 = vand.u32 %v2817, 4294901760
    %v3344 = vsub.f32 %v2817, %v3343
    %3345 = vmatpush1.msra.mxu0 %v3344
    %3346 = vmatprep.subr.mxu0 0.0
    %v3347 = vand.u32 %v2816, 4294901760
    %v3348 = vsub.f32 %v2816, %v3347
    %3349 = vmatpush1.msra.mxu0 %v3348
    %3350 = vmatprep.subr.mxu0 0.0
    %v3351 = vand.u32 %v2887, 4294901760
    %v3352 = vsub.f32 %v2887, %v3351
    %3353 = vmatpush1.msra.mxu0 %v3352
    %3354 = vmatprep.subr.mxu0 0.0
    %v3355 = vand.u32 %v2886, 4294901760
    %v3356 = vsub.f32 %v2886, %v3355
    %3357 = vmatpush1.msra.mxu0 %v3356
    %3358 = vmatprep.subr.mxu0 0.0
    %v3359 = vand.u32 %v2885, 4294901760
    %v3360 = vsub.f32 %v2885, %v3359
    %3361 = vmatpush1.msra.mxu0 %v3360
    %3362 = vmatprep.subr.mxu0 0.0
    %v3363 = vand.u32 %v2872, 4294901760
    %v3364 = vsub.f32 %v2872, %v3363
    %3365 = vmatpush1.msra.mxu0 %v3364
    %3366 = vmatprep.subr.mxu0 0.0
    %v3367 = vand.u32 %v2871, 4294901760
    %v3368 = vsub.f32 %v2871, %v3367
    %3369 = vmatpush1.msra.mxu0 %v3368
    %3370 = vmatprep.subr.mxu0 0.0
    %v3371 = vand.u32 %v2870, 4294901760
    %v3372 = vsub.f32 %v2870, %v3371
    %3373 = vmatpush1.msra.mxu0 %v3372
    %3374 = vmatprep.subr.mxu0 0.0
    %v3375 = vand.u32 %v2857, 4294901760
    %v3376 = vsub.f32 %v2857, %v3375
    %3377 = vmatpush1.msra.mxu0 %v3376
    %3378 = vmatprep.subr.mxu0 0.0
    %v3379 = vand.u32 %v2856, 4294901760
    %v3380 = vsub.f32 %v2856, %v3379
    %3381 = vmatpush1.msra.mxu0 %v3380
    %3382 = vmatprep.subr.mxu0 0.0
    %v3383 = vand.u32 %v2855, 4294901760
    %v3384 = vsub.f32 %v2855, %v3383
    %3385 = vmatpush1.msra.mxu0 %v3384
    %3386 = vmatprep.subr.mxu0 0.0
    %v3387 = vand.u32 %v2842, 4294901760
    %v3388 = vsub.f32 %v2842, %v3387
    %3389 = vmatpush1.msra.mxu0 %v3388
    %3390 = vmatprep.subr.mxu0 0.0
    %v3391 = vand.u32 %v2841, 4294901760
    %v3392 = vsub.f32 %v2841, %v3391
    %3393 = vmatpush1.msra.mxu0 %v3392
    %3394 = vmatprep.subr.mxu0 0.0
    %v3395 = vand.u32 %v2840, 4294901760
    %v3396 = vsub.f32 %v2840, %v3395
    %3397 = vmatpush1.msra.mxu0 %v3396
    %3398 = vmatprep.subr.mxu0 0.0
    %3399 = vmatpush2.msra.mxu0 0.0
    %3400 = vmatprep.subr.mxu0 0.0
    %3401 = vmatpush2.msra.mxu0 0.0
    %3402 = vmatprep.subr.mxu0 0.0
    %3403 = vmatpush2.msra.mxu0 0.0
    %3404 = vmatprep.subr.mxu0 0.0
    %3405 = vmatpush2.msra.mxu0 0.0
    %3406 = vmatprep.subr.mxu0 0.0
    %3407 = vmatpush2.msra.mxu0 0.0
    %3408 = vmatprep.subr.mxu0 0.0
    %v3409 = vand.u32 %v2947, 4294901760
    %v3410 = vsub.f32 %v2947, %v3409
    %3411 = vmatpush2.msra.mxu0 %v3410
    %3412 = vmatprep.subr.mxu0 0.0
    %v3413 = vand.u32 %v2946, 4294901760
    %v3414 = vsub.f32 %v2946, %v3413
    %3415 = vmatpush2.msra.mxu0 %v3414
    %3416 = vmatprep.subr.mxu0 0.0
    %v3417 = vand.u32 %v2945, 4294901760
    %v3418 = vsub.f32 %v2945, %v3417
    %3419 = vmatpush2.msra.mxu0 %v3418
    %3420 = vmatprep.subr.mxu0 0.0
    %v3421 = vand.u32 %v2932, 4294901760
    %v3422 = vsub.f32 %v2932, %v3421
    %3423 = vmatpush2.msra.mxu0 %v3422
    %3424 = vmatprep.subr.mxu0 0.0
    %v3425 = vand.u32 %v2931, 4294901760
    %v3426 = vsub.f32 %v2931, %v3425
    %3427 = vmatpush2.msra.mxu0 %v3426
    %3428 = vmatprep.subr.mxu0 0.0
    %v3429 = vand.u32 %v2930, 4294901760
    %v3430 = vsub.f32 %v2930, %v3429
    %3431 = vmatpush2.msra.mxu0 %v3430
    %3432 = vmatprep.subr.mxu0 0.0
    %v3433 = vand.u32 %v2917, 4294901760
    %v3434 = vsub.f32 %v2917, %v3433
    %3435 = vmatpush2.msra.mxu0 %v3434
    %3436 = vmatprep.subr.mxu0 0.0
    %v3437 = vand.u32 %v2916, 4294901760
    %v3438 = vsub.f32 %v2916, %v3437
    %3439 = vmatpush2.msra.mxu0 %v3438
    %3440 = vmatprep.subr.mxu0 0.0
    %v3441 = vand.u32 %v2915, 4294901760
    %v3442 = vsub.f32 %v2915, %v3441
    %3443 = vmatpush2.msra.mxu0 %v3442
    %3444 = vmatprep.subr.mxu0 0.0
    %v3445 = vand.u32 %v2902, 4294901760
    %v3446 = vsub.f32 %v2902, %v3445
    %3447 = vmatpush2.msra.mxu0 %v3446
    %3448 = vmatprep.subr.mxu0 0.0
    %v3449 = vand.u32 %v2901, 4294901760
    %v3450 = vsub.f32 %v2901, %v3449
    %3451 = vmatpush2.msra.mxu0 %v3450
    %v3452 = vand.u32 %v2968, 4294901760
    %v3453 = vsub.f32 %v2968, %v3452
    %3454 = vmatprep.mubr.f32.mxu0 %v3453
    %v3455 = vand.u32 %v2819, 4294901760
    %v3456 = vsub.f32 %v2819, %v3455
    %3457 = vmatmul.mubr.f32.gmra.mxu0 %v3456
    %v3458 = vpop.f32.mrf.mxu0
    %v3459 = vadd.f32 %v3317, %v3458
    %v3460 = vpop.f32.mrf.mxu0
    %v3461 = vand.u32 %v2971, 4294901760
    %v3462 = vsub.f32 %v2971, %v3461
    %3463 = vmatprep.mubr.f32.mxu0 %v3462
    %v3464 = vand.u32 %v2821, 4294901760
    %v3465 = vsub.f32 %v2821, %v3464
    %3466 = vmatmul.mubr.f32.gmra.mxu0 %v3465
    %v3467 = vpop.f32.mrf.mxu0
    %v3468 = vadd.f32 %v3324, %v3467
    %v3469 = vpop.f32.mrf.mxu0
    %v3470 = vand.u32 %v2974, 4294901760
    %v3471 = vsub.f32 %v2974, %v3470
    %3472 = vmatprep.mubr.f32.mxu0 %v3471
    %v3473 = vand.u32 %v2823, 4294901760
    %v3474 = vsub.f32 %v2823, %v3473
    %3475 = vmatmul.mubr.f32.gmra.mxu0 %v3474
    %v3476 = vpop.f32.mrf.mxu0
    %v3477 = vadd.f32 %v3331, %v3476
    %v3478 = vpop.f32.mrf.mxu0
    %3479 = vdwg.mxu0
    %3480 = vmatprep.subr.mxu0 0.0
    %v3481 = vand.u32 %v2900, 4294901760
    %3482 = vmatpush1.msra.mxu0 %v3481
    %3483 = vmatprep.subr.mxu0 0.0
    %v3484 = vand.u32 %v2818, 4294901760
    %3485 = vmatpush1.msra.mxu0 %v3484
    %3486 = vmatprep.subr.mxu0 0.0
    %v3487 = vand.u32 %v2817, 4294901760
    %3488 = vmatpush1.msra.mxu0 %v3487
    %3489 = vmatprep.subr.mxu0 0.0
    %v3490 = vand.u32 %v2816, 4294901760
    %3491 = vmatpush1.msra.mxu0 %v3490
    %3492 = vmatprep.subr.mxu0 0.0
    %v3493 = vand.u32 %v2887, 4294901760
    %3494 = vmatpush1.msra.mxu0 %v3493
    %3495 = vmatprep.subr.mxu0 0.0
    %v3496 = vand.u32 %v2886, 4294901760
    %3497 = vmatpush1.msra.mxu0 %v3496
    %3498 = vmatprep.subr.mxu0 0.0
    %v3499 = vand.u32 %v2885, 4294901760
    %3500 = vmatpush1.msra.mxu0 %v3499
    %3501 = vmatprep.subr.mxu0 0.0
    %v3502 = vand.u32 %v2872, 4294901760
    %3503 = vmatpush1.msra.mxu0 %v3502
    %3504 = vmatprep.subr.mxu0 0.0
    %v3505 = vand.u32 %v2871, 4294901760
    %3506 = vmatpush1.msra.mxu0 %v3505
    %3507 = vmatprep.subr.mxu0 0.0
    %v3508 = vand.u32 %v2870, 4294901760
    %3509 = vmatpush1.msra.mxu0 %v3508
    %3510 = vmatprep.subr.mxu0 0.0
    %v3511 = vand.u32 %v2857, 4294901760
    %3512 = vmatpush1.msra.mxu0 %v3511
    %3513 = vmatprep.subr.mxu0 0.0
    %v3514 = vand.u32 %v2856, 4294901760
    %3515 = vmatpush1.msra.mxu0 %v3514
    %3516 = vmatprep.subr.mxu0 0.0
    %v3517 = vand.u32 %v2855, 4294901760
    %3518 = vmatpush1.msra.mxu0 %v3517
    %3519 = vmatprep.subr.mxu0 0.0
    %v3520 = vand.u32 %v2842, 4294901760
    %3521 = vmatpush1.msra.mxu0 %v3520
    %3522 = vmatprep.subr.mxu0 0.0
    %v3523 = vand.u32 %v2841, 4294901760
    %3524 = vmatpush1.msra.mxu0 %v3523
    %3525 = vmatprep.subr.mxu0 0.0
    %v3526 = vand.u32 %v2840, 4294901760
    %3527 = vmatpush1.msra.mxu0 %v3526
    %3528 = vmatprep.subr.mxu0 0.0
    %3529 = vmatpush2.msra.mxu0 0.0
    %3530 = vmatprep.subr.mxu0 0.0
    %3531 = vmatpush2.msra.mxu0 0.0
    %3532 = vmatprep.subr.mxu0 0.0
    %3533 = vmatpush2.msra.mxu0 0.0
    %3534 = vmatprep.subr.mxu0 0.0
    %3535 = vmatpush2.msra.mxu0 0.0
    %3536 = vmatprep.subr.mxu0 0.0
    %3537 = vmatpush2.msra.mxu0 0.0
    %3538 = vmatprep.subr.mxu0 0.0
    %v3539 = vand.u32 %v2947, 4294901760
    %3540 = vmatpush2.msra.mxu0 %v3539
    %3541 = vmatprep.subr.mxu0 0.0
    %v3542 = vand.u32 %v2946, 4294901760
    %3543 = vmatpush2.msra.mxu0 %v3542
    %3544 = vmatprep.subr.mxu0 0.0
    %v3545 = vand.u32 %v2945, 4294901760
    %3546 = vmatpush2.msra.mxu0 %v3545
    %3547 = vmatprep.subr.mxu0 0.0
    %v3548 = vand.u32 %v2932, 4294901760
    %3549 = vmatpush2.msra.mxu0 %v3548
    %3550 = vmatprep.subr.mxu0 0.0
    %v3551 = vand.u32 %v2931, 4294901760
    %3552 = vmatpush2.msra.mxu0 %v3551
    %3553 = vmatprep.subr.mxu0 0.0
    %v3554 = vand.u32 %v2930, 4294901760
    %3555 = vmatpush2.msra.mxu0 %v3554
    %3556 = vmatprep.subr.mxu0 0.0
    %v3557 = vand.u32 %v2917, 4294901760
    %3558 = vmatpush2.msra.mxu0 %v3557
    %3559 = vmatprep.subr.mxu0 0.0
    %v3560 = vand.u32 %v2916, 4294901760
    %3561 = vmatpush2.msra.mxu0 %v3560
    %3562 = vmatprep.subr.mxu0 0.0
    %v3563 = vand.u32 %v2915, 4294901760
    %3564 = vmatpush2.msra.mxu0 %v3563
    %3565 = vmatprep.subr.mxu0 0.0
    %v3566 = vand.u32 %v2902, 4294901760
    %3567 = vmatpush2.msra.mxu0 %v3566
    %3568 = vmatprep.subr.mxu0 0.0
    %v3569 = vand.u32 %v2901, 4294901760
    %3570 = vmatpush2.msra.mxu0 %v3569
    %v3571 = vand.u32 %v2968, 4294901760
    %v3572 = vsub.f32 %v2968, %v3571
    %v3573 = vand.u32 %v3572, 4294901760
    %3574 = vmatprep.mubr.f32.mxu0 %v3573
    %v3575 = vand.u32 %v2819, 4294901760
    %v3576 = vsub.f32 %v2819, %v3575
    %v3577 = vand.u32 %v3576, 4294901760
    %3578 = vmatmul.mubr.f32.gmra.mxu0 %v3577
    %v3579 = vpop.f32.mrf.mxu0
    %v3580 = vadd.f32 %v3459, %v3579
    %v3581 = vpop.f32.mrf.mxu0
    %v3582 = vand.u32 %v2971, 4294901760
    %v3583 = vsub.f32 %v2971, %v3582
    %v3584 = vand.u32 %v3583, 4294901760
    %3585 = vmatprep.mubr.f32.mxu0 %v3584
    %v3586 = vand.u32 %v2821, 4294901760
    %v3587 = vsub.f32 %v2821, %v3586
    %v3588 = vand.u32 %v3587, 4294901760
    %3589 = vmatmul.mubr.f32.gmra.mxu0 %v3588
    %v3590 = vpop.f32.mrf.mxu0
    %v3591 = vadd.f32 %v3468, %v3590
    %v3592 = vpop.f32.mrf.mxu0
    %v3593 = vand.u32 %v2974, 4294901760
    %v3594 = vsub.f32 %v2974, %v3593
    %v3595 = vand.u32 %v3594, 4294901760
    %3596 = vmatprep.mubr.f32.mxu0 %v3595
    %v3597 = vand.u32 %v2823, 4294901760
    %v3598 = vsub.f32 %v2823, %v3597
    %v3599 = vand.u32 %v3598, 4294901760
    %3600 = vmatmul.mubr.f32.gmra.mxu0 %v3599
    %v3601 = vpop.f32.mrf.mxu0
    %v3602 = vadd.f32 %v3477, %v3601
    %v3603 = vpop.f32.mrf.mxu0
    %3604 = vdwg.mxu0
    %3605 = vmatprep.subr.mxu0 0.0
    %v3606 = vand.u32 %v2900, 4294901760
    %v3607 = vsub.f32 %v2900, %v3606
    %v3608 = vand.u32 %v3607, 4294901760
    %3609 = vmatpush1.msra.mxu0 %v3608
    %3610 = vmatprep.subr.mxu0 0.0
    %v3611 = vand.u32 %v2818, 4294901760
    %v3612 = vsub.f32 %v2818, %v3611
    %v3613 = vand.u32 %v3612, 4294901760
    %3614 = vmatpush1.msra.mxu0 %v3613
    %3615 = vmatprep.subr.mxu0 0.0
    %v3616 = vand.u32 %v2817, 4294901760
    %v3617 = vsub.f32 %v2817, %v3616
    %v3618 = vand.u32 %v3617, 4294901760
    %3619 = vmatpush1.msra.mxu0 %v3618
    %3620 = vmatprep.subr.mxu0 0.0
    %v3621 = vand.u32 %v2816, 4294901760
    %v3622 = vsub.f32 %v2816, %v3621
    %v3623 = vand.u32 %v3622, 4294901760
    %3624 = vmatpush1.msra.mxu0 %v3623
    %3625 = vmatprep.subr.mxu0 0.0
    %v3626 = vand.u32 %v2887, 4294901760
    %v3627 = vsub.f32 %v2887, %v3626
    %v3628 = vand.u32 %v3627, 4294901760
    %3629 = vmatpush1.msra.mxu0 %v3628
    %3630 = vmatprep.subr.mxu0 0.0
    %v3631 = vand.u32 %v2886, 4294901760
    %v3632 = vsub.f32 %v2886, %v3631
    %v3633 = vand.u32 %v3632, 4294901760
    %3634 = vmatpush1.msra.mxu0 %v3633
    %3635 = vmatprep.subr.mxu0 0.0
    %v3636 = vand.u32 %v2885, 4294901760
    %v3637 = vsub.f32 %v2885, %v3636
    %v3638 = vand.u32 %v3637, 4294901760
    %3639 = vmatpush1.msra.mxu0 %v3638
    %3640 = vmatprep.subr.mxu0 0.0
    %v3641 = vand.u32 %v2872, 4294901760
    %v3642 = vsub.f32 %v2872, %v3641
    %v3643 = vand.u32 %v3642, 4294901760
    %3644 = vmatpush1.msra.mxu0 %v3643
    %3645 = vmatprep.subr.mxu0 0.0
    %v3646 = vand.u32 %v2871, 4294901760
    %v3647 = vsub.f32 %v2871, %v3646
    %v3648 = vand.u32 %v3647, 4294901760
    %3649 = vmatpush1.msra.mxu0 %v3648
    %3650 = vmatprep.subr.mxu0 0.0
    %v3651 = vand.u32 %v2870, 4294901760
    %v3652 = vsub.f32 %v2870, %v3651
    %v3653 = vand.u32 %v3652, 4294901760
    %3654 = vmatpush1.msra.mxu0 %v3653
    %3655 = vmatprep.subr.mxu0 0.0
    %v3656 = vand.u32 %v2857, 4294901760
    %v3657 = vsub.f32 %v2857, %v3656
    %v3658 = vand.u32 %v3657, 4294901760
    %3659 = vmatpush1.msra.mxu0 %v3658
    %3660 = vmatprep.subr.mxu0 0.0
    %v3661 = vand.u32 %v2856, 4294901760
    %v3662 = vsub.f32 %v2856, %v3661
    %v3663 = vand.u32 %v3662, 4294901760
    %3664 = vmatpush1.msra.mxu0 %v3663
    %3665 = vmatprep.subr.mxu0 0.0
    %v3666 = vand.u32 %v2855, 4294901760
    %v3667 = vsub.f32 %v2855, %v3666
    %v3668 = vand.u32 %v3667, 4294901760
    %3669 = vmatpush1.msra.mxu0 %v3668
    %3670 = vmatprep.subr.mxu0 0.0
    %v3671 = vand.u32 %v2842, 4294901760
    %v3672 = vsub.f32 %v2842, %v3671
    %v3673 = vand.u32 %v3672, 4294901760
    %3674 = vmatpush1.msra.mxu0 %v3673
    %3675 = vmatprep.subr.mxu0 0.0
    %v3676 = vand.u32 %v2841, 4294901760
    %v3677 = vsub.f32 %v2841, %v3676
    %v3678 = vand.u32 %v3677, 4294901760
    %3679 = vmatpush1.msra.mxu0 %v3678
    %3680 = vmatprep.subr.mxu0 0.0
    %v3681 = vand.u32 %v2840, 4294901760
    %v3682 = vsub.f32 %v2840, %v3681
    %v3683 = vand.u32 %v3682, 4294901760
    %3684 = vmatpush1.msra.mxu0 %v3683
    %3685 = vmatprep.subr.mxu0 0.0
    %3686 = vmatpush2.msra.mxu0 0.0
    %3687 = vmatprep.subr.mxu0 0.0
    %3688 = vmatpush2.msra.mxu0 0.0
    %3689 = vmatprep.subr.mxu0 0.0
    %3690 = vmatpush2.msra.mxu0 0.0
    %3691 = vmatprep.subr.mxu0 0.0
    %3692 = vmatpush2.msra.mxu0 0.0
    %3693 = vmatprep.subr.mxu0 0.0
    %3694 = vmatpush2.msra.mxu0 0.0
    %3695 = vmatprep.subr.mxu0 0.0
    %v3696 = vand.u32 %v2947, 4294901760
    %v3697 = vsub.f32 %v2947, %v3696
    %v3698 = vand.u32 %v3697, 4294901760
    %3699 = vmatpush2.msra.mxu0 %v3698
    %3700 = vmatprep.subr.mxu0 0.0
    %v3701 = vand.u32 %v2946, 4294901760
    %v3702 = vsub.f32 %v2946, %v3701
    %v3703 = vand.u32 %v3702, 4294901760
    %3704 = vmatpush2.msra.mxu0 %v3703
    %3705 = vmatprep.subr.mxu0 0.0
    %v3706 = vand.u32 %v2945, 4294901760
    %v3707 = vsub.f32 %v2945, %v3706
    %v3708 = vand.u32 %v3707, 4294901760
    %3709 = vmatpush2.msra.mxu0 %v3708
    %3710 = vmatprep.subr.mxu0 0.0
    %v3711 = vand.u32 %v2932, 4294901760
    %v3712 = vsub.f32 %v2932, %v3711
    %v3713 = vand.u32 %v3712, 4294901760
    %3714 = vmatpush2.msra.mxu0 %v3713
    %3715 = vmatprep.subr.mxu0 0.0
    %v3716 = vand.u32 %v2931, 4294901760
    %v3717 = vsub.f32 %v2931, %v3716
    %v3718 = vand.u32 %v3717, 4294901760
    %3719 = vmatpush2.msra.mxu0 %v3718
    %3720 = vmatprep.subr.mxu0 0.0
    %v3721 = vand.u32 %v2930, 4294901760
    %v3722 = vsub.f32 %v2930, %v3721
    %v3723 = vand.u32 %v3722, 4294901760
    %3724 = vmatpush2.msra.mxu0 %v3723
    %3725 = vmatprep.subr.mxu0 0.0
    %v3726 = vand.u32 %v2917, 4294901760
    %v3727 = vsub.f32 %v2917, %v3726
    %v3728 = vand.u32 %v3727, 4294901760
    %3729 = vmatpush2.msra.mxu0 %v3728
    %3730 = vmatprep.subr.mxu0 0.0
    %v3731 = vand.u32 %v2916, 4294901760
    %v3732 = vsub.f32 %v2916, %v3731
    %v3733 = vand.u32 %v3732, 4294901760
    %3734 = vmatpush2.msra.mxu0 %v3733
    %3735 = vmatprep.subr.mxu0 0.0
    %v3736 = vand.u32 %v2915, 4294901760
    %v3737 = vsub.f32 %v2915, %v3736
    %v3738 = vand.u32 %v3737, 4294901760
    %3739 = vmatpush2.msra.mxu0 %v3738
    %3740 = vmatprep.subr.mxu0 0.0
    %v3741 = vand.u32 %v2902, 4294901760
    %v3742 = vsub.f32 %v2902, %v3741
    %v3743 = vand.u32 %v3742, 4294901760
    %3744 = vmatpush2.msra.mxu0 %v3743
    %3745 = vmatprep.subr.mxu0 0.0
    %v3746 = vand.u32 %v2901, 4294901760
    %v3747 = vsub.f32 %v2901, %v3746
    %v3748 = vand.u32 %v3747, 4294901760
    %3749 = vmatpush2.msra.mxu0 %v3748
    %v3750 = vand.u32 %v2968, 4294901760
    %3751 = vmatprep.mubr.f32.mxu0 %v3750
    %v3752 = vand.u32 %v2819, 4294901760
    %3753 = vmatmul.mubr.f32.gmra.mxu0 %v3752
    %v3754 = vpop.f32.mrf.mxu0
    %v3755 = vadd.f32 %v3580, %v3754
    %v3756 = vpop.f32.mrf.mxu0
    %v3757 = vand.u32 %v2971, 4294901760
    %3758 = vmatprep.mubr.f32.mxu0 %v3757
    %v3759 = vand.u32 %v2821, 4294901760
    %3760 = vmatmul.mubr.f32.gmra.mxu0 %v3759
    %v3761 = vpop.f32.mrf.mxu0
    %v3762 = vadd.f32 %v3591, %v3761
    %v3763 = vpop.f32.mrf.mxu0
    %v3764 = vand.u32 %v2974, 4294901760
    %3765 = vmatprep.mubr.f32.mxu0 %v3764
    %v3766 = vand.u32 %v2823, 4294901760
    %3767 = vmatmul.mubr.f32.gmra.mxu0 %v3766
    %v3768 = vpop.f32.mrf.mxu0
    %v3769 = vadd.f32 %v3602, %v3768
    %v3770 = vpop.f32.mrf.mxu0
    %3771 = vdwg.mxu0
    %3772 = vmatprep.subr.mxu0 0.0
    %v3773 = vand.u32 %v2900, 4294901760
    %3774 = vmatpush1.msra.mxu0 %v3773
    %3775 = vmatprep.subr.mxu0 0.0
    %v3776 = vand.u32 %v2818, 4294901760
    %3777 = vmatpush1.msra.mxu0 %v3776
    %3778 = vmatprep.subr.mxu0 0.0
    %v3779 = vand.u32 %v2817, 4294901760
    %3780 = vmatpush1.msra.mxu0 %v3779
    %3781 = vmatprep.subr.mxu0 0.0
    %v3782 = vand.u32 %v2816, 4294901760
    %3783 = vmatpush1.msra.mxu0 %v3782
    %3784 = vmatprep.subr.mxu0 0.0
    %v3785 = vand.u32 %v2887, 4294901760
    %3786 = vmatpush1.msra.mxu0 %v3785
    %3787 = vmatprep.subr.mxu0 0.0
    %v3788 = vand.u32 %v2886, 4294901760
    %3789 = vmatpush1.msra.mxu0 %v3788
    %3790 = vmatprep.subr.mxu0 0.0
    %v3791 = vand.u32 %v2885, 4294901760
    %3792 = vmatpush1.msra.mxu0 %v3791
    %3793 = vmatprep.subr.mxu0 0.0
    %v3794 = vand.u32 %v2872, 4294901760
    %3795 = vmatpush1.msra.mxu0 %v3794
    %3796 = vmatprep.subr.mxu0 0.0
    %v3797 = vand.u32 %v2871, 4294901760
    %3798 = vmatpush1.msra.mxu0 %v3797
    %3799 = vmatprep.subr.mxu0 0.0
    %v3800 = vand.u32 %v2870, 4294901760
    %3801 = vmatpush1.msra.mxu0 %v3800
    %3802 = vmatprep.subr.mxu0 0.0
    %v3803 = vand.u32 %v2857, 4294901760
    %3804 = vmatpush1.msra.mxu0 %v3803
    %3805 = vmatprep.subr.mxu0 0.0
    %v3806 = vand.u32 %v2856, 4294901760
    %3807 = vmatpush1.msra.mxu0 %v3806
    %3808 = vmatprep.subr.mxu0 0.0
    %v3809 = vand.u32 %v2855, 4294901760
    %3810 = vmatpush1.msra.mxu0 %v3809
    %3811 = vmatprep.subr.mxu0 0.0
    %v3812 = vand.u32 %v2842, 4294901760
    %3813 = vmatpush1.msra.mxu0 %v3812
    %3814 = vmatprep.subr.mxu0 0.0
    %v3815 = vand.u32 %v2841, 4294901760
    %3816 = vmatpush1.msra.mxu0 %v3815
    %3817 = vmatprep.subr.mxu0 0.0
    %v3818 = vand.u32 %v2840, 4294901760
    %3819 = vmatpush1.msra.mxu0 %v3818
    %3820 = vmatprep.subr.mxu0 0.0
    %3821 = vmatpush2.msra.mxu0 0.0
    %3822 = vmatprep.subr.mxu0 0.0
    %3823 = vmatpush2.msra.mxu0 0.0
    %3824 = vmatprep.subr.mxu0 0.0
    %3825 = vmatpush2.msra.mxu0 0.0
    %3826 = vmatprep.subr.mxu0 0.0
    %3827 = vmatpush2.msra.mxu0 0.0
    %3828 = vmatprep.subr.mxu0 0.0
    %3829 = vmatpush2.msra.mxu0 0.0
    %3830 = vmatprep.subr.mxu0 0.0
    %v3831 = vand.u32 %v2947, 4294901760
    %3832 = vmatpush2.msra.mxu0 %v3831
    %3833 = vmatprep.subr.mxu0 0.0
    %v3834 = vand.u32 %v2946, 4294901760
    %3835 = vmatpush2.msra.mxu0 %v3834
    %3836 = vmatprep.subr.mxu0 0.0
    %v3837 = vand.u32 %v2945, 4294901760
    %3838 = vmatpush2.msra.mxu0 %v3837
    %3839 = vmatprep.subr.mxu0 0.0
    %v3840 = vand.u32 %v2932, 4294901760
    %3841 = vmatpush2.msra.mxu0 %v3840
    %3842 = vmatprep.subr.mxu0 0.0
    %v3843 = vand.u32 %v2931, 4294901760
    %3844 = vmatpush2.msra.mxu0 %v3843
    %3845 = vmatprep.subr.mxu0 0.0
    %v3846 = vand.u32 %v2930, 4294901760
    %3847 = vmatpush2.msra.mxu0 %v3846
    %3848 = vmatprep.subr.mxu0 0.0
    %v3849 = vand.u32 %v2917, 4294901760
    %3850 = vmatpush2.msra.mxu0 %v3849
    %3851 = vmatprep.subr.mxu0 0.0
    %v3852 = vand.u32 %v2916, 4294901760
    %3853 = vmatpush2.msra.mxu0 %v3852
    %3854 = vmatprep.subr.mxu0 0.0
    %v3855 = vand.u32 %v2915, 4294901760
    %3856 = vmatpush2.msra.mxu0 %v3855
    %3857 = vmatprep.subr.mxu0 0.0
    %v3858 = vand.u32 %v2902, 4294901760
    %3859 = vmatpush2.msra.mxu0 %v3858
    %3860 = vmatprep.subr.mxu0 0.0
    %v3861 = vand.u32 %v2901, 4294901760
    %3862 = vmatpush2.msra.mxu0 %v3861
    %v3863 = vand.u32 %v2968, 4294901760
    %3864 = vmatprep.mubr.f32.mxu0 %v3863
    %v3865 = vand.u32 %v2819, 4294901760
    %3866 = vmatmul.mubr.f32.gmra.mxu0 %v3865
    %v3867 = vpop.f32.mrf.mxu0
    %v3868 = vadd.f32 %v3755, %v3867
    %v3869 = vpop.f32.mrf.mxu0
    %v3870 = vand.u32 %v2971, 4294901760
    %3871 = vmatprep.mubr.f32.mxu0 %v3870
    %v3872 = vand.u32 %v2821, 4294901760
    %3873 = vmatmul.mubr.f32.gmra.mxu0 %v3872
    %v3874 = vpop.f32.mrf.mxu0
    %v3875 = vadd.f32 %v3762, %v3874
    %v3876 = vpop.f32.mrf.mxu0
    %v3877 = vand.u32 %v2974, 4294901760
    %3878 = vmatprep.mubr.f32.mxu0 %v3877
    %v3879 = vand.u32 %v2823, 4294901760
    %3880 = vmatmul.mubr.f32.gmra.mxu0 %v3879
    %v3881 = vpop.f32.mrf.mxu0
    %v3882 = vadd.f32 %v3769, %v3881
    %v3883 = vpop.f32.mrf.mxu0
    %3884 = vdwg.mxu0
    %vm3885 = vcmask 654336
    %3886 = vst.msk [vmem:[%s19] sm:$0xff] %vm3885, %v3868
    %3887 = vst.msk [vmem:[%s19 + $0x8] sm:$0xff] %vm3885, %v3875
    %3888 = vst.msk [vmem:[%s19 + $0x10] sm:$0xff] %vm3885, %v3882
    // Predicated region
    $region82: #{model_forward.1} parent=1 // pred_check
      _
    $region83: #{model_forward.1} parent=1 // pred_check_branch
      %3890 = sbr.rel (0) target = $region85
    $region84: #{model_forward.1} parent=1 // pred_region
      _
    $region85: #{model_forward.1} parent=1 // pred_fallthru
      _
    // Predicated region
    $region86: #{model_forward.1} parent=1 // pred_check
      _
    $region87: #{model_forward.1} parent=1 // pred_check_branch
      %3892 = sbr.rel (0) target = $region89
    $region88: #{model_forward.1} parent=1 // pred_region
      _
    $region89: #{model_forward.1} parent=1 // pred_fallthru
      _
    %3893 = vsyncpa [#allocation3], 1

</llo_original>
